<compile_context>
chip_gen: v6e
topology: v6e:2x2x1
jax: 0.10.0
libtpu: 0.0.40
codegen_flags: <defaults>
</compile_context>

<pallas_src>
import functools

import jax
import jax.numpy as jnp
from jax.experimental import pallas as pl
from jax.experimental.pallas import tpu as pltpu


def _round_up(x, m):
    return ((x + m - 1) // m) * m


def _fold_bn(gamma, beta, mean, var, eps=1e-5):
    scale = (gamma / jnp.sqrt(var + eps)).astype(jnp.float32)
    bias = (beta - mean * scale).astype(jnp.float32)
    return scale, bias


# -----------------------------------------------------------------------------
# Kernel 1: tiled matmul over one or two (A, W) pairs + bias (+ ReLU).
# BN scales are pre-folded into the weight columns, so a single f32 VMEM
# accumulator covers the main branch and the (fused) residual branch.
# -----------------------------------------------------------------------------
def _matmul_bias_kernel(*refs, relu, nks, grid_k):
    n_pairs = len(nks)
    b_ref = refs[2 * n_pairs]
    o_ref = refs[2 * n_pairs + 1]
    acc_ref = refs[2 * n_pairs + 2]
    k = pl.program_id(2)

    @pl.when(k == 0)
    def _init():
        acc_ref[...] = jnp.zeros_like(acc_ref)

    for p in range(n_pairs):
        a_ref, w_ref = refs[2 * p], refs[2 * p + 1]

        def _accum(a_ref=a_ref, w_ref=w_ref):
            acc_ref[...] += jnp.dot(a_ref[...], w_ref[...],
                                    preferred_element_type=jnp.float32)

        if nks[p] == grid_k:          # pair spans every K step
            _accum()
        else:                         # pair has fewer K blocks than the grid
            pl.when(k < nks[p])(_accum)

    @pl.when(k == grid_k - 1)
    def _epilogue():
        y = acc_ref[...] + b_ref[...]
        if relu:
            y = jnp.maximum(y, 0.0)
        o_ref[...] = y.astype(o_ref.dtype)


def matmul_bias(pairs, bias, *, relu, out_dtype):
    """sum_i A_i @ W_i + bias (+ ReLU).

    pairs: list of (A (M, K_i), W (Kw_i <= K_i, C)).  BN scales must already be
    folded into W columns.  Activations are consumed bf16 and the output is
    returned channel-padded (Cp = multiple of 128) so downstream kernels need
    no extra pad/cast passes.
    """
    M = pairs[0][0].shape[0]
    C = pairs[0][1].shape[1]
    TM = min(512, _round_up(M, 128))
    TN = min(512, _round_up(C, 128))
    Mp = _round_up(M, TM)
    Cp = _round_up(C, TN)

    prepared = []
    for a, w in pairs:
        assert a.shape[0] == M and w.shape[1] == C
        K = a.shape[1]
        TK = min(512, _round_up(K, 128))
        Kp = _round_up(K, TK)
        a_p = jnp.pad(a.astype(jnp.bfloat16), ((0, Mp - M), (0, Kp - K)))
        w_p = jnp.pad(w.astype(jnp.bfloat16),
                      ((0, Kp - w.shape[0]), (0, Cp - C)))
        prepared.append((a_p, w_p, TK, Kp // TK))

    grid_k = max(nk for *_, nk in prepared)
    operands, in_specs, nks = [], [], []
    for a_p, w_p, TK, nk in prepared:
        if nk == grid_k:
            a_map = lambda i, j, k: (i, k)
            w_map = lambda i, j, k: (k, j)
        else:
            a_map = lambda i, j, k, nk=nk: (i, jnp.minimum(k, nk - 1))
            w_map = lambda i, j, k, nk=nk: (jnp.minimum(k, nk - 1), j)
        in_specs += [pl.BlockSpec((TM, TK), a_map),
                     pl.BlockSpec((TK, TN), w_map)]
        operands += [a_p, w_p]
        nks.append(nk)

    b_p = jnp.pad(bias.reshape(1, -1).astype(jnp.float32),
                  ((0, 0), (0, Cp - C)))
    in_specs.append(pl.BlockSpec((1, TN), lambda i, j, k: (0, j)))
    operands.append(b_p)

    flops = sum(2 * Mp * a_p.shape[1] * Cp for a_p, *_ in prepared)
    bytes_accessed = (sum(a_p.size * 2 + w_p.size * 2
                          for a_p, w_p, *_ in prepared)
                      + Mp * Cp * jnp.dtype(out_dtype).itemsize)

    kernel = functools.partial(_matmul_bias_kernel, relu=relu,
                               nks=tuple(nks), grid_k=grid_k)
    out = pl.pallas_call(
        kernel,
        out_shape=jax.ShapeDtypeStruct((Mp, Cp), out_dtype),
        grid_spec=pltpu.PrefetchScalarGridSpec(
            num_scalar_prefetch=0,
            grid=(Mp // TM, Cp // TN, grid_k),
            in_specs=in_specs,
            out_specs=pl.BlockSpec((TM, TN), lambda i, j, k: (i, j)),
            scratch_shapes=[pltpu.VMEM((TM, TN), jnp.float32)],
        ),
        compiler_params=pltpu.CompilerParams(
            dimension_semantics=("parallel", "parallel", "arbitrary"),
            vmem_limit_bytes=48 * 1024 * 1024,
        ),
        cost_estimate=pl.CostEstimate(flops=flops, transcendentals=0,
                                      bytes_accessed=bytes_accessed),
    )(*operands)
    return out[:M]


# -----------------------------------------------------------------------------
# Kernel 2: fused 3x3 conv + folded BN + ReLU.  Row-batched tap matmuls:
# per tap the kernel slices a (THo, Wo8, Cin) slab, flattens it to
# (THo*Wo8, Cin) and accumulates 9 MXU matmuls into one f32 accumulator,
# storing one lane-dense block per grid step.
# -----------------------------------------------------------------------------
def _conv3x3_kernel(x_ref, w_ref, b_ref, o_ref, *, stride, dilation, t_ho, wo8):
    hb = pl.program_id(2)
    oh0 = pl.multiple_of(hb * t_ho, t_ho)
    cinp = x_ref.shape[-1]
    tn = w_ref.shape[-1]

    acc = jnp.zeros((t_ho * wo8, tn), jnp.float32)
    for kh in range(3):
        for kw in range(3):
            off_h, ph_h = divmod(kh * dilation, stride)
            off_w, ph_w = divmod(kw * dilation, stride)
            slab = x_ref[ph_h * stride + ph_w, 0,
                         pl.ds(oh0 + off_h, t_ho), pl.ds(off_w, wo8), :]
            acc = acc + jnp.dot(slab.reshape(t_ho * wo8, cinp),
                                w_ref[kh * 3 + kw],
                                preferred_element_type=jnp.float32)
    y = jnp.maximum(acc + b_ref[...], 0.0)
    o_ref[...] = y.reshape(1, t_ho, wo8, tn).astype(o_ref.dtype)


def conv3x3_bn_relu(x_nhwc, weight, bn, *, stride, dilation):
    """3x3 conv (stride, dilation, padding=dilation) + folded BN + ReLU.

    Consumes a (possibly channel-padded) bf16 NHWC activation; returns a
    channel- and spatially-padded bf16 tensor of shape (N, Hop, Wo8, Coutp)
    plus the logical (Ho, Wo).
    """
    N, H, W, Cin_in = x_nhwc.shape
    Cout, Cin_w = weight.shape[0], weight.shape[1]
    s, d = stride, dilation
    Ho = (H - 1) // s + 1
    Wo = (W - 1) // s + 1
    Wo8 = _round_up(Wo, 8)                 # sublane-aligned output width

    Cinp = _round_up(Cin_in, 128)
    TN = min(256, _round_up(Cout, 128))
    Coutp = _round_up(Cout, TN)
    THo = max(1, min(16, Ho, max(1, 512 // Wo8)))   # M = THo*Wo8 fills the MXU
    Hop = _round_up(Ho, THo)
    off_max = (2 * d) // s

    # Channel pad + spatial pad by `dilation`, then split into stride phases so
    # every tap is a unit-offset window in VMEM (no 9x im2col tensor in HBM).
    xp = jnp.pad(x_nhwc.astype(jnp.bfloat16),
                 ((0, 0), (d, d), (d, d), (0, Cinp - Cin_in)))
    Hp, Wp = H + 2 * d, W + 2 * d
    Hq = max(-(-Hp // s), Hop + off_max)
    Wq = max(-(-Wp // s), Wo8 + off_max)
    xp = jnp.pad(xp, ((0, 0), (0, Hq * s - Hp), (0, Wq * s - Wp), (0, 0)))
    phases = [xp[:, a::s, b::s, :] for a in range(s) for b in range(s)]
    px = jnp.stack(phases, axis=0)                 # (s*s, N, Hq, Wq, Cinp)

    # Weights (Cout, Cin, 3, 3) -> (tap, Cinp, Coutp) with BN scale folded in.
    scale, bias = _fold_bn(*bn)
    wt = jnp.transpose(weight, (2, 3, 1, 0)).reshape(9, Cin_w, Cout)
    wt = wt * scale[None, None, :]
    wt = jnp.pad(wt.astype(jnp.bfloat16),
                 ((0, 0), (0, Cinp - Cin_w), (0, Coutp - Cout)))
    b_p = jnp.pad(bias.reshape(1, -1), ((0, 0), (0, Coutp - Cout)))

    grid = (N, Coutp // TN, Hop // THo)            # hb innermost: weights stay put
    kernel = functools.partial(_conv3x3_kernel, stride=s, dilation=d,
                               t_ho=THo, wo8=Wo8)
    out = pl.pallas_call(
        kernel,
        out_shape=jax.ShapeDtypeStruct((N, Hop, Wo8, Coutp), jnp.bfloat16),
        grid_spec=pltpu.PrefetchScalarGridSpec(
            num_scalar_prefetch=0,
            grid=grid,
            in_specs=[
                # TODO(synk): H-block the phase tensor with an off_max-row halo
                # (manual DMA / Element indexing) to bound VMEM for very large
                # feature maps on v7x's 64 MiB; DMA'd once per image here.
                pl.BlockSpec((s * s, 1, Hq, Wq, Cinp),
                             lambda n, j, hb: (0, n, 0, 0, 0)),
                pl.BlockSpec((9, Cinp, TN), lambda n, j, hb: (0, 0, j)),
                pl.BlockSpec((1, TN), lambda n, j, hb: (0, j)),
            ],
            out_specs=pl.BlockSpec((1, THo, Wo8, TN),
                                   lambda n, j, hb: (n, hb, 0, j)),
        ),
        compiler_params=pltpu.CompilerParams(
            dimension_semantics=("parallel", "parallel", "parallel"),
            vmem_limit_bytes=48 * 1024 * 1024,
        ),
        cost_estimate=pl.CostEstimate(
            flops=2 * N * Hop * Wo8 * 9 * Cinp * Coutp,
            transcendentals=0,
            bytes_accessed=px.size * 2 + wt.size * 2 + N * Hop * Wo8 * Coutp * 2,
        ),
    )(px, wt, b_p)
    return out, Ho, Wo


# -----------------------------------------------------------------------------
# bottleNeckPSP forward
# -----------------------------------------------------------------------------
@functools.partial(jax.jit, static_argnames=("stride", "dilation"))
def bottleneck_psp(x_nchw, params, *, stride, dilation):
    N, Cin, H, W = x_nchw.shape
    cout = params["w3"].shape[0]
    s = stride

    # NCHW -> NHWC, bf16, channel-padded once; every downstream kernel consumes
    # and produces channel-padded bf16 so there are no standalone pad passes.
    Cin_p = _round_up(Cin, 128)
    x = jnp.transpose(x_nchw, (0, 2, 3, 1))
    x_pad = jnp.pad(x.astype(jnp.bfloat16),
                    ((0, 0), (0, 0), (0, 0), (0, Cin_p - Cin)))

    # cbr_1: 1x1 conv + BN + ReLU (BN scale folded into the weight columns).
    s1, b1 = _fold_bn(*params["bn1"])
    w1 = params["w1"][:, :, 0, 0].T * s1[None, :]          # (Cin, mid)
    h1 = matmul_bias([(x_pad.reshape(N * H * W, Cin_p), w1)], b1,
                     relu=True, out_dtype=jnp.bfloat16)
    h1 = h1.reshape(N, H, W, h1.shape[1])

    # cbr_2: 3x3 conv + BN + ReLU.
    h2, Ho, Wo = conv3x3_bn_relu(h1, params["w2"], params["bn2"],
                                 stride=stride, dilation=dilation)
    _, Hop, Wo8, Cmid2 = h2.shape

    # Residual input: strided subsample of the (already padded) input.
    # TODO(synk): fold the stride subsample into the matmul's DMA (strided
    # pl.ds / index_map) instead of a host-side strided slice.
    x_res = x_pad[:, ::s, ::s, :] if s > 1 else x_pad
    x_res = jnp.pad(x_res, ((0, 0), (0, Hop - Ho), (0, Wo8 - Wo), (0, 0)))

    # cb_3 + cb_residual + add + ReLU fused in one dual-operand matmul:
    #   relu(h2 @ (W3^T*s3) + x_res @ (Wres^T*s_res) + (b3 + b_res))
    s3, b3 = _fold_bn(*params["bn3"])
    sr, br = _fold_bn(*params["bn_res"])
    w3 = params["w3"][:, :, 0, 0].T * s3[None, :]          # (mid, cout)
    wr = params["w_res"][:, :, 0, 0].T * sr[None, :]       # (Cin, cout)
    Mf = N * Hop * Wo8
    out = matmul_bias([(h2.reshape(Mf, Cmid2), w3),
                       (x_res.reshape(Mf, Cin_p), wr)],
                      b3 + br, relu=True, out_dtype=jnp.float32)
    out = out.reshape(N, Hop, Wo8, -1)[:, :Ho, :Wo, :cout]
    return jnp.transpose(out, (0, 3, 1, 2))                # NHWC -> NCHW


# -----------------------------------------------------------------------------
# Pure-JAX reference (for a correctness sanity check)
# -----------------------------------------------------------------------------
def _ref_conv_bn(x, w, bn, stride, padding, dilation, relu):
    y = jax.lax.conv_general_dilated(
        x, w, window_strides=(stride, stride),
        padding=((padding, padding), (padding, padding)),
        rhs_dilation=(dilation, dilation),
        dimension_numbers=("NCHW", "OIHW", "NCHW"))
    gamma, beta, mean, var = bn
    scale = gamma / jnp.sqrt(var + 1e-5)
    y = y * scale[None, :, None, None] + (beta - mean * scale)[None, :, None, None]
    return jnp.maximum(y, 0.0) if relu else y


def bottleneck_psp_ref(x, p, *, stride, dilation):
    h = _ref_conv_bn(x, p["w1"], p["bn1"], 1, 0, 1, True)
    h = _ref_conv_bn(h, p["w2"], p["bn2"], stride, dilation, dilation, True)
    conv = _ref_conv_bn(h, p["w3"], p["bn3"], 1, 0, 1, False)
    res = _ref_conv_bn(x, p["w_res"], p["bn_res"], stride, 0, 1, False)
    return jnp.maximum(conv + res, 0.0)


# -----------------------------------------------------------------------------
def make_params(key, in_ch, mid_ch, out_ch):
    ks = jax.random.split(key, 12)

    def bn(k, c):
        k1, k2, k3 = jax.random.split(k, 3)
        gamma = 1.0 + 0.1 * jax.random.normal(k1, (c,), jnp.float32)
        beta = 0.1 * jax.random.normal(k2, (c,), jnp.float32)
        mean = 0.05 * jax.random.normal(k3, (c,), jnp.float32)
        var = jnp.ones((c,), jnp.float32)
        return (gamma, beta, mean, var)

    return {
        "w1": 0.1 * jax.random.normal(ks[0], (mid_ch, in_ch, 1, 1), jnp.float32),
        "bn1": bn(ks[1], mid_ch),
        "w2": 0.1 * jax.random.normal(ks[2], (mid_ch, mid_ch, 3, 3), jnp.float32),
        "bn2": bn(ks[3], mid_ch),
        "w3": 0.1 * jax.random.normal(ks[4], (out_ch, mid_ch, 1, 1), jnp.float32),
        "bn3": bn(ks[5], out_ch),
        "w_res": 0.1 * jax.random.normal(ks[6], (out_ch, in_ch, 1, 1), jnp.float32),
        "bn_res": bn(ks[7], out_ch),
    }


if __name__ == "__main__":
    key = jax.random.PRNGKey(0)
    kx, kp = jax.random.split(key)

    N, IN_CH, MID_CH, OUT_CH = 2, 4, 4, 8
    H = W = 16
    STRIDE, DILATION = 2, 1

    x = jax.random.normal(kx, (N, IN_CH, H, W), jnp.float32)   # NCHW, like PyTorch
    params = make_params(kp, IN_CH, MID_CH, OUT_CH)

    out = bottleneck_psp(x, params, stride=STRIDE, dilation=DILATION)
    out = jax.block_until_ready(out)

    ref = bottleneck_psp_ref(x, params, stride=STRIDE, dilation=DILATION)
    assert out.shape == ref.shape == (N, OUT_CH, H // STRIDE, W // STRIDE)
    assert jnp.allclose(out, ref, atol=3e-2, rtol=3e-2), \
        float(jnp.max(jnp.abs(out - ref)))

    print("KERNEL_OK")
</pallas_src>

<mosaic_0001>
module attributes {stable_mosaic.version = 11 : i64} {
  func.func @_matmul_bias_kernel(%arg0: i32, %arg1: i32, %arg2: i32, %arg3: memref<512x128xbf16, #tpu.memory_space<vmem>>, %arg4: memref<128x128xbf16, #tpu.memory_space<vmem>>, %arg5: memref<1x128xf32, #tpu.memory_space<vmem>>, %arg6: memref<512x128xbf16, #tpu.memory_space<vmem>>, %arg7: memref<512x128xf32, #tpu.memory_space<vmem>>) attributes {dimension_semantics = [#tpu.dimension_semantics<parallel>, #tpu.dimension_semantics<parallel>, #tpu.dimension_semantics<arbitrary>], iteration_bounds = array<i64: 1, 1, 1>, scalar_prefetch = 0 : i64, scratch_operands = 1 : i64, tpu.core_type = #tpu.core_type<tc>, window_params = [{transform_indices = @transform_0, window_bounds = array<i64: 512, 128>}, {transform_indices = @transform_1, window_bounds = array<i64: 128, 128>}, {transform_indices = @transform_2, window_bounds = array<i64: 1, 128>}, {transform_indices = @transform_3, window_bounds = array<i64: 512, 128>}]} {
    %c0_i32 = arith.constant 0 : i32
    %0 = arith.cmpi eq, %arg2, %c0_i32 : i32
    %1 = arith.extui %0 : i1 to i32
    %c0_i32_0 = arith.constant 0 : i32
    %2 = arith.cmpi ne, %1, %c0_i32_0 : i32
    scf.if %2 {
      %cst_10 = arith.constant 0.000000e+00 : f32
      %12 = vector.broadcast %cst_10 : f32 to vector<512x128xf32>
      %c0_11 = arith.constant 0 : index
      %c0_12 = arith.constant 0 : index
      %13 = vector.load %arg7[%c0_11, %c0_12] : memref<512x128xf32, #tpu.memory_space<vmem>>, vector<512x128xf32>
      tpu.vector_store %arg7[%c0_11, %c0_12], %12 {strides = array<i32>} : memref<512x128xf32, #tpu.memory_space<vmem>>, vector<512x128xf32>,
    } else {
    }
    %c0 = arith.constant 0 : index
    %c0_1 = arith.constant 0 : index
    %3 = vector.load %arg7[%c0, %c0_1] : memref<512x128xf32, #tpu.memory_space<vmem>>, vector<512x128xf32>
    %c0_2 = arith.constant 0 : index
    %c0_3 = arith.constant 0 : index
    %4 = vector.load %arg3[%c0_2, %c0_3] : memref<512x128xbf16, #tpu.memory_space<vmem>>, vector<512x128xbf16>
    %c0_4 = arith.constant 0 : index
    %c0_5 = arith.constant 0 : index
    %5 = vector.load %arg4[%c0_4, %c0_5] : memref<128x128xbf16, #tpu.memory_space<vmem>>, vector<128x128xbf16>
    %cst = arith.constant dense<0.000000e+00> : vector<512x128xf32>
    %6 = tpu.matmul %4, %5, %cst {dimension_numbers = #tpu.dot_dimension_numbers<[1], [0], [0], [1], [0, 0, 1, 1], [], []>} : vector<512x128xbf16>, vector<128x128xbf16>, vector<512x128xf32> -> vector<512x128xf32>
    %7 = arith.addf %3, %6 : vector<512x128xf32>
    %c0_6 = arith.constant 0 : index
    %c0_7 = arith.constant 0 : index
    %8 = vector.load %arg7[%c0_6, %c0_7] : memref<512x128xf32, #tpu.memory_space<vmem>>, vector<512x128xf32>
    tpu.vector_store %arg7[%c0_6, %c0_7], %7 {strides = array<i32>} : memref<512x128xf32, #tpu.memory_space<vmem>>, vector<512x128xf32>,
    %c0_i32_8 = arith.constant 0 : i32
    %9 = arith.cmpi eq, %arg2, %c0_i32_8 : i32
    %10 = arith.extui %9 : i1 to i32
    %c0_i32_9 = arith.constant 0 : i32
    %11 = arith.cmpi ne, %10, %c0_i32_9 : i32
    scf.if %11 {
      %c0_10 = arith.constant 0 : index
      %c0_11 = arith.constant 0 : index
      %12 = vector.load %arg7[%c0_10, %c0_11] : memref<512x128xf32, #tpu.memory_space<vmem>>, vector<512x128xf32>
      %c0_12 = arith.constant 0 : index
      %c0_13 = arith.constant 0 : index
      %13 = vector.load %arg5[%c0_12, %c0_13] : memref<1x128xf32, #tpu.memory_space<vmem>>, vector<1x128xf32>
      %14 = vector.broadcast %13 : vector<1x128xf32> to vector<512x128xf32>
      %15 = arith.addf %12, %14 : vector<512x128xf32>
      %cst_14 = arith.constant 0.000000e+00 : f32
      %16 = vector.broadcast %cst_14 : f32 to vector<512x128xf32>
      %17 = arith.maximumf %15, %16 : vector<512x128xf32>
      %18 = arith.truncf %17 : vector<512x128xf32> to vector<512x128xbf16>
      %c0_15 = arith.constant 0 : index
      %c0_16 = arith.constant 0 : index
      %19 = vector.load %arg6[%c0_15, %c0_16] : memref<512x128xbf16, #tpu.memory_space<vmem>>, vector<512x128xbf16>
      tpu.vector_store %arg6[%c0_15, %c0_16], %18 {strides = array<i32>} : memref<512x128xbf16, #tpu.memory_space<vmem>>, vector<512x128xbf16>,
    } else {
    }
    return
  }
  func.func @transform_0(%arg0: i32, %arg1: i32, %arg2: i32) -> (i32, i32) {
    %c0_i32 = arith.constant 0 : i32
    return %arg0, %arg2 : i32, i32
  }
  func.func @transform_1(%arg0: i32, %arg1: i32, %arg2: i32) -> (i32, i32) {
    %c0_i32 = arith.constant 0 : i32
    return %arg2, %arg1 : i32, i32
  }
  func.func @transform_2(%arg0: i32, %arg1: i32, %arg2: i32) -> (i32, i32) {
    %c0_i32 = arith.constant 0 : i32
    %c0_i32_0 = arith.constant 0 : i32
    return %c0_i32, %arg1 : i32, i32
  }
  func.func @transform_3(%arg0: i32, %arg1: i32, %arg2: i32) -> (i32, i32) {
    %c0_i32 = arith.constant 0 : i32
    return %arg0, %arg1 : i32, i32
  }
}

module attributes {stable_mosaic.version = 11 : i64} {
  func.func @_conv3x3_kernel(%arg0: i32, %arg1: i32, %arg2: i32, %arg3: memref<4x1x9x9x128xbf16, #tpu.memory_space<vmem>>, %arg4: memref<9x128x128xbf16, #tpu.memory_space<vmem>>, %arg5: memref<1x128xf32, #tpu.memory_space<vmem>>, %arg6: memref<1x8x8x128xbf16, #tpu.memory_space<vmem>>) attributes {dimension_semantics = [#tpu.dimension_semantics<parallel>, #tpu.dimension_semantics<parallel>, #tpu.dimension_semantics<parallel>], iteration_bounds = array<i64: 2, 1, 1>, scalar_prefetch = 0 : i64, scratch_operands = 0 : i64, tpu.core_type = #tpu.core_type<tc>, window_params = [{transform_indices = @transform_0, window_bounds = array<i64: 4, 1, 9, 9, 128>}, {transform_indices = @transform_1, window_bounds = array<i64: 9, 128, 128>}, {transform_indices = @transform_2, window_bounds = array<i64: 1, 128>}, {transform_indices = @transform_3, window_bounds = array<i64: 1, 8, 8, 128>}]} {
    %c8_i32 = arith.constant 8 : i32
    %0 = arith.muli %arg2, %c8_i32 : i32
    %1 = tpu.assume_multiple %0, 8 : i32
    %cst = arith.constant 0.000000e+00 : f32
    %2 = vector.broadcast %cst : f32 to vector<64x128xf32>
    %c0_i32 = arith.constant 0 : i32
    %3 = arith.addi %1, %c0_i32 : i32
    %c0 = arith.constant 0 : index
    %c0_0 = arith.constant 0 : index
    %4 = arith.index_cast %3 : i32 to index
    %c0_1 = arith.constant 0 : index
    %c0_2 = arith.constant 0 : index
    %5 = vector.load %arg3[%c0, %c0_0, %4, %c0_1, %c0_2] : memref<4x1x9x9x128xbf16, #tpu.memory_space<vmem>>, vector<1x1x8x8x128xbf16>
    %6 = vector.shape_cast %5 : vector<1x1x8x8x128xbf16> to vector<8x8x128xbf16>
    %7 = vector.shape_cast %6 : vector<8x8x128xbf16> to vector<64x128xbf16>
    %c0_3 = arith.constant 0 : index
    %c0_4 = arith.constant 0 : index
    %c0_5 = arith.constant 0 : index
    %8 = vector.load %arg4[%c0_3, %c0_4, %c0_5] : memref<9x128x128xbf16, #tpu.memory_space<vmem>>, vector<1x128x128xbf16>
    %9 = vector.shape_cast %8 : vector<1x128x128xbf16> to vector<128x128xbf16>
    %cst_6 = arith.constant dense<0.000000e+00> : vector<64x128xf32>
    %10 = tpu.matmul %7, %9, %cst_6 {dimension_numbers = #tpu.dot_dimension_numbers<[1], [0], [0], [1], [0, 0, 1, 1], [], []>} : vector<64x128xbf16>, vector<128x128xbf16>, vector<64x128xf32> -> vector<64x128xf32>
    %11 = arith.addf %2, %10 : vector<64x128xf32>
    %c0_i32_7 = arith.constant 0 : i32
    %12 = arith.addi %1, %c0_i32_7 : i32
    %c1 = arith.constant 1 : index
    %c0_8 = arith.constant 0 : index
    %13 = arith.index_cast %12 : i32 to index
    %c0_9 = arith.constant 0 : index
    %c0_10 = arith.constant 0 : index
    %14 = vector.load %arg3[%c1, %c0_8, %13, %c0_9, %c0_10] : memref<4x1x9x9x128xbf16, #tpu.memory_space<vmem>>, vector<1x1x8x8x128xbf16>
    %15 = vector.shape_cast %14 : vector<1x1x8x8x128xbf16> to vector<8x8x128xbf16>
    %16 = vector.shape_cast %15 : vector<8x8x128xbf16> to vector<64x128xbf16>
    %c1_11 = arith.constant 1 : index
    %c0_12 = arith.constant 0 : index
    %c0_13 = arith.constant 0 : index
    %17 = vector.load %arg4[%c1_11, %c0_12, %c0_13] : memref<9x128x128xbf16, #tpu.memory_space<vmem>>, vector<1x128x128xbf16>
    %18 = vector.shape_cast %17 : vector<1x128x128xbf16> to vector<128x128xbf16>
    %cst_14 = arith.constant dense<0.000000e+00> : vector<64x128xf32>
    %19 = tpu.matmul %16, %18, %cst_14 {dimension_numbers = #tpu.dot_dimension_numbers<[1], [0], [0], [1], [0, 0, 1, 1], [], []>} : vector<64x128xbf16>, vector<128x128xbf16>, vector<64x128xf32> -> vector<64x128xf32>
    %20 = arith.addf %11, %19 : vector<64x128xf32>
    %c0_i32_15 = arith.constant 0 : i32
    %21 = arith.addi %1, %c0_i32_15 : i32
    %c0_16 = arith.constant 0 : index
    %c0_17 = arith.constant 0 : index
    %22 = arith.index_cast %21 : i32 to index
    %c1_18 = arith.constant 1 : index
    %c0_19 = arith.constant 0 : index
    %23 = vector.load %arg3[%c0_16, %c0_17, %22, %c1_18, %c0_19] : memref<4x1x9x9x128xbf16, #tpu.memory_space<vmem>>, vector<1x1x8x8x128xbf16>
    %24 = vector.shape_cast %23 : vector<1x1x8x8x128xbf16> to vector<8x8x128xbf16>
    %25 = vector.shape_cast %24 : vector<8x8x128xbf16> to vector<64x128xbf16>
    %c2 = arith.constant 2 : index
    %c0_20 = arith.constant 0 : index
    %c0_21 = arith.constant 0 : index
    %26 = vector.load %arg4[%c2, %c0_20, %c0_21] : memref<9x128x128xbf16, #tpu.memory_space<vmem>>, vector<1x128x128xbf16>
    %27 = vector.shape_cast %26 : vector<1x128x128xbf16> to vector<128x128xbf16>
    %cst_22 = arith.constant dense<0.000000e+00> : vector<64x128xf32>
    %28 = tpu.matmul %25, %27, %cst_22 {dimension_numbers = #tpu.dot_dimension_numbers<[1], [0], [0], [1], [0, 0, 1, 1], [], []>} : vector<64x128xbf16>, vector<128x128xbf16>, vector<64x128xf32> -> vector<64x128xf32>
    %29 = arith.addf %20, %28 : vector<64x128xf32>
    %c0_i32_23 = arith.constant 0 : i32
    %30 = arith.addi %1, %c0_i32_23 : i32
    %c2_24 = arith.constant 2 : index
    %c0_25 = arith.constant 0 : index
    %31 = arith.index_cast %30 : i32 to index
    %c0_26 = arith.constant 0 : index
    %c0_27 = arith.constant 0 : index
    %32 = vector.load %arg3[%c2_24, %c0_25, %31, %c0_26, %c0_27] : memref<4x1x9x9x128xbf16, #tpu.memory_space<vmem>>, vector<1x1x8x8x128xbf16>
    %33 = vector.shape_cast %32 : vector<1x1x8x8x128xbf16> to vector<8x8x128xbf16>
    %34 = vector.shape_cast %33 : vector<8x8x128xbf16> to vector<64x128xbf16>
    %c3 = arith.constant 3 : index
    %c0_28 = arith.constant 0 : index
    %c0_29 = arith.constant 0 : index
    %35 = vector.load %arg4[%c3, %c0_28, %c0_29] : memref<9x128x128xbf16, #tpu.memory_space<vmem>>, vector<1x128x128xbf16>
    %36 = vector.shape_cast %35 : vector<1x128x128xbf16> to vector<128x128xbf16>
    %cst_30 = arith.constant dense<0.000000e+00> : vector<64x128xf32>
    %37 = tpu.matmul %34, %36, %cst_30 {dimension_numbers = #tpu.dot_dimension_numbers<[1], [0], [0], [1], [0, 0, 1, 1], [], []>} : vector<64x128xbf16>, vector<128x128xbf16>, vector<64x128xf32> -> vector<64x128xf32>
    %38 = arith.addf %29, %37 : vector<64x128xf32>
    %c0_i32_31 = arith.constant 0 : i32
    %39 = arith.addi %1, %c0_i32_31 : i32
    %c3_32 = arith.constant 3 : index
    %c0_33 = arith.constant 0 : index
    %40 = arith.index_cast %39 : i32 to index
    %c0_34 = arith.constant 0 : index
    %c0_35 = arith.constant 0 : index
    %41 = vector.load %arg3[%c3_32, %c0_33, %40, %c0_34, %c0_35] : memref<4x1x9x9x128xbf16, #tpu.memory_space<vmem>>, vector<1x1x8x8x128xbf16>
    %42 = vector.shape_cast %41 : vector<1x1x8x8x128xbf16> to vector<8x8x128xbf16>
    %43 = vector.shape_cast %42 : vector<8x8x128xbf16> to vector<64x128xbf16>
    %c4 = arith.constant 4 : index
    %c0_36 = arith.constant 0 : index
    %c0_37 = arith.constant 0 : index
    %44 = vector.load %arg4[%c4, %c0_36, %c0_37] : memref<9x128x128xbf16, #tpu.memory_space<vmem>>, vector<1x128x128xbf16>
    %45 = vector.shape_cast %44 : vector<1x128x128xbf16> to vector<128x128xbf16>
    %cst_38 = arith.constant dense<0.000000e+00> : vector<64x128xf32>
    %46 = tpu.matmul %43, %45, %cst_38 {dimension_numbers = #tpu.dot_dimension_numbers<[1], [0], [0], [1], [0, 0, 1, 1], [], []>} : vector<64x128xbf16>, vector<128x128xbf16>, vector<64x128xf32> -> vector<64x128xf32>
    %47 = arith.addf %38, %46 : vector<64x128xf32>
    %c0_i32_39 = arith.constant 0 : i32
    %48 = arith.addi %1, %c0_i32_39 : i32
    %c2_40 = arith.constant 2 : index
    %c0_41 = arith.constant 0 : index
    %49 = arith.index_cast %48 : i32 to index
    %c1_42 = arith.constant 1 : index
    %c0_43 = arith.constant 0 : index
    %50 = vector.load %arg3[%c2_40, %c0_41, %49, %c1_42, %c0_43] : memref<4x1x9x9x128xbf16, #tpu.memory_space<vmem>>, vector<1x1x8x8x128xbf16>
    %51 = vector.shape_cast %50 : vector<1x1x8x8x128xbf16> to vector<8x8x128xbf16>
    %52 = vector.shape_cast %51 : vector<8x8x128xbf16> to vector<64x128xbf16>
    %c5 = arith.constant 5 : index
    %c0_44 = arith.constant 0 : index
    %c0_45 = arith.constant 0 : index
    %53 = vector.load %arg4[%c5, %c0_44, %c0_45] : memref<9x128x128xbf16, #tpu.memory_space<vmem>>, vector<1x128x128xbf16>
    %54 = vector.shape_cast %53 : vector<1x128x128xbf16> to vector<128x128xbf16>
    %cst_46 = arith.constant dense<0.000000e+00> : vector<64x128xf32>
    %55 = tpu.matmul %52, %54, %cst_46 {dimension_numbers = #tpu.dot_dimension_numbers<[1], [0], [0], [1], [0, 0, 1, 1], [], []>} : vector<64x128xbf16>, vector<128x128xbf16>, vector<64x128xf32> -> vector<64x128xf32>
    %56 = arith.addf %47, %55 : vector<64x128xf32>
    %c1_i32 = arith.constant 1 : i32
    %57 = arith.addi %1, %c1_i32 : i32
    %c0_47 = arith.constant 0 : index
    %c0_48 = arith.constant 0 : index
    %58 = arith.index_cast %57 : i32 to index
    %c0_49 = arith.constant 0 : index
    %c0_50 = arith.constant 0 : index
    %59 = vector.load %arg3[%c0_47, %c0_48, %58, %c0_49, %c0_50] : memref<4x1x9x9x128xbf16, #tpu.memory_space<vmem>>, vector<1x1x8x8x128xbf16>
    %60 = vector.shape_cast %59 : vector<1x1x8x8x128xbf16> to vector<8x8x128xbf16>
    %61 = vector.shape_cast %60 : vector<8x8x128xbf16> to vector<64x128xbf16>
    %c6 = arith.constant 6 : index
    %c0_51 = arith.constant 0 : index
    %c0_52 = arith.constant 0 : index
    %62 = vector.load %arg4[%c6, %c0_51, %c0_52] : memref<9x128x128xbf16, #tpu.memory_space<vmem>>, vector<1x128x128xbf16>
    %63 = vector.shape_cast %62 : vector<1x128x128xbf16> to vector<128x128xbf16>
    %cst_53 = arith.constant dense<0.000000e+00> : vector<64x128xf32>
    %64 = tpu.matmul %61, %63, %cst_53 {dimension_numbers = #tpu.dot_dimension_numbers<[1], [0], [0], [1], [0, 0, 1, 1], [], []>} : vector<64x128xbf16>, vector<128x128xbf16>, vector<64x128xf32> -> vector<64x128xf32>
    %65 = arith.addf %56, %64 : vector<64x128xf32>
    %c1_i32_54 = arith.constant 1 : i32
    %66 = arith.addi %1, %c1_i32_54 : i32
    %c1_55 = arith.constant 1 : index
    %c0_56 = arith.constant 0 : index
    %67 = arith.index_cast %66 : i32 to index
    %c0_57 = arith.constant 0 : index
    %c0_58 = arith.constant 0 : index
    %68 = vector.load %arg3[%c1_55, %c0_56, %67, %c0_57, %c0_58] : memref<4x1x9x9x128xbf16, #tpu.memory_space<vmem>>, vector<1x1x8x8x128xbf16>
    %69 = vector.shape_cast %68 : vector<1x1x8x8x128xbf16> to vector<8x8x128xbf16>
    %70 = vector.shape_cast %69 : vector<8x8x128xbf16> to vector<64x128xbf16>
    %c7 = arith.constant 7 : index
    %c0_59 = arith.constant 0 : index
    %c0_60 = arith.constant 0 : index
    %71 = vector.load %arg4[%c7, %c0_59, %c0_60] : memref<9x128x128xbf16, #tpu.memory_space<vmem>>, vector<1x128x128xbf16>
    %72 = vector.shape_cast %71 : vector<1x128x128xbf16> to vector<128x128xbf16>
    %cst_61 = arith.constant dense<0.000000e+00> : vector<64x128xf32>
    %73 = tpu.matmul %70, %72, %cst_61 {dimension_numbers = #tpu.dot_dimension_numbers<[1], [0], [0], [1], [0, 0, 1, 1], [], []>} : vector<64x128xbf16>, vector<128x128xbf16>, vector<64x128xf32> -> vector<64x128xf32>
    %74 = arith.addf %65, %73 : vector<64x128xf32>
    %c1_i32_62 = arith.constant 1 : i32
    %75 = arith.addi %1, %c1_i32_62 : i32
    %c0_63 = arith.constant 0 : index
    %c0_64 = arith.constant 0 : index
    %76 = arith.index_cast %75 : i32 to index
    %c1_65 = arith.constant 1 : index
    %c0_66 = arith.constant 0 : index
    %77 = vector.load %arg3[%c0_63, %c0_64, %76, %c1_65, %c0_66] : memref<4x1x9x9x128xbf16, #tpu.memory_space<vmem>>, vector<1x1x8x8x128xbf16>
    %78 = vector.shape_cast %77 : vector<1x1x8x8x128xbf16> to vector<8x8x128xbf16>
    %79 = vector.shape_cast %78 : vector<8x8x128xbf16> to vector<64x128xbf16>
    %c8 = arith.constant 8 : index
    %c0_67 = arith.constant 0 : index
    %c0_68 = arith.constant 0 : index
    %80 = vector.load %arg4[%c8, %c0_67, %c0_68] : memref<9x128x128xbf16, #tpu.memory_space<vmem>>, vector<1x128x128xbf16>
    %81 = vector.shape_cast %80 : vector<1x128x128xbf16> to vector<128x128xbf16>
    %cst_69 = arith.constant dense<0.000000e+00> : vector<64x128xf32>
    %82 = tpu.matmul %79, %81, %cst_69 {dimension_numbers = #tpu.dot_dimension_numbers<[1], [0], [0], [1], [0, 0, 1, 1], [], []>} : vector<64x128xbf16>, vector<128x128xbf16>, vector<64x128xf32> -> vector<64x128xf32>
    %83 = arith.addf %74, %82 : vector<64x128xf32>
    %c0_70 = arith.constant 0 : index
    %c0_71 = arith.constant 0 : index
    %84 = vector.load %arg5[%c0_70, %c0_71] : memref<1x128xf32, #tpu.memory_space<vmem>>, vector<1x128xf32>
    %85 = vector.broadcast %84 : vector<1x128xf32> to vector<64x128xf32>
    %86 = arith.addf %83, %85 : vector<64x128xf32>
    %cst_72 = arith.constant 0.000000e+00 : f32
    %87 = vector.broadcast %cst_72 : f32 to vector<64x128xf32>
    %88 = arith.maximumf %86, %87 : vector<64x128xf32>
    %89 = vector.shape_cast %88 : vector<64x128xf32> to vector<1x8x8x128xf32>
    %90 = arith.truncf %89 : vector<1x8x8x128xf32> to vector<1x8x8x128xbf16>
    %c0_73 = arith.constant 0 : index
    %c0_74 = arith.constant 0 : index
    %c0_75 = arith.constant 0 : index
    %c0_76 = arith.constant 0 : index
    %91 = vector.load %arg6[%c0_73, %c0_74, %c0_75, %c0_76] : memref<1x8x8x128xbf16, #tpu.memory_space<vmem>>, vector<1x8x8x128xbf16>
    tpu.vector_store %arg6[%c0_73, %c0_74, %c0_75, %c0_76], %90 {strides = array<i32>} : memref<1x8x8x128xbf16, #tpu.memory_space<vmem>>, vector<1x8x8x128xbf16>,
    return
  }
  func.func @transform_0(%arg0: i32, %arg1: i32, %arg2: i32) -> (i32, i32, i32, i32, i32) {
    %c0_i32 = arith.constant 0 : i32
    %c0_i32_0 = arith.constant 0 : i32
    %c0_i32_1 = arith.constant 0 : i32
    %c0_i32_2 = arith.constant 0 : i32
    %c0_i32_3 = arith.constant 0 : i32
    return %c0_i32, %arg0, %c0_i32_0, %c0_i32_1, %c0_i32_2 : i32, i32, i32, i32, i32
  }
  func.func @transform_1(%arg0: i32, %arg1: i32, %arg2: i32) -> (i32, i32, i32) {
    %c0_i32 = arith.constant 0 : i32
    %c0_i32_0 = arith.constant 0 : i32
    %c0_i32_1 = arith.constant 0 : i32
    return %c0_i32, %c0_i32_0, %arg1 : i32, i32, i32
  }
  func.func @transform_2(%arg0: i32, %arg1: i32, %arg2: i32) -> (i32, i32) {
    %c0_i32 = arith.constant 0 : i32
    %c0_i32_0 = arith.constant 0 : i32
    return %c0_i32, %arg1 : i32, i32
  }
  func.func @transform_3(%arg0: i32, %arg1: i32, %arg2: i32) -> (i32, i32, i32, i32) {
    %c0_i32 = arith.constant 0 : i32
    %c0_i32_0 = arith.constant 0 : i32
    return %arg0, %arg2, %c0_i32, %arg1 : i32, i32, i32, i32
  }
}

module attributes {stable_mosaic.version = 11 : i64} {
  func.func @_matmul_bias_kernel(%arg0: i32, %arg1: i32, %arg2: i32, %arg3: memref<128x128xbf16, #tpu.memory_space<vmem>>, %arg4: memref<128x128xbf16, #tpu.memory_space<vmem>>, %arg5: memref<128x128xbf16, #tpu.memory_space<vmem>>, %arg6: memref<128x128xbf16, #tpu.memory_space<vmem>>, %arg7: memref<1x128xf32, #tpu.memory_space<vmem>>, %arg8: memref<128x128xf32, #tpu.memory_space<vmem>>, %arg9: memref<128x128xf32, #tpu.memory_space<vmem>>) attributes {dimension_semantics = [#tpu.dimension_semantics<parallel>, #tpu.dimension_semantics<parallel>, #tpu.dimension_semantics<arbitrary>], iteration_bounds = array<i64: 1, 1, 1>, scalar_prefetch = 0 : i64, scratch_operands = 1 : i64, tpu.core_type = #tpu.core_type<tc>, window_params = [{transform_indices = @transform_0, window_bounds = array<i64: 128, 128>}, {transform_indices = @transform_1, window_bounds = array<i64: 128, 128>}, {transform_indices = @transform_2, window_bounds = array<i64: 128, 128>}, {transform_indices = @transform_3, window_bounds = array<i64: 128, 128>}, {transform_indices = @transform_4, window_bounds = array<i64: 1, 128>}, {transform_indices = @transform_5, window_bounds = array<i64: 128, 128>}]} {
    %c0_i32 = arith.constant 0 : i32
    %0 = arith.cmpi eq, %arg2, %c0_i32 : i32
    %1 = arith.extui %0 : i1 to i32
    %c0_i32_0 = arith.constant 0 : i32
    %2 = arith.cmpi ne, %1, %c0_i32_0 : i32
    scf.if %2 {
      %cst_19 = arith.constant 0.000000e+00 : f32
      %18 = vector.broadcast %cst_19 : f32 to vector<128x128xf32>
      %c0_20 = arith.constant 0 : index
      %c0_21 = arith.constant 0 : index
      %19 = vector.load %arg9[%c0_20, %c0_21] : memref<128x128xf32, #tpu.memory_space<vmem>>, vector<128x128xf32>
      tpu.vector_store %arg9[%c0_20, %c0_21], %18 {strides = array<i32>} : memref<128x128xf32, #tpu.memory_space<vmem>>, vector<128x128xf32>,
    } else {
    }
    %c0 = arith.constant 0 : index
    %c0_1 = arith.constant 0 : index
    %3 = vector.load %arg9[%c0, %c0_1] : memref<128x128xf32, #tpu.memory_space<vmem>>, vector<128x128xf32>
    %c0_2 = arith.constant 0 : index
    %c0_3 = arith.constant 0 : index
    %4 = vector.load %arg3[%c0_2, %c0_3] : memref<128x128xbf16, #tpu.memory_space<vmem>>, vector<128x128xbf16>
    %c0_4 = arith.constant 0 : index
    %c0_5 = arith.constant 0 : index
    %5 = vector.load %arg4[%c0_4, %c0_5] : memref<128x128xbf16, #tpu.memory_space<vmem>>, vector<128x128xbf16>
    %cst = arith.constant dense<0.000000e+00> : vector<128x128xf32>
    %6 = tpu.matmul %4, %5, %cst {dimension_numbers = #tpu.dot_dimension_numbers<[1], [0], [0], [1], [0, 0, 1, 1], [], []>} : vector<128x128xbf16>, vector<128x128xbf16>, vector<128x128xf32> -> vector<128x128xf32>
    %7 = arith.addf %3, %6 : vector<128x128xf32>
    %c0_6 = arith.constant 0 : index
    %c0_7 = arith.constant 0 : index
    %8 = vector.load %arg9[%c0_6, %c0_7] : memref<128x128xf32, #tpu.memory_space<vmem>>, vector<128x128xf32>
    tpu.vector_store %arg9[%c0_6, %c0_7], %7 {strides = array<i32>} : memref<128x128xf32, #tpu.memory_space<vmem>>, vector<128x128xf32>,
    %c0_8 = arith.constant 0 : index
    %c0_9 = arith.constant 0 : index
    %9 = vector.load %arg9[%c0_8, %c0_9] : memref<128x128xf32, #tpu.memory_space<vmem>>, vector<128x128xf32>
    %c0_10 = arith.constant 0 : index
    %c0_11 = arith.constant 0 : index
    %10 = vector.load %arg5[%c0_10, %c0_11] : memref<128x128xbf16, #tpu.memory_space<vmem>>, vector<128x128xbf16>
    %c0_12 = arith.constant 0 : index
    %c0_13 = arith.constant 0 : index
    %11 = vector.load %arg6[%c0_12, %c0_13] : memref<128x128xbf16, #tpu.memory_space<vmem>>, vector<128x128xbf16>
    %cst_14 = arith.constant dense<0.000000e+00> : vector<128x128xf32>
    %12 = tpu.matmul %10, %11, %cst_14 {dimension_numbers = #tpu.dot_dimension_numbers<[1], [0], [0], [1], [0, 0, 1, 1], [], []>} : vector<128x128xbf16>, vector<128x128xbf16>, vector<128x128xf32> -> vector<128x128xf32>
    %13 = arith.addf %9, %12 : vector<128x128xf32>
    %c0_15 = arith.constant 0 : index
    %c0_16 = arith.constant 0 : index
    %14 = vector.load %arg9[%c0_15, %c0_16] : memref<128x128xf32, #tpu.memory_space<vmem>>, vector<128x128xf32>
    tpu.vector_store %arg9[%c0_15, %c0_16], %13 {strides = array<i32>} : memref<128x128xf32, #tpu.memory_space<vmem>>, vector<128x128xf32>,
    %c0_i32_17 = arith.constant 0 : i32
    %15 = arith.cmpi eq, %arg2, %c0_i32_17 : i32
    %16 = arith.extui %15 : i1 to i32
    %c0_i32_18 = arith.constant 0 : i32
    %17 = arith.cmpi ne, %16, %c0_i32_18 : i32
    scf.if %17 {
      %c0_19 = arith.constant 0 : index
      %c0_20 = arith.constant 0 : index
      %18 = vector.load %arg9[%c0_19, %c0_20] : memref<128x128xf32, #tpu.memory_space<vmem>>, vector<128x128xf32>
      %c0_21 = arith.constant 0 : index
      %c0_22 = arith.constant 0 : index
      %19 = vector.load %arg7[%c0_21, %c0_22] : memref<1x128xf32, #tpu.memory_space<vmem>>, vector<1x128xf32>
      %20 = vector.broadcast %19 : vector<1x128xf32> to vector<128x128xf32>
      %21 = arith.addf %18, %20 : vector<128x128xf32>
      %cst_23 = arith.constant 0.000000e+00 : f32
      %22 = vector.broadcast %cst_23 : f32 to vector<128x128xf32>
      %23 = arith.maximumf %21, %22 : vector<128x128xf32>
      %c0_24 = arith.constant 0 : index
      %c0_25 = arith.constant 0 : index
      %24 = vector.load %arg8[%c0_24, %c0_25] : memref<128x128xf32, #tpu.memory_space<vmem>>, vector<128x128xf32>
      tpu.vector_store %arg8[%c0_24, %c0_25], %23 {strides = array<i32>} : memref<128x128xf32, #tpu.memory_space<vmem>>, vector<128x128xf32>,
    } else {
    }
    return
  }
  func.func @transform_0(%arg0: i32, %arg1: i32, %arg2: i32) -> (i32, i32) {
    %c0_i32 = arith.constant 0 : i32
    return %arg0, %arg2 : i32, i32
  }
  func.func @transform_1(%arg0: i32, %arg1: i32, %arg2: i32) -> (i32, i32) {
    %c0_i32 = arith.constant 0 : i32
    return %arg2, %arg1 : i32, i32
  }
  func.func @transform_2(%arg0: i32, %arg1: i32, %arg2: i32) -> (i32, i32) {
    %c0_i32 = arith.constant 0 : i32
    return %arg0, %arg2 : i32, i32
  }
  func.func @transform_3(%arg0: i32, %arg1: i32, %arg2: i32) -> (i32, i32) {
    %c0_i32 = arith.constant 0 : i32
    return %arg2, %arg1 : i32, i32
  }
  func.func @transform_4(%arg0: i32, %arg1: i32, %arg2: i32) -> (i32, i32) {
    %c0_i32 = arith.constant 0 : i32
    %c0_i32_0 = arith.constant 0 : i32
    return %c0_i32, %arg1 : i32, i32
  }
  func.func @transform_5(%arg0: i32, %arg1: i32, %arg2: i32) -> (i32, i32) {
    %c0_i32 = arith.constant 0 : i32
    return %arg0, %arg1 : i32, i32
  }
}

</mosaic_0001>

<llo_original>
// kernel: bottleneck_psp.3
$region0: #{bottleneck_psp.3}
  #allocation0 [shape = 'u32[]', space=smem, size = 0x4, offset = 0x4, fixed_abs, tag = 'smem constant byte address 0x4 - core index']
  #allocation1 [shape = 'u32[144,128]{1,0:T(1,128)}', space=vmem, size = 0x12000, scoped, tag = 'internal scratch']
  #allocation2 [shape = 'f32[512,128]{1,0:T(8,128)}', space=vmem, size = 0x40000, scoped, tag = 'scratch operand']
  %s0 = inlined_call_operand.vmem [shape: bf16[512,128], index: 0, kind: input, shape index: {}]
  %s1 = inlined_call_operand.vmem [shape: bf16[128,128], index: 1, kind: input, shape index: {}]
  %s2 = inlined_call_operand.vmem [shape: f32[1,128], index: 2, kind: input, shape index: {}]
  %s3 = inlined_call_operand.vmem [shape: bf16[512,128], index: 3, kind: output, shape index: {}]
  %s4 = sld [smem:[#allocation0]]
  $region30: #{bottleneck_psp.3} parent=0
    _
  %s6 = ssub.s32 1, %s4
  %s7 = scalar_select 0, %s6, %s4
  // Predicated region
  $region2: #{bottleneck_psp.3} parent=0 // pred_check
    _
  $region3: #{bottleneck_psp.3} parent=0 // pred_check_branch
    %9 = sbr.rel (0) target = $region5
  $region4: #{bottleneck_psp.3} parent=0 // pred_region
    _
  $region5: #{bottleneck_psp.3} parent=0 // pred_fallthru
    _
  // Predicated region
  $region6: #{bottleneck_psp.3} parent=0 // pred_check
    _
  $region7: #{bottleneck_psp.3} parent=0 // pred_check_branch
    %11 = sbr.rel (0) target = $region9
  $region8: #{bottleneck_psp.3} parent=0 // pred_region
    _
  $region9: #{bottleneck_psp.3} parent=0 // pred_fallthru
    _
  // Predicated region
  $region10: #{bottleneck_psp.3} parent=0 // pred_check
    _
  $region11: #{bottleneck_psp.3} parent=0 // pred_check_branch
    %13 = sbr.rel (0) target = $region13
  $region12: #{bottleneck_psp.3} parent=0 // pred_region
    _
  $region13: #{bottleneck_psp.3} parent=0 // pred_fallthru
    _
  %p15 = scmp.eq.s32.totalorder 0, 0
  // Predicated region
  $region14: #{bottleneck_psp.3} parent=0 // pred_check
    %p16 = pneg %p15
  $region15: #{bottleneck_psp.3} parent=0 // pred_check_branch
    %18 = sbr.rel (%p16) target = $region17
  $region16: #{bottleneck_psp.3} parent=0 // pred_region
    %19 = vst [vmem:[#allocation2] sm:$0xff] 0.0
    %20 = vst [vmem:[#allocation2 + $0x8] sm:$0xff] 0.0
    %21 = vst [vmem:[#allocation2 + $0x10] sm:$0xff] 0.0
    %22 = vst [vmem:[#allocation2 + $0x18] sm:$0xff] 0.0
    %23 = vst [vmem:[#allocation2 + $0x20] sm:$0xff] 0.0
    %24 = vst [vmem:[#allocation2 + $0x28] sm:$0xff] 0.0
    %25 = vst [vmem:[#allocation2 + $0x30] sm:$0xff] 0.0
    %26 = vst [vmem:[#allocation2 + $0x38] sm:$0xff] 0.0
    %27 = vst [vmem:[#allocation2 + $0x40] sm:$0xff] 0.0
    %28 = vst [vmem:[#allocation2 + $0x48] sm:$0xff] 0.0
    %29 = vst [vmem:[#allocation2 + $0x50] sm:$0xff] 0.0
    %30 = vst [vmem:[#allocation2 + $0x58] sm:$0xff] 0.0
    %31 = vst [vmem:[#allocation2 + $0x60] sm:$0xff] 0.0
    %32 = vst [vmem:[#allocation2 + $0x68] sm:$0xff] 0.0
    %33 = vst [vmem:[#allocation2 + $0x70] sm:$0xff] 0.0
    %34 = vst [vmem:[#allocation2 + $0x78] sm:$0xff] 0.0
    %35 = vst [vmem:[#allocation2 + $0x80] sm:$0xff] 0.0
    %36 = vst [vmem:[#allocation2 + $0x88] sm:$0xff] 0.0
    %37 = vst [vmem:[#allocation2 + $0x90] sm:$0xff] 0.0
    %38 = vst [vmem:[#allocation2 + $0x98] sm:$0xff] 0.0
    %39 = vst [vmem:[#allocation2 + $0xa0] sm:$0xff] 0.0
    %40 = vst [vmem:[#allocation2 + $0xa8] sm:$0xff] 0.0
    %41 = vst [vmem:[#allocation2 + $0xb0] sm:$0xff] 0.0
    %42 = vst [vmem:[#allocation2 + $0xb8] sm:$0xff] 0.0
    %43 = vst [vmem:[#allocation2 + $0xc0] sm:$0xff] 0.0
    %44 = vst [vmem:[#allocation2 + $0xc8] sm:$0xff] 0.0
    %45 = vst [vmem:[#allocation2 + $0xd0] sm:$0xff] 0.0
    %46 = vst [vmem:[#allocation2 + $0xd8] sm:$0xff] 0.0
    %47 = vst [vmem:[#allocation2 + $0xe0] sm:$0xff] 0.0
    %48 = vst [vmem:[#allocation2 + $0xe8] sm:$0xff] 0.0
    %49 = vst [vmem:[#allocation2 + $0xf0] sm:$0xff] 0.0
    %50 = vst [vmem:[#allocation2 + $0xf8] sm:$0xff] 0.0
    %51 = vst [vmem:[#allocation2 + $0x100] sm:$0xff] 0.0
    %52 = vst [vmem:[#allocation2 + $0x108] sm:$0xff] 0.0
    %53 = vst [vmem:[#allocation2 + $0x110] sm:$0xff] 0.0
    %54 = vst [vmem:[#allocation2 + $0x118] sm:$0xff] 0.0
    %55 = vst [vmem:[#allocation2 + $0x120] sm:$0xff] 0.0
    %56 = vst [vmem:[#allocation2 + $0x128] sm:$0xff] 0.0
    %57 = vst [vmem:[#allocation2 + $0x130] sm:$0xff] 0.0
    %58 = vst [vmem:[#allocation2 + $0x138] sm:$0xff] 0.0
    %59 = vst [vmem:[#allocation2 + $0x140] sm:$0xff] 0.0
    %60 = vst [vmem:[#allocation2 + $0x148] sm:$0xff] 0.0
    %61 = vst [vmem:[#allocation2 + $0x150] sm:$0xff] 0.0
    %62 = vst [vmem:[#allocation2 + $0x158] sm:$0xff] 0.0
    %63 = vst [vmem:[#allocation2 + $0x160] sm:$0xff] 0.0
    %64 = vst [vmem:[#allocation2 + $0x168] sm:$0xff] 0.0
    %65 = vst [vmem:[#allocation2 + $0x170] sm:$0xff] 0.0
    %66 = vst [vmem:[#allocation2 + $0x178] sm:$0xff] 0.0
    %67 = vst [vmem:[#allocation2 + $0x180] sm:$0xff] 0.0
    %68 = vst [vmem:[#allocation2 + $0x188] sm:$0xff] 0.0
    %69 = vst [vmem:[#allocation2 + $0x190] sm:$0xff] 0.0
    %70 = vst [vmem:[#allocation2 + $0x198] sm:$0xff] 0.0
    %71 = vst [vmem:[#allocation2 + $0x1a0] sm:$0xff] 0.0
    %72 = vst [vmem:[#allocation2 + $0x1a8] sm:$0xff] 0.0
    %73 = vst [vmem:[#allocation2 + $0x1b0] sm:$0xff] 0.0
    %74 = vst [vmem:[#allocation2 + $0x1b8] sm:$0xff] 0.0
    %75 = vst [vmem:[#allocation2 + $0x1c0] sm:$0xff] 0.0
    %76 = vst [vmem:[#allocation2 + $0x1c8] sm:$0xff] 0.0
    %77 = vst [vmem:[#allocation2 + $0x1d0] sm:$0xff] 0.0
    %78 = vst [vmem:[#allocation2 + $0x1d8] sm:$0xff] 0.0
    %79 = vst [vmem:[#allocation2 + $0x1e0] sm:$0xff] 0.0
    %80 = vst [vmem:[#allocation2 + $0x1e8] sm:$0xff] 0.0
    %81 = vst [vmem:[#allocation2 + $0x1f0] sm:$0xff] 0.0
    %82 = vst [vmem:[#allocation2 + $0x1f8] sm:$0xff] 0.0
  $region17: #{bottleneck_psp.3} parent=0 // pred_fallthru
    _
  %v83 = vld [vmem:[#allocation2] sm:$0xff]
  %v84 = vld [vmem:[#allocation2 + $0x8] sm:$0xff]
  %v85 = vld [vmem:[#allocation2 + $0x10] sm:$0xff]
  %v86 = vld [vmem:[#allocation2 + $0x18] sm:$0xff]
  %v87 = vld [vmem:[#allocation2 + $0x20] sm:$0xff]
  %v88 = vld [vmem:[#allocation2 + $0x28] sm:$0xff]
  %v89 = vld [vmem:[#allocation2 + $0x30] sm:$0xff]
  %v90 = vld [vmem:[#allocation2 + $0x38] sm:$0xff]
  %v91 = vld [vmem:[#allocation2 + $0x40] sm:$0xff]
  %v92 = vld [vmem:[#allocation2 + $0x48] sm:$0xff]
  %v93 = vld [vmem:[#allocation2 + $0x50] sm:$0xff]
  %v94 = vld [vmem:[#allocation2 + $0x58] sm:$0xff]
  %v95 = vld [vmem:[#allocation2 + $0x60] sm:$0xff]
  %v96 = vld [vmem:[#allocation2 + $0x68] sm:$0xff]
  %v97 = vld [vmem:[#allocation2 + $0x70] sm:$0xff]
  %v98 = vld [vmem:[#allocation2 + $0x78] sm:$0xff]
  %v99 = vld [vmem:[#allocation2 + $0x80] sm:$0xff]
  %v100 = vld [vmem:[#allocation2 + $0x88] sm:$0xff]
  %v101 = vld [vmem:[#allocation2 + $0x90] sm:$0xff]
  %v102 = vld [vmem:[#allocation2 + $0x98] sm:$0xff]
  %v103 = vld [vmem:[#allocation2 + $0xa0] sm:$0xff]
  %v104 = vld [vmem:[#allocation2 + $0xa8] sm:$0xff]
  %v105 = vld [vmem:[#allocation2 + $0xb0] sm:$0xff]
  %v106 = vld [vmem:[#allocation2 + $0xb8] sm:$0xff]
  %v107 = vld [vmem:[#allocation2 + $0xc0] sm:$0xff]
  %v108 = vld [vmem:[#allocation2 + $0xc8] sm:$0xff]
  %v109 = vld [vmem:[#allocation2 + $0xd0] sm:$0xff]
  %v110 = vld [vmem:[#allocation2 + $0xd8] sm:$0xff]
  %v111 = vld [vmem:[#allocation2 + $0xe0] sm:$0xff]
  %v112 = vld [vmem:[#allocation2 + $0xe8] sm:$0xff]
  %v113 = vld [vmem:[#allocation2 + $0xf0] sm:$0xff]
  %v114 = vld [vmem:[#allocation2 + $0xf8] sm:$0xff]
  %v115 = vld [vmem:[#allocation2 + $0x100] sm:$0xff]
  %v116 = vld [vmem:[#allocation2 + $0x108] sm:$0xff]
  %v117 = vld [vmem:[#allocation2 + $0x110] sm:$0xff]
  %v118 = vld [vmem:[#allocation2 + $0x118] sm:$0xff]
  %v119 = vld [vmem:[#allocation2 + $0x120] sm:$0xff]
  %v120 = vld [vmem:[#allocation2 + $0x128] sm:$0xff]
  %v121 = vld [vmem:[#allocation2 + $0x130] sm:$0xff]
  %v122 = vld [vmem:[#allocation2 + $0x138] sm:$0xff]
  %v123 = vld [vmem:[#allocation2 + $0x140] sm:$0xff]
  %v124 = vld [vmem:[#allocation2 + $0x148] sm:$0xff]
  %v125 = vld [vmem:[#allocation2 + $0x150] sm:$0xff]
  %v126 = vld [vmem:[#allocation2 + $0x158] sm:$0xff]
  %v127 = vld [vmem:[#allocation2 + $0x160] sm:$0xff]
  %v128 = vld [vmem:[#allocation2 + $0x168] sm:$0xff]
  %v129 = vld [vmem:[#allocation2 + $0x170] sm:$0xff]
  %v130 = vld [vmem:[#allocation2 + $0x178] sm:$0xff]
  %v131 = vld [vmem:[#allocation2 + $0x180] sm:$0xff]
  %v132 = vld [vmem:[#allocation2 + $0x188] sm:$0xff]
  %v133 = vld [vmem:[#allocation2 + $0x190] sm:$0xff]
  %v134 = vld [vmem:[#allocation2 + $0x198] sm:$0xff]
  %v135 = vld [vmem:[#allocation2 + $0x1a0] sm:$0xff]
  %v136 = vld [vmem:[#allocation2 + $0x1a8] sm:$0xff]
  %v137 = vld [vmem:[#allocation2 + $0x1b0] sm:$0xff]
  %v138 = vld [vmem:[#allocation2 + $0x1b8] sm:$0xff]
  %v139 = vld [vmem:[#allocation2 + $0x1c0] sm:$0xff]
  %v140 = vld [vmem:[#allocation2 + $0x1c8] sm:$0xff]
  %v141 = vld [vmem:[#allocation2 + $0x1d0] sm:$0xff]
  %v142 = vld [vmem:[#allocation2 + $0x1d8] sm:$0xff]
  %v143 = vld [vmem:[#allocation2 + $0x1e0] sm:$0xff]
  %v144 = vld [vmem:[#allocation2 + $0x1e8] sm:$0xff]
  %v145 = vld [vmem:[#allocation2 + $0x1f0] sm:$0xff]
  %v146 = vld [vmem:[#allocation2 + $0x1f8] sm:$0xff]
  %v147 = vld [vmem:[%s0] sm:$0xf]
  %v148 = vld [vmem:[%s0 + $0x4] sm:$0xf]
  %v149 = vld [vmem:[%s0 + $0x8] sm:$0xf]
  %v150 = vld [vmem:[%s0 + $0xc] sm:$0xf]
  %v151 = vld [vmem:[%s0 + $0x10] sm:$0xf]
  %v152 = vld [vmem:[%s0 + $0x14] sm:$0xf]
  %v153 = vld [vmem:[%s0 + $0x18] sm:$0xf]
  %v154 = vld [vmem:[%s0 + $0x1c] sm:$0xf]
  %v155 = vld [vmem:[%s0 + $0x20] sm:$0xf]
  %v156 = vld [vmem:[%s0 + $0x24] sm:$0xf]
  %v157 = vld [vmem:[%s0 + $0x28] sm:$0xf]
  %v158 = vld [vmem:[%s0 + $0x2c] sm:$0xf]
  %v159 = vld [vmem:[%s0 + $0x30] sm:$0xf]
  %v160 = vld [vmem:[%s0 + $0x34] sm:$0xf]
  %v161 = vld [vmem:[%s0 + $0x38] sm:$0xf]
  %v162 = vld [vmem:[%s0 + $0x3c] sm:$0xf]
  %v163 = vld [vmem:[%s0 + $0x40] sm:$0xf]
  %v164 = vld [vmem:[%s0 + $0x44] sm:$0xf]
  %v165 = vld [vmem:[%s0 + $0x48] sm:$0xf]
  %v166 = vld [vmem:[%s0 + $0x4c] sm:$0xf]
  %v167 = vld [vmem:[%s0 + $0x50] sm:$0xf]
  %v168 = vld [vmem:[%s0 + $0x54] sm:$0xf]
  %v169 = vld [vmem:[%s0 + $0x58] sm:$0xf]
  %v170 = vld [vmem:[%s0 + $0x5c] sm:$0xf]
  %v171 = vld [vmem:[%s0 + $0x60] sm:$0xf]
  %v172 = vld [vmem:[%s0 + $0x64] sm:$0xf]
  %v173 = vld [vmem:[%s0 + $0x68] sm:$0xf]
  %v174 = vld [vmem:[%s0 + $0x6c] sm:$0xf]
  %v175 = vld [vmem:[%s0 + $0x70] sm:$0xf]
  %v176 = vld [vmem:[%s0 + $0x74] sm:$0xf]
  %v177 = vld [vmem:[%s0 + $0x78] sm:$0xf]
  %v178 = vld [vmem:[%s0 + $0x7c] sm:$0xf]
  %v179 = vld [vmem:[%s0 + $0x80] sm:$0xf]
  %v180 = vld [vmem:[%s0 + $0x84] sm:$0xf]
  %v181 = vld [vmem:[%s0 + $0x88] sm:$0xf]
  %v182 = vld [vmem:[%s0 + $0x8c] sm:$0xf]
  %v183 = vld [vmem:[%s0 + $0x90] sm:$0xf]
  %v184 = vld [vmem:[%s0 + $0x94] sm:$0xf]
  %v185 = vld [vmem:[%s0 + $0x98] sm:$0xf]
  %v186 = vld [vmem:[%s0 + $0x9c] sm:$0xf]
  %v187 = vld [vmem:[%s0 + $0xa0] sm:$0xf]
  %v188 = vld [vmem:[%s0 + $0xa4] sm:$0xf]
  %v189 = vld [vmem:[%s0 + $0xa8] sm:$0xf]
  %v190 = vld [vmem:[%s0 + $0xac] sm:$0xf]
  %v191 = vld [vmem:[%s0 + $0xb0] sm:$0xf]
  %v192 = vld [vmem:[%s0 + $0xb4] sm:$0xf]
  %v193 = vld [vmem:[%s0 + $0xb8] sm:$0xf]
  %v194 = vld [vmem:[%s0 + $0xbc] sm:$0xf]
  %v195 = vld [vmem:[%s0 + $0xc0] sm:$0xf]
  %v196 = vld [vmem:[%s0 + $0xc4] sm:$0xf]
  %v197 = vld [vmem:[%s0 + $0xc8] sm:$0xf]
  %v198 = vld [vmem:[%s0 + $0xcc] sm:$0xf]
  %v199 = vld [vmem:[%s0 + $0xd0] sm:$0xf]
  %v200 = vld [vmem:[%s0 + $0xd4] sm:$0xf]
  %v201 = vld [vmem:[%s0 + $0xd8] sm:$0xf]
  %v202 = vld [vmem:[%s0 + $0xdc] sm:$0xf]
  %v203 = vld [vmem:[%s0 + $0xe0] sm:$0xf]
  %v204 = vld [vmem:[%s0 + $0xe4] sm:$0xf]
  %v205 = vld [vmem:[%s0 + $0xe8] sm:$0xf]
  %v206 = vld [vmem:[%s0 + $0xec] sm:$0xf]
  %v207 = vld [vmem:[%s0 + $0xf0] sm:$0xf]
  %v208 = vld [vmem:[%s0 + $0xf4] sm:$0xf]
  %v209 = vld [vmem:[%s0 + $0xf8] sm:$0xf]
  %v210 = vld [vmem:[%s0 + $0xfc] sm:$0xf]
  %v211 = vld [vmem:[%s1] sm:$0xf]
  %v212 = vld [vmem:[%s1 + $0x4] sm:$0xf]
  %v213 = vld [vmem:[%s1 + $0x8] sm:$0xf]
  %v214 = vld [vmem:[%s1 + $0xc] sm:$0xf]
  %v215 = vld [vmem:[%s1 + $0x10] sm:$0xf]
  %v216 = vld [vmem:[%s1 + $0x14] sm:$0xf]
  %v217 = vld [vmem:[%s1 + $0x18] sm:$0xf]
  %v218 = vld [vmem:[%s1 + $0x1c] sm:$0xf]
  %v219 = vld [vmem:[%s1 + $0x20] sm:$0xf]
  %v220 = vld [vmem:[%s1 + $0x24] sm:$0xf]
  %v221 = vld [vmem:[%s1 + $0x28] sm:$0xf]
  %v222 = vld [vmem:[%s1 + $0x2c] sm:$0xf]
  %v223 = vld [vmem:[%s1 + $0x30] sm:$0xf]
  %v224 = vld [vmem:[%s1 + $0x34] sm:$0xf]
  %v225 = vld [vmem:[%s1 + $0x38] sm:$0xf]
  %v226 = vld [vmem:[%s1 + $0x3c] sm:$0xf]
  %v291 = vunpack.c.l.b16 %v147
  %v292 = vunpack.c.l.b16 %v148
  %v293 = vunpack.c.l.b16 %v149
  %v294 = vunpack.c.l.b16 %v150
  %v295 = vunpack.c.l.b16 %v151
  %v296 = vunpack.c.l.b16 %v152
  %v297 = vunpack.c.l.b16 %v153
  %v298 = vunpack.c.l.b16 %v154
  %v299 = vunpack.c.l.b16 %v155
  %v300 = vunpack.c.l.b16 %v156
  %v301 = vunpack.c.l.b16 %v157
  %v302 = vunpack.c.l.b16 %v158
  %v303 = vunpack.c.l.b16 %v159
  %v304 = vunpack.c.l.b16 %v160
  %v305 = vunpack.c.l.b16 %v161
  %v306 = vunpack.c.l.b16 %v162
  %v307 = vunpack.c.l.b16 %v163
  %v308 = vunpack.c.l.b16 %v164
  %v309 = vunpack.c.l.b16 %v165
  %v310 = vunpack.c.l.b16 %v166
  %v311 = vunpack.c.l.b16 %v167
  %v312 = vunpack.c.l.b16 %v168
  %v313 = vunpack.c.l.b16 %v169
  %v314 = vunpack.c.l.b16 %v170
  %v315 = vunpack.c.l.b16 %v171
  %v316 = vunpack.c.l.b16 %v172
  %v317 = vunpack.c.l.b16 %v173
  %v318 = vunpack.c.l.b16 %v174
  %v319 = vunpack.c.l.b16 %v175
  %v320 = vunpack.c.l.b16 %v176
  %v321 = vunpack.c.l.b16 %v177
  %v322 = vunpack.c.l.b16 %v178
  %v323 = vunpack.c.l.b16 %v179
  %v324 = vunpack.c.l.b16 %v180
  %v325 = vunpack.c.l.b16 %v181
  %v326 = vunpack.c.l.b16 %v182
  %v327 = vunpack.c.l.b16 %v183
  %v328 = vunpack.c.l.b16 %v184
  %v329 = vunpack.c.l.b16 %v185
  %v330 = vunpack.c.l.b16 %v186
  %v331 = vunpack.c.l.b16 %v187
  %v332 = vunpack.c.l.b16 %v188
  %v333 = vunpack.c.l.b16 %v189
  %v334 = vunpack.c.l.b16 %v190
  %v335 = vunpack.c.l.b16 %v191
  %v336 = vunpack.c.l.b16 %v192
  %v337 = vunpack.c.l.b16 %v193
  %v338 = vunpack.c.l.b16 %v194
  %v339 = vunpack.c.l.b16 %v195
  %v340 = vunpack.c.l.b16 %v196
  %v341 = vunpack.c.l.b16 %v197
  %v342 = vunpack.c.l.b16 %v198
  %v343 = vunpack.c.l.b16 %v199
  %v344 = vunpack.c.l.b16 %v200
  %v345 = vunpack.c.l.b16 %v201
  %v346 = vunpack.c.l.b16 %v202
  %v347 = vunpack.c.l.b16 %v203
  %v348 = vunpack.c.l.b16 %v204
  %v349 = vunpack.c.l.b16 %v205
  %v350 = vunpack.c.l.b16 %v206
  %v351 = vunpack.c.l.b16 %v207
  %v352 = vunpack.c.l.b16 %v208
  %v353 = vunpack.c.l.b16 %v209
  %v354 = vunpack.c.l.b16 %v210
  %v355 = vpack.c.b16 %v292, %v291
  %v356 = vpack.c.b16 %v294, %v293
  %v357 = vpack.c.b16 %v296, %v295
  %v358 = vpack.c.b16 %v298, %v297
  %v359 = vpack.c.b16 %v300, %v299
  %v360 = vpack.c.b16 %v302, %v301
  %v361 = vpack.c.b16 %v304, %v303
  %v362 = vpack.c.b16 %v306, %v305
  %v363 = vpack.c.b16 %v308, %v307
  %v364 = vpack.c.b16 %v310, %v309
  %v365 = vpack.c.b16 %v312, %v311
  %v366 = vpack.c.b16 %v314, %v313
  %v367 = vpack.c.b16 %v316, %v315
  %v368 = vpack.c.b16 %v318, %v317
  %v369 = vpack.c.b16 %v320, %v319
  %v370 = vpack.c.b16 %v322, %v321
  %v371 = vpack.c.b16 %v324, %v323
  %v372 = vpack.c.b16 %v326, %v325
  %v373 = vpack.c.b16 %v328, %v327
  %v374 = vpack.c.b16 %v330, %v329
  %v375 = vpack.c.b16 %v332, %v331
  %v376 = vpack.c.b16 %v334, %v333
  %v377 = vpack.c.b16 %v336, %v335
  %v378 = vpack.c.b16 %v338, %v337
  %v379 = vpack.c.b16 %v340, %v339
  %v380 = vpack.c.b16 %v342, %v341
  %v381 = vpack.c.b16 %v344, %v343
  %v382 = vpack.c.b16 %v346, %v345
  %v383 = vpack.c.b16 %v348, %v347
  %v384 = vpack.c.b16 %v350, %v349
  %v385 = vpack.c.b16 %v352, %v351
  %v386 = vpack.c.b16 %v354, %v353
  %v435 = vunpack.c.l.b16 %v211
  %v436 = vunpack.c.l.b16 %v212
  %v437 = vunpack.c.l.b16 %v213
  %v438 = vunpack.c.l.b16 %v214
  %v439 = vunpack.c.l.b16 %v215
  %v440 = vunpack.c.l.b16 %v216
  %v441 = vunpack.c.l.b16 %v217
  %v442 = vunpack.c.l.b16 %v218
  %v443 = vunpack.c.l.b16 %v219
  %v444 = vunpack.c.l.b16 %v220
  %v445 = vunpack.c.l.b16 %v221
  %v446 = vunpack.c.l.b16 %v222
  %v447 = vunpack.c.l.b16 %v223
  %v448 = vunpack.c.l.b16 %v224
  %v449 = vunpack.c.l.b16 %v225
  %v450 = vunpack.c.l.b16 %v226
  %v451 = vpack.c.b16 %v436, %v435
  %v452 = vpack.c.b16 %v438, %v437
  %v453 = vpack.c.b16 %v440, %v439
  %v454 = vpack.c.b16 %v442, %v441
  %v455 = vpack.c.b16 %v444, %v443
  %v456 = vpack.c.b16 %v446, %v445
  %v457 = vpack.c.b16 %v448, %v447
  %v458 = vpack.c.b16 %v450, %v449
  %467 = vmatprep.subr.bf16.mxu0 0
  %468 = vmatpush1.bf16.msra.mxu0 %v458
  %469 = vmatprep.subr.bf16.mxu0 0
  %470 = vmatpush1.bf16.msra.mxu0 %v457
  %471 = vmatprep.subr.bf16.mxu0 0
  %472 = vmatpush1.bf16.msra.mxu0 %v456
  %473 = vmatprep.subr.bf16.mxu0 0
  %474 = vmatpush1.bf16.msra.mxu0 %v455
  %475 = vmatprep.subr.bf16.mxu0 0
  %476 = vmatpush1.bf16.msra.mxu0 %v454
  %477 = vmatprep.subr.bf16.mxu0 0
  %478 = vmatpush1.bf16.msra.mxu0 %v453
  %479 = vmatprep.subr.bf16.mxu0 0
  %480 = vmatpush1.bf16.msra.mxu0 %v452
  %481 = vmatprep.subr.bf16.mxu0 0
  %482 = vmatpush1.bf16.msra.mxu0 %v451
  %483 = vmatprep.subr.bf16.mxu0 0
  %484 = vmatpush2.bf16.msra.mxu0 0
  %485 = vmatprep.subr.bf16.mxu0 0
  %486 = vmatpush2.bf16.msra.mxu0 0
  %487 = vmatprep.subr.bf16.mxu0 0
  %488 = vmatpush2.bf16.msra.mxu0 0
  %489 = vmatprep.subr.bf16.mxu0 0
  %490 = vmatpush2.bf16.msra.mxu0 0
  %491 = vmatprep.subr.bf16.mxu0 0
  %492 = vmatpush2.bf16.msra.mxu0 0
  %493 = vmatprep.subr.bf16.mxu0 0
  %494 = vmatpush2.bf16.msra.mxu0 0
  %495 = vmatprep.subr.bf16.mxu0 0
  %496 = vmatpush2.bf16.msra.mxu0 0
  %497 = vmatprep.subr.bf16.mxu0 0
  %498 = vmatpush2.bf16.msra.mxu0 0
  %499 = vmatprep.mubr.bf16.mxu0 0
  %500 = vmatmul.mubr.bf16.gmra.mxu0 %v355
  %v501 = vpop.f32.mrf.mxu0
  %v502 = vadd.f32 0.0, %v501
  %v503 = vpop.f32.mrf.mxu0
  %v504 = vpop.f32.mrf.mxu0
  %v505 = vadd.f32 0.0, %v504
  %v506 = vpop.f32.mrf.mxu0
  %507 = vmatprep.mubr.bf16.mxu0 0
  %508 = vmatmul.mubr.bf16.gmra.mxu0 %v356
  %v509 = vpop.f32.mrf.mxu0
  %v510 = vadd.f32 0.0, %v509
  %v511 = vpop.f32.mrf.mxu0
  %v512 = vpop.f32.mrf.mxu0
  %v513 = vadd.f32 0.0, %v512
  %v514 = vpop.f32.mrf.mxu0
  %515 = vmatprep.mubr.bf16.mxu0 0
  %516 = vmatmul.mubr.bf16.gmra.mxu0 %v357
  %v517 = vpop.f32.mrf.mxu0
  %v518 = vadd.f32 0.0, %v517
  %v519 = vpop.f32.mrf.mxu0
  %v520 = vpop.f32.mrf.mxu0
  %v521 = vadd.f32 0.0, %v520
  %v522 = vpop.f32.mrf.mxu0
  %523 = vmatprep.mubr.bf16.mxu0 0
  %524 = vmatmul.mubr.bf16.gmra.mxu0 %v358
  %v525 = vpop.f32.mrf.mxu0
  %v526 = vadd.f32 0.0, %v525
  %v527 = vpop.f32.mrf.mxu0
  %v528 = vpop.f32.mrf.mxu0
  %v529 = vadd.f32 0.0, %v528
  %v530 = vpop.f32.mrf.mxu0
  %531 = vmatprep.mubr.bf16.mxu0 0
  %532 = vmatmul.mubr.bf16.gmra.mxu0 %v359
  %v533 = vpop.f32.mrf.mxu0
  %v534 = vadd.f32 0.0, %v533
  %v535 = vpop.f32.mrf.mxu0
  %v536 = vpop.f32.mrf.mxu0
  %v537 = vadd.f32 0.0, %v536
  %v538 = vpop.f32.mrf.mxu0
  %539 = vmatprep.mubr.bf16.mxu0 0
  %540 = vmatmul.mubr.bf16.gmra.mxu0 %v360
  %v541 = vpop.f32.mrf.mxu0
  %v542 = vadd.f32 0.0, %v541
  %v543 = vpop.f32.mrf.mxu0
  %v544 = vpop.f32.mrf.mxu0
  %v545 = vadd.f32 0.0, %v544
  %v546 = vpop.f32.mrf.mxu0
  %547 = vmatprep.mubr.bf16.mxu0 0
  %548 = vmatmul.mubr.bf16.gmra.mxu0 %v361
  %v549 = vpop.f32.mrf.mxu0
  %v550 = vadd.f32 0.0, %v549
  %v551 = vpop.f32.mrf.mxu0
  %v552 = vpop.f32.mrf.mxu0
  %v553 = vadd.f32 0.0, %v552
  %v554 = vpop.f32.mrf.mxu0
  %555 = vmatprep.mubr.bf16.mxu0 0
  %556 = vmatmul.mubr.bf16.gmra.mxu0 %v362
  %v557 = vpop.f32.mrf.mxu0
  %v558 = vadd.f32 0.0, %v557
  %v559 = vpop.f32.mrf.mxu0
  %v560 = vpop.f32.mrf.mxu0
  %v561 = vadd.f32 0.0, %v560
  %v562 = vpop.f32.mrf.mxu0
  %563 = vmatprep.mubr.bf16.mxu0 0
  %564 = vmatmul.mubr.bf16.gmra.mxu0 %v363
  %v565 = vpop.f32.mrf.mxu0
  %v566 = vadd.f32 0.0, %v565
  %v567 = vpop.f32.mrf.mxu0
  %v568 = vpop.f32.mrf.mxu0
  %v569 = vadd.f32 0.0, %v568
  %v570 = vpop.f32.mrf.mxu0
  %571 = vmatprep.mubr.bf16.mxu0 0
  %572 = vmatmul.mubr.bf16.gmra.mxu0 %v364
  %v573 = vpop.f32.mrf.mxu0
  %v574 = vadd.f32 0.0, %v573
  %v575 = vpop.f32.mrf.mxu0
  %v576 = vpop.f32.mrf.mxu0
  %v577 = vadd.f32 0.0, %v576
  %v578 = vpop.f32.mrf.mxu0
  %579 = vmatprep.mubr.bf16.mxu0 0
  %580 = vmatmul.mubr.bf16.gmra.mxu0 %v365
  %v581 = vpop.f32.mrf.mxu0
  %v582 = vadd.f32 0.0, %v581
  %v583 = vpop.f32.mrf.mxu0
  %v584 = vpop.f32.mrf.mxu0
  %v585 = vadd.f32 0.0, %v584
  %v586 = vpop.f32.mrf.mxu0
  %587 = vmatprep.mubr.bf16.mxu0 0
  %588 = vmatmul.mubr.bf16.gmra.mxu0 %v366
  %v589 = vpop.f32.mrf.mxu0
  %v590 = vadd.f32 0.0, %v589
  %v591 = vpop.f32.mrf.mxu0
  %v592 = vpop.f32.mrf.mxu0
  %v593 = vadd.f32 0.0, %v592
  %v594 = vpop.f32.mrf.mxu0
  %595 = vmatprep.mubr.bf16.mxu0 0
  %596 = vmatmul.mubr.bf16.gmra.mxu0 %v367
  %v597 = vpop.f32.mrf.mxu0
  %v598 = vadd.f32 0.0, %v597
  %v599 = vpop.f32.mrf.mxu0
  %v600 = vpop.f32.mrf.mxu0
  %v601 = vadd.f32 0.0, %v600
  %v602 = vpop.f32.mrf.mxu0
  %603 = vmatprep.mubr.bf16.mxu0 0
  %604 = vmatmul.mubr.bf16.gmra.mxu0 %v368
  %v605 = vpop.f32.mrf.mxu0
  %v606 = vadd.f32 0.0, %v605
  %v607 = vpop.f32.mrf.mxu0
  %v608 = vpop.f32.mrf.mxu0
  %v609 = vadd.f32 0.0, %v608
  %v610 = vpop.f32.mrf.mxu0
  %611 = vmatprep.mubr.bf16.mxu0 0
  %612 = vmatmul.mubr.bf16.gmra.mxu0 %v369
  %v613 = vpop.f32.mrf.mxu0
  %v614 = vadd.f32 0.0, %v613
  %v615 = vpop.f32.mrf.mxu0
  %v616 = vpop.f32.mrf.mxu0
  %v617 = vadd.f32 0.0, %v616
  %v618 = vpop.f32.mrf.mxu0
  %619 = vmatprep.mubr.bf16.mxu0 0
  %620 = vmatmul.mubr.bf16.gmra.mxu0 %v370
  %v621 = vpop.f32.mrf.mxu0
  %v622 = vadd.f32 0.0, %v621
  %v623 = vpop.f32.mrf.mxu0
  %v624 = vpop.f32.mrf.mxu0
  %v625 = vadd.f32 0.0, %v624
  %v626 = vpop.f32.mrf.mxu0
  %627 = vmatprep.mubr.bf16.mxu0 0
  %628 = vmatmul.mubr.bf16.gmra.mxu0 %v371
  %v629 = vpop.f32.mrf.mxu0
  %v630 = vadd.f32 0.0, %v629
  %v631 = vpop.f32.mrf.mxu0
  %v632 = vpop.f32.mrf.mxu0
  %v633 = vadd.f32 0.0, %v632
  %v634 = vpop.f32.mrf.mxu0
  %635 = vmatprep.mubr.bf16.mxu0 0
  %636 = vmatmul.mubr.bf16.gmra.mxu0 %v372
  %v637 = vpop.f32.mrf.mxu0
  %v638 = vadd.f32 0.0, %v637
  %v639 = vpop.f32.mrf.mxu0
  %v640 = vpop.f32.mrf.mxu0
  %v641 = vadd.f32 0.0, %v640
  %v642 = vpop.f32.mrf.mxu0
  %643 = vmatprep.mubr.bf16.mxu0 0
  %644 = vmatmul.mubr.bf16.gmra.mxu0 %v373
  %v645 = vpop.f32.mrf.mxu0
  %v646 = vadd.f32 0.0, %v645
  %v647 = vpop.f32.mrf.mxu0
  %v648 = vpop.f32.mrf.mxu0
  %v649 = vadd.f32 0.0, %v648
  %v650 = vpop.f32.mrf.mxu0
  %651 = vmatprep.mubr.bf16.mxu0 0
  %652 = vmatmul.mubr.bf16.gmra.mxu0 %v374
  %v653 = vpop.f32.mrf.mxu0
  %v654 = vadd.f32 0.0, %v653
  %v655 = vpop.f32.mrf.mxu0
  %v656 = vpop.f32.mrf.mxu0
  %v657 = vadd.f32 0.0, %v656
  %v658 = vpop.f32.mrf.mxu0
  %659 = vmatprep.mubr.bf16.mxu0 0
  %660 = vmatmul.mubr.bf16.gmra.mxu0 %v375
  %v661 = vpop.f32.mrf.mxu0
  %v662 = vadd.f32 0.0, %v661
  %v663 = vpop.f32.mrf.mxu0
  %v664 = vpop.f32.mrf.mxu0
  %v665 = vadd.f32 0.0, %v664
  %v666 = vpop.f32.mrf.mxu0
  %667 = vmatprep.mubr.bf16.mxu0 0
  %668 = vmatmul.mubr.bf16.gmra.mxu0 %v376
  %v669 = vpop.f32.mrf.mxu0
  %v670 = vadd.f32 0.0, %v669
  %v671 = vpop.f32.mrf.mxu0
  %v672 = vpop.f32.mrf.mxu0
  %v673 = vadd.f32 0.0, %v672
  %v674 = vpop.f32.mrf.mxu0
  %675 = vmatprep.mubr.bf16.mxu0 0
  %676 = vmatmul.mubr.bf16.gmra.mxu0 %v377
  %v677 = vpop.f32.mrf.mxu0
  %v678 = vadd.f32 0.0, %v677
  %v679 = vpop.f32.mrf.mxu0
  %v680 = vpop.f32.mrf.mxu0
  %v681 = vadd.f32 0.0, %v680
  %v682 = vpop.f32.mrf.mxu0
  %683 = vmatprep.mubr.bf16.mxu0 0
  %684 = vmatmul.mubr.bf16.gmra.mxu0 %v378
  %v685 = vpop.f32.mrf.mxu0
  %v686 = vadd.f32 0.0, %v685
  %v687 = vpop.f32.mrf.mxu0
  %v688 = vpop.f32.mrf.mxu0
  %v689 = vadd.f32 0.0, %v688
  %v690 = vpop.f32.mrf.mxu0
  %691 = vmatprep.mubr.bf16.mxu0 0
  %692 = vmatmul.mubr.bf16.gmra.mxu0 %v379
  %v693 = vpop.f32.mrf.mxu0
  %v694 = vadd.f32 0.0, %v693
  %v695 = vpop.f32.mrf.mxu0
  %v696 = vpop.f32.mrf.mxu0
  %v697 = vadd.f32 0.0, %v696
  %v698 = vpop.f32.mrf.mxu0
  %699 = vmatprep.mubr.bf16.mxu0 0
  %700 = vmatmul.mubr.bf16.gmra.mxu0 %v380
  %v701 = vpop.f32.mrf.mxu0
  %v702 = vadd.f32 0.0, %v701
  %v703 = vpop.f32.mrf.mxu0
  %v704 = vpop.f32.mrf.mxu0
  %v705 = vadd.f32 0.0, %v704
  %v706 = vpop.f32.mrf.mxu0
  %707 = vmatprep.mubr.bf16.mxu0 0
  %708 = vmatmul.mubr.bf16.gmra.mxu0 %v381
  %v709 = vpop.f32.mrf.mxu0
  %v710 = vadd.f32 0.0, %v709
  %v711 = vpop.f32.mrf.mxu0
  %v712 = vpop.f32.mrf.mxu0
  %v713 = vadd.f32 0.0, %v712
  %v714 = vpop.f32.mrf.mxu0
  %715 = vmatprep.mubr.bf16.mxu0 0
  %716 = vmatmul.mubr.bf16.gmra.mxu0 %v382
  %v717 = vpop.f32.mrf.mxu0
  %v718 = vadd.f32 0.0, %v717
  %v719 = vpop.f32.mrf.mxu0
  %v720 = vpop.f32.mrf.mxu0
  %v721 = vadd.f32 0.0, %v720
  %v722 = vpop.f32.mrf.mxu0
  %723 = vmatprep.mubr.bf16.mxu0 0
  %724 = vmatmul.mubr.bf16.gmra.mxu0 %v383
  %v725 = vpop.f32.mrf.mxu0
  %v726 = vadd.f32 0.0, %v725
  %v727 = vpop.f32.mrf.mxu0
  %v728 = vpop.f32.mrf.mxu0
  %v729 = vadd.f32 0.0, %v728
  %v730 = vpop.f32.mrf.mxu0
  %731 = vmatprep.mubr.bf16.mxu0 0
  %732 = vmatmul.mubr.bf16.gmra.mxu0 %v384
  %v733 = vpop.f32.mrf.mxu0
  %v734 = vadd.f32 0.0, %v733
  %v735 = vpop.f32.mrf.mxu0
  %v736 = vpop.f32.mrf.mxu0
  %v737 = vadd.f32 0.0, %v736
  %v738 = vpop.f32.mrf.mxu0
  %739 = vmatprep.mubr.bf16.mxu0 0
  %740 = vmatmul.mubr.bf16.gmra.mxu0 %v385
  %v741 = vpop.f32.mrf.mxu0
  %v742 = vadd.f32 0.0, %v741
  %v743 = vpop.f32.mrf.mxu0
  %v744 = vpop.f32.mrf.mxu0
  %v745 = vadd.f32 0.0, %v744
  %v746 = vpop.f32.mrf.mxu0
  %747 = vmatprep.mubr.bf16.mxu0 0
  %748 = vmatmul.mubr.bf16.gmra.mxu0 %v386
  %v749 = vpop.f32.mrf.mxu0
  %v750 = vadd.f32 0.0, %v749
  %v751 = vpop.f32.mrf.mxu0
  %v752 = vpop.f32.mrf.mxu0
  %v753 = vadd.f32 0.0, %v752
  %v754 = vpop.f32.mrf.mxu0
  %755 = vdwg.mxu0
  %v756 = vadd.f32 %v83, %v502
  %v757 = vadd.f32 %v84, %v505
  %v758 = vadd.f32 %v85, %v510
  %v759 = vadd.f32 %v86, %v513
  %v760 = vadd.f32 %v87, %v518
  %v761 = vadd.f32 %v88, %v521
  %v762 = vadd.f32 %v89, %v526
  %v763 = vadd.f32 %v90, %v529
  %v764 = vadd.f32 %v91, %v534
  %v765 = vadd.f32 %v92, %v537
  %v766 = vadd.f32 %v93, %v542
  %v767 = vadd.f32 %v94, %v545
  %v768 = vadd.f32 %v95, %v550
  %v769 = vadd.f32 %v96, %v553
  %v770 = vadd.f32 %v97, %v558
  %v771 = vadd.f32 %v98, %v561
  %v772 = vadd.f32 %v99, %v566
  %v773 = vadd.f32 %v100, %v569
  %v774 = vadd.f32 %v101, %v574
  %v775 = vadd.f32 %v102, %v577
  %v776 = vadd.f32 %v103, %v582
  %v777 = vadd.f32 %v104, %v585
  %v778 = vadd.f32 %v105, %v590
  %v779 = vadd.f32 %v106, %v593
  %v780 = vadd.f32 %v107, %v598
  %v781 = vadd.f32 %v108, %v601
  %v782 = vadd.f32 %v109, %v606
  %v783 = vadd.f32 %v110, %v609
  %v784 = vadd.f32 %v111, %v614
  %v785 = vadd.f32 %v112, %v617
  %v786 = vadd.f32 %v113, %v622
  %v787 = vadd.f32 %v114, %v625
  %v788 = vadd.f32 %v115, %v630
  %v789 = vadd.f32 %v116, %v633
  %v790 = vadd.f32 %v117, %v638
  %v791 = vadd.f32 %v118, %v641
  %v792 = vadd.f32 %v119, %v646
  %v793 = vadd.f32 %v120, %v649
  %v794 = vadd.f32 %v121, %v654
  %v795 = vadd.f32 %v122, %v657
  %v796 = vadd.f32 %v123, %v662
  %v797 = vadd.f32 %v124, %v665
  %v798 = vadd.f32 %v125, %v670
  %v799 = vadd.f32 %v126, %v673
  %v800 = vadd.f32 %v127, %v678
  %v801 = vadd.f32 %v128, %v681
  %v802 = vadd.f32 %v129, %v686
  %v803 = vadd.f32 %v130, %v689
  %v804 = vadd.f32 %v131, %v694
  %v805 = vadd.f32 %v132, %v697
  %v806 = vadd.f32 %v133, %v702
  %v807 = vadd.f32 %v134, %v705
  %v808 = vadd.f32 %v135, %v710
  %v809 = vadd.f32 %v136, %v713
  %v810 = vadd.f32 %v137, %v718
  %v811 = vadd.f32 %v138, %v721
  %v812 = vadd.f32 %v139, %v726
  %v813 = vadd.f32 %v140, %v729
  %v814 = vadd.f32 %v141, %v734
  %v815 = vadd.f32 %v142, %v737
  %v816 = vadd.f32 %v143, %v742
  %v817 = vadd.f32 %v144, %v745
  %v818 = vadd.f32 %v145, %v750
  %v819 = vadd.f32 %v146, %v753
  %820 = vst [vmem:[#allocation2] sm:$0xff] %v756
  %821 = vst [vmem:[#allocation2 + $0x8] sm:$0xff] %v757
  %822 = vst [vmem:[#allocation2 + $0x10] sm:$0xff] %v758
  %823 = vst [vmem:[#allocation2 + $0x18] sm:$0xff] %v759
  %824 = vst [vmem:[#allocation2 + $0x20] sm:$0xff] %v760
  %825 = vst [vmem:[#allocation2 + $0x28] sm:$0xff] %v761
  %826 = vst [vmem:[#allocation2 + $0x30] sm:$0xff] %v762
  %827 = vst [vmem:[#allocation2 + $0x38] sm:$0xff] %v763
  %828 = vst [vmem:[#allocation2 + $0x40] sm:$0xff] %v764
  %829 = vst [vmem:[#allocation2 + $0x48] sm:$0xff] %v765
  %830 = vst [vmem:[#allocation2 + $0x50] sm:$0xff] %v766
  %831 = vst [vmem:[#allocation2 + $0x58] sm:$0xff] %v767
  %832 = vst [vmem:[#allocation2 + $0x60] sm:$0xff] %v768
  %833 = vst [vmem:[#allocation2 + $0x68] sm:$0xff] %v769
  %834 = vst [vmem:[#allocation2 + $0x70] sm:$0xff] %v770
  %835 = vst [vmem:[#allocation2 + $0x78] sm:$0xff] %v771
  %836 = vst [vmem:[#allocation2 + $0x80] sm:$0xff] %v772
  %837 = vst [vmem:[#allocation2 + $0x88] sm:$0xff] %v773
  %838 = vst [vmem:[#allocation2 + $0x90] sm:$0xff] %v774
  %839 = vst [vmem:[#allocation2 + $0x98] sm:$0xff] %v775
  %840 = vst [vmem:[#allocation2 + $0xa0] sm:$0xff] %v776
  %841 = vst [vmem:[#allocation2 + $0xa8] sm:$0xff] %v777
  %842 = vst [vmem:[#allocation2 + $0xb0] sm:$0xff] %v778
  %843 = vst [vmem:[#allocation2 + $0xb8] sm:$0xff] %v779
  %844 = vst [vmem:[#allocation2 + $0xc0] sm:$0xff] %v780
  %845 = vst [vmem:[#allocation2 + $0xc8] sm:$0xff] %v781
  %846 = vst [vmem:[#allocation2 + $0xd0] sm:$0xff] %v782
  %847 = vst [vmem:[#allocation2 + $0xd8] sm:$0xff] %v783
  %848 = vst [vmem:[#allocation2 + $0xe0] sm:$0xff] %v784
  %849 = vst [vmem:[#allocation2 + $0xe8] sm:$0xff] %v785
  %850 = vst [vmem:[#allocation2 + $0xf0] sm:$0xff] %v786
  %851 = vst [vmem:[#allocation2 + $0xf8] sm:$0xff] %v787
  %852 = vst [vmem:[#allocation2 + $0x100] sm:$0xff] %v788
  %853 = vst [vmem:[#allocation2 + $0x108] sm:$0xff] %v789
  %854 = vst [vmem:[#allocation2 + $0x110] sm:$0xff] %v790
  %855 = vst [vmem:[#allocation2 + $0x118] sm:$0xff] %v791
  %856 = vst [vmem:[#allocation2 + $0x120] sm:$0xff] %v792
  %857 = vst [vmem:[#allocation2 + $0x128] sm:$0xff] %v793
  %858 = vst [vmem:[#allocation2 + $0x130] sm:$0xff] %v794
  %859 = vst [vmem:[#allocation2 + $0x138] sm:$0xff] %v795
  %860 = vst [vmem:[#allocation2 + $0x140] sm:$0xff] %v796
  %861 = vst [vmem:[#allocation2 + $0x148] sm:$0xff] %v797
  %862 = vst [vmem:[#allocation2 + $0x150] sm:$0xff] %v798
  %863 = vst [vmem:[#allocation2 + $0x158] sm:$0xff] %v799
  %864 = vst [vmem:[#allocation2 + $0x160] sm:$0xff] %v800
  %865 = vst [vmem:[#allocation2 + $0x168] sm:$0xff] %v801
  %866 = vst [vmem:[#allocation2 + $0x170] sm:$0xff] %v802
  %867 = vst [vmem:[#allocation2 + $0x178] sm:$0xff] %v803
  %868 = vst [vmem:[#allocation2 + $0x180] sm:$0xff] %v804
  %869 = vst [vmem:[#allocation2 + $0x188] sm:$0xff] %v805
  %870 = vst [vmem:[#allocation2 + $0x190] sm:$0xff] %v806
  %871 = vst [vmem:[#allocation2 + $0x198] sm:$0xff] %v807
  %872 = vst [vmem:[#allocation2 + $0x1a0] sm:$0xff] %v808
  %873 = vst [vmem:[#allocation2 + $0x1a8] sm:$0xff] %v809
  %874 = vst [vmem:[#allocation2 + $0x1b0] sm:$0xff] %v810
  %875 = vst [vmem:[#allocation2 + $0x1b8] sm:$0xff] %v811
  %876 = vst [vmem:[#allocation2 + $0x1c0] sm:$0xff] %v812
  %877 = vst [vmem:[#allocation2 + $0x1c8] sm:$0xff] %v813
  %878 = vst [vmem:[#allocation2 + $0x1d0] sm:$0xff] %v814
  %879 = vst [vmem:[#allocation2 + $0x1d8] sm:$0xff] %v815
  %880 = vst [vmem:[#allocation2 + $0x1e0] sm:$0xff] %v816
  %881 = vst [vmem:[#allocation2 + $0x1e8] sm:$0xff] %v817
  %882 = vst [vmem:[#allocation2 + $0x1f0] sm:$0xff] %v818
  %883 = vst [vmem:[#allocation2 + $0x1f8] sm:$0xff] %v819
  // Predicated region
  $region18: #{bottleneck_psp.3} parent=0 // pred_check
    %p884 = pneg %p15
  $region19: #{bottleneck_psp.3} parent=0 // pred_check_branch
    %886 = sbr.rel (%p884) target = $region21
  $region20: #{bottleneck_psp.3} parent=0 // pred_region
    %v887 = vld [vmem:[#allocation2] sm:$0xff]
    %v888 = vld [vmem:[#allocation2 + $0x8] sm:$0xff]
    %v889 = vld [vmem:[#allocation2 + $0x10] sm:$0xff]
    %v890 = vld [vmem:[#allocation2 + $0x18] sm:$0xff]
    %v891 = vld [vmem:[#allocation2 + $0x20] sm:$0xff]
    %v892 = vld [vmem:[#allocation2 + $0x28] sm:$0xff]
    %v893 = vld [vmem:[#allocation2 + $0x30] sm:$0xff]
    %v894 = vld [vmem:[#allocation2 + $0x38] sm:$0xff]
    %v895 = vld [vmem:[#allocation2 + $0x40] sm:$0xff]
    %v896 = vld [vmem:[#allocation2 + $0x48] sm:$0xff]
    %v897 = vld [vmem:[#allocation2 + $0x50] sm:$0xff]
    %v898 = vld [vmem:[#allocation2 + $0x58] sm:$0xff]
    %v899 = vld [vmem:[#allocation2 + $0x60] sm:$0xff]
    %v900 = vld [vmem:[#allocation2 + $0x68] sm:$0xff]
    %v901 = vld [vmem:[#allocation2 + $0x70] sm:$0xff]
    %v902 = vld [vmem:[#allocation2 + $0x78] sm:$0xff]
    %v903 = vld [vmem:[#allocation2 + $0x80] sm:$0xff]
    %v904 = vld [vmem:[#allocation2 + $0x88] sm:$0xff]
    %v905 = vld [vmem:[#allocation2 + $0x90] sm:$0xff]
    %v906 = vld [vmem:[#allocation2 + $0x98] sm:$0xff]
    %v907 = vld [vmem:[#allocation2 + $0xa0] sm:$0xff]
    %v908 = vld [vmem:[#allocation2 + $0xa8] sm:$0xff]
    %v909 = vld [vmem:[#allocation2 + $0xb0] sm:$0xff]
    %v910 = vld [vmem:[#allocation2 + $0xb8] sm:$0xff]
    %v911 = vld [vmem:[#allocation2 + $0xc0] sm:$0xff]
    %v912 = vld [vmem:[#allocation2 + $0xc8] sm:$0xff]
    %v913 = vld [vmem:[#allocation2 + $0xd0] sm:$0xff]
    %v914 = vld [vmem:[#allocation2 + $0xd8] sm:$0xff]
    %v915 = vld [vmem:[#allocation2 + $0xe0] sm:$0xff]
    %v916 = vld [vmem:[#allocation2 + $0xe8] sm:$0xff]
    %v917 = vld [vmem:[#allocation2 + $0xf0] sm:$0xff]
    %v918 = vld [vmem:[#allocation2 + $0xf8] sm:$0xff]
    %v919 = vld [vmem:[#allocation2 + $0x100] sm:$0xff]
    %v920 = vld [vmem:[#allocation2 + $0x108] sm:$0xff]
    %v921 = vld [vmem:[#allocation2 + $0x110] sm:$0xff]
    %v922 = vld [vmem:[#allocation2 + $0x118] sm:$0xff]
    %v923 = vld [vmem:[#allocation2 + $0x120] sm:$0xff]
    %v924 = vld [vmem:[#allocation2 + $0x128] sm:$0xff]
    %v925 = vld [vmem:[#allocation2 + $0x130] sm:$0xff]
    %v926 = vld [vmem:[#allocation2 + $0x138] sm:$0xff]
    %v927 = vld [vmem:[#allocation2 + $0x140] sm:$0xff]
    %v928 = vld [vmem:[#allocation2 + $0x148] sm:$0xff]
    %v929 = vld [vmem:[#allocation2 + $0x150] sm:$0xff]
    %v930 = vld [vmem:[#allocation2 + $0x158] sm:$0xff]
    %v931 = vld [vmem:[#allocation2 + $0x160] sm:$0xff]
    %v932 = vld [vmem:[#allocation2 + $0x168] sm:$0xff]
    %v933 = vld [vmem:[#allocation2 + $0x170] sm:$0xff]
    %v934 = vld [vmem:[#allocation2 + $0x178] sm:$0xff]
    %v935 = vld [vmem:[#allocation2 + $0x180] sm:$0xff]
    %v936 = vld [vmem:[#allocation2 + $0x188] sm:$0xff]
    %v937 = vld [vmem:[#allocation2 + $0x190] sm:$0xff]
    %v938 = vld [vmem:[#allocation2 + $0x198] sm:$0xff]
    %v939 = vld [vmem:[#allocation2 + $0x1a0] sm:$0xff]
    %v940 = vld [vmem:[#allocation2 + $0x1a8] sm:$0xff]
    %v941 = vld [vmem:[#allocation2 + $0x1b0] sm:$0xff]
    %v942 = vld [vmem:[#allocation2 + $0x1b8] sm:$0xff]
    %v943 = vld [vmem:[#allocation2 + $0x1c0] sm:$0xff]
    %v944 = vld [vmem:[#allocation2 + $0x1c8] sm:$0xff]
    %v945 = vld [vmem:[#allocation2 + $0x1d0] sm:$0xff]
    %v946 = vld [vmem:[#allocation2 + $0x1d8] sm:$0xff]
    %v947 = vld [vmem:[#allocation2 + $0x1e0] sm:$0xff]
    %v948 = vld [vmem:[#allocation2 + $0x1e8] sm:$0xff]
    %v949 = vld [vmem:[#allocation2 + $0x1f0] sm:$0xff]
    %v950 = vld [vmem:[#allocation2 + $0x1f8] sm:$0xff]
    %v951 = vld [vmem:[%s2] sm:$0x1]
    %v953 = vlaneseq
    %v954 = vshrl.u32 %v953, 7
    %v955 = vsub.s32 0, %v954
    %v956 = vrot.slane %v951, %v955
    %v958 = vadd.f32 %v887, %v956
    %v959 = vadd.f32 %v888, %v956
    %v960 = vadd.f32 %v889, %v956
    %v961 = vadd.f32 %v890, %v956
    %v962 = vadd.f32 %v891, %v956
    %v963 = vadd.f32 %v892, %v956
    %v964 = vadd.f32 %v893, %v956
    %v965 = vadd.f32 %v894, %v956
    %v966 = vadd.f32 %v895, %v956
    %v967 = vadd.f32 %v896, %v956
    %v968 = vadd.f32 %v897, %v956
    %v969 = vadd.f32 %v898, %v956
    %v970 = vadd.f32 %v899, %v956
    %v971 = vadd.f32 %v900, %v956
    %v972 = vadd.f32 %v901, %v956
    %v973 = vadd.f32 %v902, %v956
    %v974 = vadd.f32 %v903, %v956
    %v975 = vadd.f32 %v904, %v956
    %v976 = vadd.f32 %v905, %v956
    %v977 = vadd.f32 %v906, %v956
    %v978 = vadd.f32 %v907, %v956
    %v979 = vadd.f32 %v908, %v956
    %v980 = vadd.f32 %v909, %v956
    %v981 = vadd.f32 %v910, %v956
    %v982 = vadd.f32 %v911, %v956
    %v983 = vadd.f32 %v912, %v956
    %v984 = vadd.f32 %v913, %v956
    %v985 = vadd.f32 %v914, %v956
    %v986 = vadd.f32 %v915, %v956
    %v987 = vadd.f32 %v916, %v956
    %v988 = vadd.f32 %v917, %v956
    %v989 = vadd.f32 %v918, %v956
    %v990 = vadd.f32 %v919, %v956
    %v991 = vadd.f32 %v920, %v956
    %v992 = vadd.f32 %v921, %v956
    %v993 = vadd.f32 %v922, %v956
    %v994 = vadd.f32 %v923, %v956
    %v995 = vadd.f32 %v924, %v956
    %v996 = vadd.f32 %v925, %v956
    %v997 = vadd.f32 %v926, %v956
    %v998 = vadd.f32 %v927, %v956
    %v999 = vadd.f32 %v928, %v956
    %v1000 = vadd.f32 %v929, %v956
    %v1001 = vadd.f32 %v930, %v956
    %v1002 = vadd.f32 %v931, %v956
    %v1003 = vadd.f32 %v932, %v956
    %v1004 = vadd.f32 %v933, %v956
    %v1005 = vadd.f32 %v934, %v956
    %v1006 = vadd.f32 %v935, %v956
    %v1007 = vadd.f32 %v936, %v956
    %v1008 = vadd.f32 %v937, %v956
    %v1009 = vadd.f32 %v938, %v956
    %v1010 = vadd.f32 %v939, %v956
    %v1011 = vadd.f32 %v940, %v956
    %v1012 = vadd.f32 %v941, %v956
    %v1013 = vadd.f32 %v942, %v956
    %v1014 = vadd.f32 %v943, %v956
    %v1015 = vadd.f32 %v944, %v956
    %v1016 = vadd.f32 %v945, %v956
    %v1017 = vadd.f32 %v946, %v956
    %v1018 = vadd.f32 %v947, %v956
    %v1019 = vadd.f32 %v948, %v956
    %v1020 = vadd.f32 %v949, %v956
    %v1021 = vadd.f32 %v950, %v956
    %v1022 = vmax.f32 %v958, 0.0
    %v1023 = vmax.f32 %v959, 0.0
    %v1024 = vmax.f32 %v960, 0.0
    %v1025 = vmax.f32 %v961, 0.0
    %v1026 = vmax.f32 %v962, 0.0
    %v1027 = vmax.f32 %v963, 0.0
    %v1028 = vmax.f32 %v964, 0.0
    %v1029 = vmax.f32 %v965, 0.0
    %v1030 = vmax.f32 %v966, 0.0
    %v1031 = vmax.f32 %v967, 0.0
    %v1032 = vmax.f32 %v968, 0.0
    %v1033 = vmax.f32 %v969, 0.0
    %v1034 = vmax.f32 %v970, 0.0
    %v1035 = vmax.f32 %v971, 0.0
    %v1036 = vmax.f32 %v972, 0.0
    %v1037 = vmax.f32 %v973, 0.0
    %v1038 = vmax.f32 %v974, 0.0
    %v1039 = vmax.f32 %v975, 0.0
    %v1040 = vmax.f32 %v976, 0.0
    %v1041 = vmax.f32 %v977, 0.0
    %v1042 = vmax.f32 %v978, 0.0
    %v1043 = vmax.f32 %v979, 0.0
    %v1044 = vmax.f32 %v980, 0.0
    %v1045 = vmax.f32 %v981, 0.0
    %v1046 = vmax.f32 %v982, 0.0
    %v1047 = vmax.f32 %v983, 0.0
    %v1048 = vmax.f32 %v984, 0.0
    %v1049 = vmax.f32 %v985, 0.0
    %v1050 = vmax.f32 %v986, 0.0
    %v1051 = vmax.f32 %v987, 0.0
    %v1052 = vmax.f32 %v988, 0.0
    %v1053 = vmax.f32 %v989, 0.0
    %v1054 = vmax.f32 %v990, 0.0
    %v1055 = vmax.f32 %v991, 0.0
    %v1056 = vmax.f32 %v992, 0.0
    %v1057 = vmax.f32 %v993, 0.0
    %v1058 = vmax.f32 %v994, 0.0
    %v1059 = vmax.f32 %v995, 0.0
    %v1060 = vmax.f32 %v996, 0.0
    %v1061 = vmax.f32 %v997, 0.0
    %v1062 = vmax.f32 %v998, 0.0
    %v1063 = vmax.f32 %v999, 0.0
    %v1064 = vmax.f32 %v1000, 0.0
    %v1065 = vmax.f32 %v1001, 0.0
    %v1066 = vmax.f32 %v1002, 0.0
    %v1067 = vmax.f32 %v1003, 0.0
    %v1068 = vmax.f32 %v1004, 0.0
    %v1069 = vmax.f32 %v1005, 0.0
    %v1070 = vmax.f32 %v1006, 0.0
    %v1071 = vmax.f32 %v1007, 0.0
    %v1072 = vmax.f32 %v1008, 0.0
    %v1073 = vmax.f32 %v1009, 0.0
    %v1074 = vmax.f32 %v1010, 0.0
    %v1075 = vmax.f32 %v1011, 0.0
    %v1076 = vmax.f32 %v1012, 0.0
    %v1077 = vmax.f32 %v1013, 0.0
    %v1078 = vmax.f32 %v1014, 0.0
    %v1079 = vmax.f32 %v1015, 0.0
    %v1080 = vmax.f32 %v1016, 0.0
    %v1081 = vmax.f32 %v1017, 0.0
    %v1082 = vmax.f32 %v1018, 0.0
    %v1083 = vmax.f32 %v1019, 0.0
    %v1084 = vmax.f32 %v1020, 0.0
    %v1085 = vmax.f32 %v1021, 0.0
    %v1086 = vpack.c.bf16 %v1023, %v1022
    %v1087 = vpack.c.bf16 %v1025, %v1024
    %v1088 = vpack.c.bf16 %v1027, %v1026
    %v1089 = vpack.c.bf16 %v1029, %v1028
    %v1090 = vpack.c.bf16 %v1031, %v1030
    %v1091 = vpack.c.bf16 %v1033, %v1032
    %v1092 = vpack.c.bf16 %v1035, %v1034
    %v1093 = vpack.c.bf16 %v1037, %v1036
    %v1094 = vpack.c.bf16 %v1039, %v1038
    %v1095 = vpack.c.bf16 %v1041, %v1040
    %v1096 = vpack.c.bf16 %v1043, %v1042
    %v1097 = vpack.c.bf16 %v1045, %v1044
    %v1098 = vpack.c.bf16 %v1047, %v1046
    %v1099 = vpack.c.bf16 %v1049, %v1048
    %v1100 = vpack.c.bf16 %v1051, %v1050
    %v1101 = vpack.c.bf16 %v1053, %v1052
    %v1102 = vpack.c.bf16 %v1055, %v1054
    %v1103 = vpack.c.bf16 %v1057, %v1056
    %v1104 = vpack.c.bf16 %v1059, %v1058
    %v1105 = vpack.c.bf16 %v1061, %v1060
    %v1106 = vpack.c.bf16 %v1063, %v1062
    %v1107 = vpack.c.bf16 %v1065, %v1064
    %v1108 = vpack.c.bf16 %v1067, %v1066
    %v1109 = vpack.c.bf16 %v1069, %v1068
    %v1110 = vpack.c.bf16 %v1071, %v1070
    %v1111 = vpack.c.bf16 %v1073, %v1072
    %v1112 = vpack.c.bf16 %v1075, %v1074
    %v1113 = vpack.c.bf16 %v1077, %v1076
    %v1114 = vpack.c.bf16 %v1079, %v1078
    %v1115 = vpack.c.bf16 %v1081, %v1080
    %v1116 = vpack.c.bf16 %v1083, %v1082
    %v1117 = vpack.c.bf16 %v1085, %v1084
    %v1150 = vunpack.c.l.b16 %v1086
    %v1151 = vunpack.c.h.b16 %v1086
    %v1152 = vunpack.c.l.b16 %v1087
    %v1153 = vunpack.c.h.b16 %v1087
    %v1154 = vunpack.c.l.b16 %v1088
    %v1155 = vunpack.c.h.b16 %v1088
    %v1156 = vunpack.c.l.b16 %v1089
    %v1157 = vunpack.c.h.b16 %v1089
    %v1158 = vunpack.c.l.b16 %v1090
    %v1159 = vunpack.c.h.b16 %v1090
    %v1160 = vunpack.c.l.b16 %v1091
    %v1161 = vunpack.c.h.b16 %v1091
    %v1162 = vunpack.c.l.b16 %v1092
    %v1163 = vunpack.c.h.b16 %v1092
    %v1164 = vunpack.c.l.b16 %v1093
    %v1165 = vunpack.c.h.b16 %v1093
    %v1166 = vunpack.c.l.b16 %v1094
    %v1167 = vunpack.c.h.b16 %v1094
    %v1168 = vunpack.c.l.b16 %v1095
    %v1169 = vunpack.c.h.b16 %v1095
    %v1170 = vunpack.c.l.b16 %v1096
    %v1171 = vunpack.c.h.b16 %v1096
    %v1172 = vunpack.c.l.b16 %v1097
    %v1173 = vunpack.c.h.b16 %v1097
    %v1174 = vunpack.c.l.b16 %v1098
    %v1175 = vunpack.c.h.b16 %v1098
    %v1176 = vunpack.c.l.b16 %v1099
    %v1177 = vunpack.c.h.b16 %v1099
    %v1178 = vunpack.c.l.b16 %v1100
    %v1179 = vunpack.c.h.b16 %v1100
    %v1180 = vunpack.c.l.b16 %v1101
    %v1181 = vunpack.c.h.b16 %v1101
    %v1182 = vunpack.c.l.b16 %v1102
    %v1183 = vunpack.c.h.b16 %v1102
    %v1184 = vunpack.c.l.b16 %v1103
    %v1185 = vunpack.c.h.b16 %v1103
    %v1186 = vunpack.c.l.b16 %v1104
    %v1187 = vunpack.c.h.b16 %v1104
    %v1188 = vunpack.c.l.b16 %v1105
    %v1189 = vunpack.c.h.b16 %v1105
    %v1190 = vunpack.c.l.b16 %v1106
    %v1191 = vunpack.c.h.b16 %v1106
    %v1192 = vunpack.c.l.b16 %v1107
    %v1193 = vunpack.c.h.b16 %v1107
    %v1194 = vunpack.c.l.b16 %v1108
    %v1195 = vunpack.c.h.b16 %v1108
    %v1196 = vunpack.c.l.b16 %v1109
    %v1197 = vunpack.c.h.b16 %v1109
    %v1198 = vunpack.c.l.b16 %v1110
    %v1199 = vunpack.c.h.b16 %v1110
    %v1200 = vunpack.c.l.b16 %v1111
    %v1201 = vunpack.c.h.b16 %v1111
    %v1202 = vunpack.c.l.b16 %v1112
    %v1203 = vunpack.c.h.b16 %v1112
    %v1204 = vunpack.c.l.b16 %v1113
    %v1205 = vunpack.c.h.b16 %v1113
    %v1206 = vunpack.c.l.b16 %v1114
    %v1207 = vunpack.c.h.b16 %v1114
    %v1208 = vunpack.c.l.b16 %v1115
    %v1209 = vunpack.c.h.b16 %v1115
    %v1210 = vunpack.c.l.b16 %v1116
    %v1211 = vunpack.c.h.b16 %v1116
    %v1212 = vunpack.c.l.b16 %v1117
    %v1213 = vunpack.c.h.b16 %v1117
    %v1214 = vpack.c.b16 %v1150, %v1150
    %v1215 = vpack.c.b16 %v1151, %v1151
    %v1216 = vpack.c.b16 %v1152, %v1152
    %v1217 = vpack.c.b16 %v1153, %v1153
    %v1218 = vpack.c.b16 %v1154, %v1154
    %v1219 = vpack.c.b16 %v1155, %v1155
    %v1220 = vpack.c.b16 %v1156, %v1156
    %v1221 = vpack.c.b16 %v1157, %v1157
    %v1222 = vpack.c.b16 %v1158, %v1158
    %v1223 = vpack.c.b16 %v1159, %v1159
    %v1224 = vpack.c.b16 %v1160, %v1160
    %v1225 = vpack.c.b16 %v1161, %v1161
    %v1226 = vpack.c.b16 %v1162, %v1162
    %v1227 = vpack.c.b16 %v1163, %v1163
    %v1228 = vpack.c.b16 %v1164, %v1164
    %v1229 = vpack.c.b16 %v1165, %v1165
    %v1230 = vpack.c.b16 %v1166, %v1166
    %v1231 = vpack.c.b16 %v1167, %v1167
    %v1232 = vpack.c.b16 %v1168, %v1168
    %v1233 = vpack.c.b16 %v1169, %v1169
    %v1234 = vpack.c.b16 %v1170, %v1170
    %v1235 = vpack.c.b16 %v1171, %v1171
    %v1236 = vpack.c.b16 %v1172, %v1172
    %v1237 = vpack.c.b16 %v1173, %v1173
    %v1238 = vpack.c.b16 %v1174, %v1174
    %v1239 = vpack.c.b16 %v1175, %v1175
    %v1240 = vpack.c.b16 %v1176, %v1176
    %v1241 = vpack.c.b16 %v1177, %v1177
    %v1242 = vpack.c.b16 %v1178, %v1178
    %v1243 = vpack.c.b16 %v1179, %v1179
    %v1244 = vpack.c.b16 %v1180, %v1180
    %v1245 = vpack.c.b16 %v1181, %v1181
    %v1246 = vpack.c.b16 %v1182, %v1182
    %v1247 = vpack.c.b16 %v1183, %v1183
    %v1248 = vpack.c.b16 %v1184, %v1184
    %v1249 = vpack.c.b16 %v1185, %v1185
    %v1250 = vpack.c.b16 %v1186, %v1186
    %v1251 = vpack.c.b16 %v1187, %v1187
    %v1252 = vpack.c.b16 %v1188, %v1188
    %v1253 = vpack.c.b16 %v1189, %v1189
    %v1254 = vpack.c.b16 %v1190, %v1190
    %v1255 = vpack.c.b16 %v1191, %v1191
    %v1256 = vpack.c.b16 %v1192, %v1192
    %v1257 = vpack.c.b16 %v1193, %v1193
    %v1258 = vpack.c.b16 %v1194, %v1194
    %v1259 = vpack.c.b16 %v1195, %v1195
    %v1260 = vpack.c.b16 %v1196, %v1196
    %v1261 = vpack.c.b16 %v1197, %v1197
    %v1262 = vpack.c.b16 %v1198, %v1198
    %v1263 = vpack.c.b16 %v1199, %v1199
    %v1264 = vpack.c.b16 %v1200, %v1200
    %v1265 = vpack.c.b16 %v1201, %v1201
    %v1266 = vpack.c.b16 %v1202, %v1202
    %v1267 = vpack.c.b16 %v1203, %v1203
    %v1268 = vpack.c.b16 %v1204, %v1204
    %v1269 = vpack.c.b16 %v1205, %v1205
    %v1270 = vpack.c.b16 %v1206, %v1206
    %v1271 = vpack.c.b16 %v1207, %v1207
    %v1272 = vpack.c.b16 %v1208, %v1208
    %v1273 = vpack.c.b16 %v1209, %v1209
    %v1274 = vpack.c.b16 %v1210, %v1210
    %v1275 = vpack.c.b16 %v1211, %v1211
    %v1276 = vpack.c.b16 %v1212, %v1212
    %v1277 = vpack.c.b16 %v1213, %v1213
    %1342 = vst [vmem:[%s3] sm:$0xf] %v1214
    %1343 = vst [vmem:[%s3 + $0x4] sm:$0xf] %v1215
    %1344 = vst [vmem:[%s3 + $0x8] sm:$0xf] %v1216
    %1345 = vst [vmem:[%s3 + $0xc] sm:$0xf] %v1217
    %1346 = vst [vmem:[%s3 + $0x10] sm:$0xf] %v1218
    %1347 = vst [vmem:[%s3 + $0x14] sm:$0xf] %v1219
    %1348 = vst [vmem:[%s3 + $0x18] sm:$0xf] %v1220
    %1349 = vst [vmem:[%s3 + $0x1c] sm:$0xf] %v1221
    %1350 = vst [vmem:[%s3 + $0x20] sm:$0xf] %v1222
    %1351 = vst [vmem:[%s3 + $0x24] sm:$0xf] %v1223
    %1352 = vst [vmem:[%s3 + $0x28] sm:$0xf] %v1224
    %1353 = vst [vmem:[%s3 + $0x2c] sm:$0xf] %v1225
    %1354 = vst [vmem:[%s3 + $0x30] sm:$0xf] %v1226
    %1355 = vst [vmem:[%s3 + $0x34] sm:$0xf] %v1227
    %1356 = vst [vmem:[%s3 + $0x38] sm:$0xf] %v1228
    %1357 = vst [vmem:[%s3 + $0x3c] sm:$0xf] %v1229
    %1358 = vst [vmem:[%s3 + $0x40] sm:$0xf] %v1230
    %1359 = vst [vmem:[%s3 + $0x44] sm:$0xf] %v1231
    %1360 = vst [vmem:[%s3 + $0x48] sm:$0xf] %v1232
    %1361 = vst [vmem:[%s3 + $0x4c] sm:$0xf] %v1233
    %1362 = vst [vmem:[%s3 + $0x50] sm:$0xf] %v1234
    %1363 = vst [vmem:[%s3 + $0x54] sm:$0xf] %v1235
    %1364 = vst [vmem:[%s3 + $0x58] sm:$0xf] %v1236
    %1365 = vst [vmem:[%s3 + $0x5c] sm:$0xf] %v1237
    %1366 = vst [vmem:[%s3 + $0x60] sm:$0xf] %v1238
    %1367 = vst [vmem:[%s3 + $0x64] sm:$0xf] %v1239
    %1368 = vst [vmem:[%s3 + $0x68] sm:$0xf] %v1240
    %1369 = vst [vmem:[%s3 + $0x6c] sm:$0xf] %v1241
    %1370 = vst [vmem:[%s3 + $0x70] sm:$0xf] %v1242
    %1371 = vst [vmem:[%s3 + $0x74] sm:$0xf] %v1243
    %1372 = vst [vmem:[%s3 + $0x78] sm:$0xf] %v1244
    %1373 = vst [vmem:[%s3 + $0x7c] sm:$0xf] %v1245
    %1374 = vst [vmem:[%s3 + $0x80] sm:$0xf] %v1246
    %1375 = vst [vmem:[%s3 + $0x84] sm:$0xf] %v1247
    %1376 = vst [vmem:[%s3 + $0x88] sm:$0xf] %v1248
    %1377 = vst [vmem:[%s3 + $0x8c] sm:$0xf] %v1249
    %1378 = vst [vmem:[%s3 + $0x90] sm:$0xf] %v1250
    %1379 = vst [vmem:[%s3 + $0x94] sm:$0xf] %v1251
    %1380 = vst [vmem:[%s3 + $0x98] sm:$0xf] %v1252
    %1381 = vst [vmem:[%s3 + $0x9c] sm:$0xf] %v1253
    %1382 = vst [vmem:[%s3 + $0xa0] sm:$0xf] %v1254
    %1383 = vst [vmem:[%s3 + $0xa4] sm:$0xf] %v1255
    %1384 = vst [vmem:[%s3 + $0xa8] sm:$0xf] %v1256
    %1385 = vst [vmem:[%s3 + $0xac] sm:$0xf] %v1257
    %1386 = vst [vmem:[%s3 + $0xb0] sm:$0xf] %v1258
    %1387 = vst [vmem:[%s3 + $0xb4] sm:$0xf] %v1259
    %1388 = vst [vmem:[%s3 + $0xb8] sm:$0xf] %v1260
    %1389 = vst [vmem:[%s3 + $0xbc] sm:$0xf] %v1261
    %1390 = vst [vmem:[%s3 + $0xc0] sm:$0xf] %v1262
    %1391 = vst [vmem:[%s3 + $0xc4] sm:$0xf] %v1263
    %1392 = vst [vmem:[%s3 + $0xc8] sm:$0xf] %v1264
    %1393 = vst [vmem:[%s3 + $0xcc] sm:$0xf] %v1265
    %1394 = vst [vmem:[%s3 + $0xd0] sm:$0xf] %v1266
    %1395 = vst [vmem:[%s3 + $0xd4] sm:$0xf] %v1267
    %1396 = vst [vmem:[%s3 + $0xd8] sm:$0xf] %v1268
    %1397 = vst [vmem:[%s3 + $0xdc] sm:$0xf] %v1269
    %1398 = vst [vmem:[%s3 + $0xe0] sm:$0xf] %v1270
    %1399 = vst [vmem:[%s3 + $0xe4] sm:$0xf] %v1271
    %1400 = vst [vmem:[%s3 + $0xe8] sm:$0xf] %v1272
    %1401 = vst [vmem:[%s3 + $0xec] sm:$0xf] %v1273
    %1402 = vst [vmem:[%s3 + $0xf0] sm:$0xf] %v1274
    %1403 = vst [vmem:[%s3 + $0xf4] sm:$0xf] %v1275
    %1404 = vst [vmem:[%s3 + $0xf8] sm:$0xf] %v1276
    %1405 = vst [vmem:[%s3 + $0xfc] sm:$0xf] %v1277
  $region21: #{bottleneck_psp.3} parent=0 // pred_fallthru
    _
  // Predicated region
  $region22: #{bottleneck_psp.3} parent=0 // pred_check
    _
  $region23: #{bottleneck_psp.3} parent=0 // pred_check_branch
    %1407 = sbr.rel (0) target = $region25
  $region24: #{bottleneck_psp.3} parent=0 // pred_region
    _
  $region25: #{bottleneck_psp.3} parent=0 // pred_fallthru
    _
  // Predicated region
  $region26: #{bottleneck_psp.3} parent=0 // pred_check
    _
  $region27: #{bottleneck_psp.3} parent=0 // pred_check_branch
    %1409 = sbr.rel (0) target = $region29
  $region28: #{bottleneck_psp.3} parent=0 // pred_region
    _
  $region29: #{bottleneck_psp.3} parent=0 // pred_fallthru
    _

// kernel: bottleneck_psp.4
$region0: #{bottleneck_psp.4}
  #allocation0 [shape = 'u32[]', space=smem, size = 0x4, offset = 0x4, fixed_abs, tag = 'smem constant byte address 0x4 - core index']
  #allocation1 [shape = 'u32[144,128]{1,0:T(1,128)}', space=vmem, size = 0x12000, scoped, tag = 'internal scratch']
  %s0 = inlined_call_operand.vmem [shape: bf16[4,2,9,9,128], index: 0, kind: input, shape index: {}]
  %s1 = inlined_call_operand.vmem [shape: bf16[9,128,128], index: 1, kind: input, shape index: {}]
  %s2 = inlined_call_operand.vmem [shape: f32[1,128], index: 2, kind: input, shape index: {}]
  %s3 = inlined_call_operand.vmem [shape: bf16[2,8,8,128], index: 3, kind: output, shape index: {}]
  %s4 = sld [smem:[#allocation0]]
  $region86: #{bottleneck_psp.4} parent=0
    _
  %s6 = ssub.s32 1, %s4
  %s7 = scalar_select 0, %s6, %s4
  $region1: #{bottleneck_psp.4} parent=0
    #allocation2 [shape = 'u8[294912]{0}', space=vmem, size = 0x48000, scoped, tag = 'input window, operand 0']
    loop: start=0, step=1, limit=4
    $region2: #{bottleneck_psp.4} parent=1 // loop_pre_header
      _
    $region3: #{bottleneck_psp.4} parent=1 // loop_header
      %s9 = sphi 0, %s13
      %p10 = scmp.ge.s32.totalorder %s9, 4
      %s16 = sphi 0, %s35
      %s17 = sphi 0, %s31
      %s18 = sphi 0, %s27
      %s19 = sphi 0, %s16
      %s20 = sphi 0, %s17
      %s21 = sphi 0, %s18
      %s22 = sphi 0, %s19
      %s23 = sphi 0, %s20
      %s24 = sphi 0, %s21
      %s38 = sphi 0, %s40
      %s41 = sphi 0, %s38
      %s42 = sphi 0, %s41
      %s58 = sphi 0, %s42
      %s64 = sphi 0, %s66
      %s67 = sphi 0, %s64
      %s68 = sphi 0, %s67
      %s84 = sphi 0, %s68
      %s90 = sphi 0, %s92
      %s93 = sphi 0, %s90
      %s94 = sphi 0, %s93
      %s110 = sphi 0, %s94
      %s120 = sphi 0, %s122
      %s123 = sphi 0, %s120
      %s124 = sphi 0, %s123
      %s140 = sphi 0, %s124
    $region4: #{bottleneck_psp.4} parent=1 // loop_header_branch
      %12 = sbr.rel (%p10) target = $region8
    $region5: #{bottleneck_psp.4} parent=1 // loop_body
      %s14 = ssub.s32 %s9, 1
      %s15 = ssub.s32 %s9, 2
      %s25 = sadd.s32 1, %s18
      %p26 = scmp.ge.s32.totalorder %s25, 1
      %s27 = scalar_select %p26, 0, %s25
      %s28 = sadd.s32 1, %s17
      %s29 = scalar_select %p26, %s28, %s17
      %p30 = scmp.ge.s32.totalorder %s29, 1
      %s31 = scalar_select %p30, 0, %s29
      %s32 = sadd.s32 1, %s16
      %s33 = scalar_select %p30, %s32, %s16
      %p34 = scmp.ge.s32.totalorder %s33, 2
      %s35 = scalar_select %p34, 0, %s33
      %s36 = ssub.s32 %s16, %s35
      %p37 = scmp.eq.s32.totalorder %s36, 0
      %s39 = sadd.s32 %s38, 1
      %s40 = scalar_select %p37, %s38, %s39
      %p43 = pneg %p37
      %p44 = scmp.eq.s32.totalorder %s9, 1
      %p45 = por %p43, %p44
      %p46 = scmp.ne.s32.totalorder %s38, %s41
      %p47 = scmp.eq.s32.totalorder %s9, 0
      %p48 = por %p46, %p47
      %p49 = scmp.ne.s32.totalorder %s38, %s41
      %p50 = scmp.eq.s32.totalorder %s14, 1
      %p51 = por %p49, %p50
      %p52 = scmp.ne.s32.totalorder %s41, %s42
      %p53 = scmp.eq.s32.totalorder %s14, 0
      %p54 = por %p52, %p53
      %p55 = scmp.ne.s32.totalorder %s41, %s42
      %p56 = scmp.eq.s32.totalorder %s15, 1
      %p57 = por %p55, %p56
      %p59 = scmp.ne.s32.totalorder %s42, %s58
      %p60 = scmp.eq.s32.totalorder %s15, 0
      %p61 = por %p59, %p60
      %s62 = ssub.s32 %s17, %s31
      %p63 = scmp.eq.s32.totalorder %s62, 0
      %s65 = sadd.s32 %s64, 1
      %s66 = scalar_select %p63, %s64, %s65
      %p69 = pneg %p63
      %p70 = scmp.eq.s32.totalorder %s9, 1
      %p71 = por %p69, %p70
      %p72 = scmp.ne.s32.totalorder %s64, %s67
      %p73 = scmp.eq.s32.totalorder %s9, 0
      %p74 = por %p72, %p73
      %p75 = scmp.ne.s32.totalorder %s64, %s67
      %p76 = scmp.eq.s32.totalorder %s14, 1
      %p77 = por %p75, %p76
      %p78 = scmp.ne.s32.totalorder %s67, %s68
      %p79 = scmp.eq.s32.totalorder %s14, 0
      %p80 = por %p78, %p79
      %p81 = scmp.ne.s32.totalorder %s67, %s68
      %p82 = scmp.eq.s32.totalorder %s15, 1
      %p83 = por %p81, %p82
      %p85 = scmp.ne.s32.totalorder %s68, %s84
      %p86 = scmp.eq.s32.totalorder %s15, 0
      %p87 = por %p85, %p86
      %s88 = ssub.s32 %s17, %s31
      %p89 = scmp.eq.s32.totalorder %s88, 0
      %s91 = sadd.s32 %s90, 1
      %s92 = scalar_select %p89, %s90, %s91
      %p95 = pneg %p89
      %p96 = scmp.eq.s32.totalorder %s9, 1
      %p97 = por %p95, %p96
      %p98 = scmp.ne.s32.totalorder %s90, %s93
      %p99 = scmp.eq.s32.totalorder %s9, 0
      %p100 = por %p98, %p99
      %p101 = scmp.ne.s32.totalorder %s90, %s93
      %p102 = scmp.eq.s32.totalorder %s14, 1
      %p103 = por %p101, %p102
      %p104 = scmp.ne.s32.totalorder %s93, %s94
      %p105 = scmp.eq.s32.totalorder %s14, 0
      %p106 = por %p104, %p105
      %p107 = scmp.ne.s32.totalorder %s93, %s94
      %p108 = scmp.eq.s32.totalorder %s15, 1
      %p109 = por %p107, %p108
      %p111 = scmp.ne.s32.totalorder %s94, %s110
      %p112 = scmp.eq.s32.totalorder %s15, 0
      %p113 = por %p111, %p112
      %s114 = ssub.s32 %s16, %s35
      %s115 = ssub.s32 %s18, %s27
      %s116 = sor.u32 %s114, %s115
      %s117 = ssub.s32 %s17, %s31
      %s118 = sor.u32 %s116, %s117
      %p119 = scmp.eq.s32.totalorder %s118, 0
      %s121 = sadd.s32 %s120, 1
      %s122 = scalar_select %p119, %s120, %s121
      %p125 = pneg %p119
      %p126 = scmp.eq.s32.totalorder %s9, 1
      %p127 = por %p125, %p126
      %p128 = scmp.ne.s32.totalorder %s120, %s123
      %p129 = scmp.eq.s32.totalorder %s9, 0
      %p130 = por %p128, %p129
      %p131 = scmp.ne.s32.totalorder %s120, %s123
      %p132 = scmp.eq.s32.totalorder %s14, 1
      %p133 = por %p131, %p132
      %p134 = scmp.ne.s32.totalorder %s123, %s124
      %p135 = scmp.eq.s32.totalorder %s14, 0
      %p136 = por %p134, %p135
      %p137 = scmp.ne.s32.totalorder %s123, %s124
      %p138 = scmp.eq.s32.totalorder %s15, 1
      %p139 = por %p137, %p138
      %p141 = scmp.ne.s32.totalorder %s124, %s140
      %p142 = scmp.eq.s32.totalorder %s15, 0
      %p143 = por %p141, %p142
      %p144 = scmp.le.s32.totalorder 1, %s9
      %p145 = scmp.lt.s32.totalorder %s9, 3
      %p146 = pnand %p144, %p145
      %p147 = pneg %p146
      // Predicated region
      $region9: #{bottleneck_psp.4} parent=5 // pred_check
        _
      $region10: #{bottleneck_psp.4} parent=5 // pred_check_branch
        %149 = sbr.rel (%p146) target = $region12
      $region11: #{bottleneck_psp.4} parent=5 // pred_region
        %s150 = ssub.s32 %s9, 1
        // Predicated region
        $region13: #{bottleneck_psp.4} parent=11 // pred_check
          %p151 = pneg %p80
        $region14: #{bottleneck_psp.4} parent=11 // pred_check_branch
          %153 = sbr.rel (%p151) target = $region16
        $region15: #{bottleneck_psp.4} parent=11 // pred_region
          %p154 = scmp.lt.s32.totalorder %s20, 0
          %s155 = scalar_select %p154, %s20, 0
          %s156 = smul.addr %s155, 4
          %s157 = scalar_lea.vmem %s1, %s156
        $region16: #{bottleneck_psp.4} parent=11 // pred_fallthru
          _
        // Predicated region
        $region17: #{bottleneck_psp.4} parent=11 // pred_check
          %p158 = pneg %p106
        $region18: #{bottleneck_psp.4} parent=11 // pred_check_branch
          %160 = sbr.rel (%p158) target = $region20
        $region19: #{bottleneck_psp.4} parent=11 // pred_region
          %p161 = scmp.lt.s32.totalorder %s20, 0
          %s162 = scalar_select %p161, %s20, 0
          %s163 = scalar_lea.vmem %s2, %s162
        $region20: #{bottleneck_psp.4} parent=11 // pred_fallthru
          _
      $region12: #{bottleneck_psp.4} parent=5 // pred_fallthru
        _
      %p164 = scmp.lt.s32.totalorder %s9, 2
      // Predicated region
      $region21: #{bottleneck_psp.4} parent=5 // pred_check
        %p165 = pneg %p164
      $region22: #{bottleneck_psp.4} parent=5 // pred_check_branch
        %167 = sbr.rel (%p165) target = $region24
      $region23: #{bottleneck_psp.4} parent=5 // pred_region
        // Predicated region
        $region25: #{bottleneck_psp.4} parent=23 // pred_check
          %p168 = pneg %p48
        $region26: #{bottleneck_psp.4} parent=23 // pred_check_branch
          %170 = sbr.rel (%p168) target = $region28
        $region27: #{bottleneck_psp.4} parent=23 // pred_region
          %s171 = sand.u32 %s38, 1
          %s172 = sand.u32 %s38, 1
          %s173 = smul.addr %s172, 288
          %s174 = scalar_lea.vmem [#allocation2], %s173
          %s175 = smul.addr %s16, 18
          %s176 = smul.addr %s175, 4
          %s177 = scalar_lea.vmem %s0, %s176
          // Predicated region
          $region29: #{bottleneck_psp.4} parent=27 // pred_check
            _
          $region30: #{bottleneck_psp.4} parent=27 // pred_check_branch
            %179 = sbr.rel (0) target = $region32
          $region31: #{bottleneck_psp.4} parent=27 // pred_region
            // Predicated region
            $region33: #{bottleneck_psp.4} parent=31 // pred_check
              _
            $region34: #{bottleneck_psp.4} parent=31 // pred_check_branch
              %181 = sbr.rel target = $region36
            $region35: #{bottleneck_psp.4} parent=31 // pred_region
              // Predicated region
              $region48: #{bottleneck_psp.4} parent=35 // pred_check
                _
              $region49: #{bottleneck_psp.4} parent=35 // pred_check_branch
                %339 = sbr.rel (0) target = $region51
              $region50: #{bottleneck_psp.4} parent=35 // pred_region
                loop: start=0, step=1, limit=1
                $region52: #{bottleneck_psp.4} parent=50 // loop_pre_header
                  _
                $region53: #{bottleneck_psp.4} parent=50 // loop_header
                  %s341 = sphi 0, %s345
                  %p342 = scmp.ge.s32.totalorder %s341, 1
                  %s346 = sphi %s177, %s177
                  %s347 = sphi %s174, %s174
                $region54: #{bottleneck_psp.4} parent=50 // loop_header_branch
                  %344 = sbr.rel (%p342) target = $region58
                $region55: #{bottleneck_psp.4} parent=50 // loop_body
                  _
                $region56: #{bottleneck_psp.4} parent=50 // loop_footer
                  %s345 = sadd.s32 1, %s341
                $region57: #{bottleneck_psp.4} parent=50 // loop_footer_branch
                  %340 = sbr.rel target = $region53
                $region58: #{bottleneck_psp.4} parent=50 // loop_exit
                  _
                %s349 = ssub.s32 16, 1
                loop: start=0, step=1, limit=1
                $region59: #{bottleneck_psp.4} parent=50 // loop_pre_header
                  _
                $region60: #{bottleneck_psp.4} parent=50 // loop_header
                  %s351 = sphi 0, %s355
                  %p352 = scmp.ge.s32.totalorder %s351, 1
                  %s356 = sphi %s177, %s177
                  %s357 = sphi %s174, %s174
                $region61: #{bottleneck_psp.4} parent=50 // loop_header_branch
                  %354 = sbr.rel (%p352) target = $region65
                $region62: #{bottleneck_psp.4} parent=50 // loop_body
                  %v358 = vld [vmem:[%s356] sm:%s349]
                  %359 = vst [vmem:[%s357] sm:%s349] %v358
                  %v360 = vld [vmem:[%s356 + $0x4] sm:%s349]
                  %361 = vst [vmem:[%s357 + $0x4] sm:%s349] %v360
                  %v362 = vld [vmem:[%s356 + $0x8] sm:%s349]
                  %363 = vst [vmem:[%s357 + $0x8] sm:%s349] %v362
                  %v364 = vld [vmem:[%s356 + $0xc] sm:%s349]
                  %365 = vst [vmem:[%s357 + $0xc] sm:%s349] %v364
                  %v366 = vld [vmem:[%s356 + $0x10] sm:%s349]
                  %367 = vst [vmem:[%s357 + $0x10] sm:%s349] %v366
                  %v368 = vld [vmem:[%s356 + $0x14] sm:%s349]
                  %369 = vst [vmem:[%s357 + $0x14] sm:%s349] %v368
                  %v370 = vld [vmem:[%s356 + $0x18] sm:%s349]
                  %371 = vst [vmem:[%s357 + $0x18] sm:%s349] %v370
                  %v372 = vld [vmem:[%s356 + $0x1c] sm:%s349]
                  %373 = vst [vmem:[%s357 + $0x1c] sm:%s349] %v372
                  %v374 = vld [vmem:[%s356 + $0x20] sm:%s349]
                  %375 = vst [vmem:[%s357 + $0x20] sm:%s349] %v374
                  %v376 = vld [vmem:[%s356 + $0x24] sm:%s349]
                  %377 = vst [vmem:[%s357 + $0x24] sm:%s349] %v376
                  %v378 = vld [vmem:[%s356 + $0x28] sm:%s349]
                  %379 = vst [vmem:[%s357 + $0x28] sm:%s349] %v378
                  %v380 = vld [vmem:[%s356 + $0x2c] sm:%s349]
                  %381 = vst [vmem:[%s357 + $0x2c] sm:%s349] %v380
                  %v382 = vld [vmem:[%s356 + $0x30] sm:%s349]
                  %383 = vst [vmem:[%s357 + $0x30] sm:%s349] %v382
                  %v384 = vld [vmem:[%s356 + $0x34] sm:%s349]
                  %385 = vst [vmem:[%s357 + $0x34] sm:%s349] %v384
                  %v386 = vld [vmem:[%s356 + $0x38] sm:%s349]
                  %387 = vst [vmem:[%s357 + $0x38] sm:%s349] %v386
                  %v388 = vld [vmem:[%s356 + $0x3c] sm:%s349]
                  %389 = vst [vmem:[%s357 + $0x3c] sm:%s349] %v388
                  %v390 = vld [vmem:[%s356 + $0x40] sm:%s349]
                  %391 = vst [vmem:[%s357 + $0x40] sm:%s349] %v390
                  %v392 = vld [vmem:[%s356 + $0x44] sm:%s349]
                  %393 = vst [vmem:[%s357 + $0x44] sm:%s349] %v392
                  %v394 = vld [vmem:[%s356 + $0x90] sm:%s349]
                  %395 = vst [vmem:[%s357 + $0x48] sm:%s349] %v394
                  %v396 = vld [vmem:[%s356 + $0x94] sm:%s349]
                  %397 = vst [vmem:[%s357 + $0x4c] sm:%s349] %v396
                  %v398 = vld [vmem:[%s356 + $0x98] sm:%s349]
                  %399 = vst [vmem:[%s357 + $0x50] sm:%s349] %v398
                  %v400 = vld [vmem:[%s356 + $0x9c] sm:%s349]
                  %401 = vst [vmem:[%s357 + $0x54] sm:%s349] %v400
                  %v402 = vld [vmem:[%s356 + $0xa0] sm:%s349]
                  %403 = vst [vmem:[%s357 + $0x58] sm:%s349] %v402
                  %v404 = vld [vmem:[%s356 + $0xa4] sm:%s349]
                  %405 = vst [vmem:[%s357 + $0x5c] sm:%s349] %v404
                  %v406 = vld [vmem:[%s356 + $0xa8] sm:%s349]
                  %407 = vst [vmem:[%s357 + $0x60] sm:%s349] %v406
                  %v408 = vld [vmem:[%s356 + $0xac] sm:%s349]
                  %409 = vst [vmem:[%s357 + $0x64] sm:%s349] %v408
                  %v410 = vld [vmem:[%s356 + $0xb0] sm:%s349]
                  %411 = vst [vmem:[%s357 + $0x68] sm:%s349] %v410
                  %v412 = vld [vmem:[%s356 + $0xb4] sm:%s349]
                  %413 = vst [vmem:[%s357 + $0x6c] sm:%s349] %v412
                  %v414 = vld [vmem:[%s356 + $0xb8] sm:%s349]
                  %415 = vst [vmem:[%s357 + $0x70] sm:%s349] %v414
                  %v416 = vld [vmem:[%s356 + $0xbc] sm:%s349]
                  %417 = vst [vmem:[%s357 + $0x74] sm:%s349] %v416
                  %v418 = vld [vmem:[%s356 + $0xc0] sm:%s349]
                  %419 = vst [vmem:[%s357 + $0x78] sm:%s349] %v418
                  %v420 = vld [vmem:[%s356 + $0xc4] sm:%s349]
                  %421 = vst [vmem:[%s357 + $0x7c] sm:%s349] %v420
                  %v422 = vld [vmem:[%s356 + $0xc8] sm:%s349]
                  %423 = vst [vmem:[%s357 + $0x80] sm:%s349] %v422
                  %v424 = vld [vmem:[%s356 + $0xcc] sm:%s349]
                  %425 = vst [vmem:[%s357 + $0x84] sm:%s349] %v424
                  %v426 = vld [vmem:[%s356 + $0xd0] sm:%s349]
                  %427 = vst [vmem:[%s357 + $0x88] sm:%s349] %v426
                  %v428 = vld [vmem:[%s356 + $0xd4] sm:%s349]
                  %429 = vst [vmem:[%s357 + $0x8c] sm:%s349] %v428
                  %v430 = vld [vmem:[%s356 + $0x120] sm:%s349]
                  %431 = vst [vmem:[%s357 + $0x90] sm:%s349] %v430
                  %v432 = vld [vmem:[%s356 + $0x124] sm:%s349]
                  %433 = vst [vmem:[%s357 + $0x94] sm:%s349] %v432
                  %v434 = vld [vmem:[%s356 + $0x128] sm:%s349]
                  %435 = vst [vmem:[%s357 + $0x98] sm:%s349] %v434
                  %v436 = vld [vmem:[%s356 + $0x12c] sm:%s349]
                  %437 = vst [vmem:[%s357 + $0x9c] sm:%s349] %v436
                  %v438 = vld [vmem:[%s356 + $0x130] sm:%s349]
                  %439 = vst [vmem:[%s357 + $0xa0] sm:%s349] %v438
                  %v440 = vld [vmem:[%s356 + $0x134] sm:%s349]
                  %441 = vst [vmem:[%s357 + $0xa4] sm:%s349] %v440
                  %v442 = vld [vmem:[%s356 + $0x138] sm:%s349]
                  %443 = vst [vmem:[%s357 + $0xa8] sm:%s349] %v442
                  %v444 = vld [vmem:[%s356 + $0x13c] sm:%s349]
                  %445 = vst [vmem:[%s357 + $0xac] sm:%s349] %v444
                  %v446 = vld [vmem:[%s356 + $0x140] sm:%s349]
                  %447 = vst [vmem:[%s357 + $0xb0] sm:%s349] %v446
                  %v448 = vld [vmem:[%s356 + $0x144] sm:%s349]
                  %449 = vst [vmem:[%s357 + $0xb4] sm:%s349] %v448
                  %v450 = vld [vmem:[%s356 + $0x148] sm:%s349]
                  %451 = vst [vmem:[%s357 + $0xb8] sm:%s349] %v450
                  %v452 = vld [vmem:[%s356 + $0x14c] sm:%s349]
                  %453 = vst [vmem:[%s357 + $0xbc] sm:%s349] %v452
                  %v454 = vld [vmem:[%s356 + $0x150] sm:%s349]
                  %455 = vst [vmem:[%s357 + $0xc0] sm:%s349] %v454
                  %v456 = vld [vmem:[%s356 + $0x154] sm:%s349]
                  %457 = vst [vmem:[%s357 + $0xc4] sm:%s349] %v456
                  %v458 = vld [vmem:[%s356 + $0x158] sm:%s349]
                  %459 = vst [vmem:[%s357 + $0xc8] sm:%s349] %v458
                  %v460 = vld [vmem:[%s356 + $0x15c] sm:%s349]
                  %461 = vst [vmem:[%s357 + $0xcc] sm:%s349] %v460
                  %v462 = vld [vmem:[%s356 + $0x160] sm:%s349]
                  %463 = vst [vmem:[%s357 + $0xd0] sm:%s349] %v462
                  %v464 = vld [vmem:[%s356 + $0x164] sm:%s349]
                  %465 = vst [vmem:[%s357 + $0xd4] sm:%s349] %v464
                  %v466 = vld [vmem:[%s356 + $0x1b0] sm:%s349]
                  %467 = vst [vmem:[%s357 + $0xd8] sm:%s349] %v466
                  %v468 = vld [vmem:[%s356 + $0x1b4] sm:%s349]
                  %469 = vst [vmem:[%s357 + $0xdc] sm:%s349] %v468
                  %v470 = vld [vmem:[%s356 + $0x1b8] sm:%s349]
                  %471 = vst [vmem:[%s357 + $0xe0] sm:%s349] %v470
                  %v472 = vld [vmem:[%s356 + $0x1bc] sm:%s349]
                  %473 = vst [vmem:[%s357 + $0xe4] sm:%s349] %v472
                  %v474 = vld [vmem:[%s356 + $0x1c0] sm:%s349]
                  %475 = vst [vmem:[%s357 + $0xe8] sm:%s349] %v474
                  %v476 = vld [vmem:[%s356 + $0x1c4] sm:%s349]
                  %477 = vst [vmem:[%s357 + $0xec] sm:%s349] %v476
                  %v478 = vld [vmem:[%s356 + $0x1c8] sm:%s349]
                  %479 = vst [vmem:[%s357 + $0xf0] sm:%s349] %v478
                  %v480 = vld [vmem:[%s356 + $0x1cc] sm:%s349]
                  %481 = vst [vmem:[%s357 + $0xf4] sm:%s349] %v480
                  %v482 = vld [vmem:[%s356 + $0x1d0] sm:%s349]
                  %483 = vst [vmem:[%s357 + $0xf8] sm:%s349] %v482
                  %v484 = vld [vmem:[%s356 + $0x1d4] sm:%s349]
                  %485 = vst [vmem:[%s357 + $0xfc] sm:%s349] %v484
                  %v486 = vld [vmem:[%s356 + $0x1d8] sm:%s349]
                  %487 = vst [vmem:[%s357 + $0x100] sm:%s349] %v486
                  %v488 = vld [vmem:[%s356 + $0x1dc] sm:%s349]
                  %489 = vst [vmem:[%s357 + $0x104] sm:%s349] %v488
                  %v490 = vld [vmem:[%s356 + $0x1e0] sm:%s349]
                  %491 = vst [vmem:[%s357 + $0x108] sm:%s349] %v490
                  %v492 = vld [vmem:[%s356 + $0x1e4] sm:%s349]
                  %493 = vst [vmem:[%s357 + $0x10c] sm:%s349] %v492
                  %v494 = vld [vmem:[%s356 + $0x1e8] sm:%s349]
                  %495 = vst [vmem:[%s357 + $0x110] sm:%s349] %v494
                  %v496 = vld [vmem:[%s356 + $0x1ec] sm:%s349]
                  %497 = vst [vmem:[%s357 + $0x114] sm:%s349] %v496
                  %v498 = vld [vmem:[%s356 + $0x1f0] sm:%s349]
                  %499 = vst [vmem:[%s357 + $0x118] sm:%s349] %v498
                  %v500 = vld [vmem:[%s356 + $0x1f4] sm:%s349]
                  %501 = vst [vmem:[%s357 + $0x11c] sm:%s349] %v500
                $region63: #{bottleneck_psp.4} parent=50 // loop_footer
                  %s355 = sadd.s32 1, %s351
                $region64: #{bottleneck_psp.4} parent=50 // loop_footer_branch
                  %350 = sbr.rel target = $region60
                $region65: #{bottleneck_psp.4} parent=50 // loop_exit
                  _
              $region51: #{bottleneck_psp.4} parent=35 // pred_fallthru
                _
            $region36: #{bottleneck_psp.4} parent=31 // pred_fallthru
              _
            // Predicated region
            $region37: #{bottleneck_psp.4} parent=31 // pred_check
              _
            $region38: #{bottleneck_psp.4} parent=31 // pred_check_branch
              %183 = sbr.rel (0) target = $region40
            $region39: #{bottleneck_psp.4} parent=31 // pred_region
              %s185 = ssub.s32 16, 1
              loop: start=0, step=1, limit=1
              $region41: #{bottleneck_psp.4} parent=39 // loop_pre_header
                _
              $region42: #{bottleneck_psp.4} parent=39 // loop_header
                %s187 = sphi 0, %s191
                %p188 = scmp.ge.s32.totalorder %s187, 1
                %s192 = sphi %s177, %s177
                %s193 = sphi %s174, %s174
              $region43: #{bottleneck_psp.4} parent=39 // loop_header_branch
                %190 = sbr.rel (%p188) target = $region47
              $region44: #{bottleneck_psp.4} parent=39 // loop_body
                %v194 = vld [vmem:[%s192] sm:%s185]
                %195 = vst [vmem:[%s193] sm:%s185] %v194
                %v196 = vld [vmem:[%s192 + $0x4] sm:%s185]
                %197 = vst [vmem:[%s193 + $0x4] sm:%s185] %v196
                %v198 = vld [vmem:[%s192 + $0x8] sm:%s185]
                %199 = vst [vmem:[%s193 + $0x8] sm:%s185] %v198
                %v200 = vld [vmem:[%s192 + $0xc] sm:%s185]
                %201 = vst [vmem:[%s193 + $0xc] sm:%s185] %v200
                %v202 = vld [vmem:[%s192 + $0x10] sm:%s185]
                %203 = vst [vmem:[%s193 + $0x10] sm:%s185] %v202
                %v204 = vld [vmem:[%s192 + $0x14] sm:%s185]
                %205 = vst [vmem:[%s193 + $0x14] sm:%s185] %v204
                %v206 = vld [vmem:[%s192 + $0x18] sm:%s185]
                %207 = vst [vmem:[%s193 + $0x18] sm:%s185] %v206
                %v208 = vld [vmem:[%s192 + $0x1c] sm:%s185]
                %209 = vst [vmem:[%s193 + $0x1c] sm:%s185] %v208
                %v210 = vld [vmem:[%s192 + $0x20] sm:%s185]
                %211 = vst [vmem:[%s193 + $0x20] sm:%s185] %v210
                %v212 = vld [vmem:[%s192 + $0x24] sm:%s185]
                %213 = vst [vmem:[%s193 + $0x24] sm:%s185] %v212
                %v214 = vld [vmem:[%s192 + $0x28] sm:%s185]
                %215 = vst [vmem:[%s193 + $0x28] sm:%s185] %v214
                %v216 = vld [vmem:[%s192 + $0x2c] sm:%s185]
                %217 = vst [vmem:[%s193 + $0x2c] sm:%s185] %v216
                %v218 = vld [vmem:[%s192 + $0x30] sm:%s185]
                %219 = vst [vmem:[%s193 + $0x30] sm:%s185] %v218
                %v220 = vld [vmem:[%s192 + $0x34] sm:%s185]
                %221 = vst [vmem:[%s193 + $0x34] sm:%s185] %v220
                %v222 = vld [vmem:[%s192 + $0x38] sm:%s185]
                %223 = vst [vmem:[%s193 + $0x38] sm:%s185] %v222
                %v224 = vld [vmem:[%s192 + $0x3c] sm:%s185]
                %225 = vst [vmem:[%s193 + $0x3c] sm:%s185] %v224
                %v226 = vld [vmem:[%s192 + $0x40] sm:%s185]
                %227 = vst [vmem:[%s193 + $0x40] sm:%s185] %v226
                %v228 = vld [vmem:[%s192 + $0x44] sm:%s185]
                %229 = vst [vmem:[%s193 + $0x44] sm:%s185] %v228
                %v230 = vld [vmem:[%s192 + $0x90] sm:%s185]
                %231 = vst [vmem:[%s193 + $0x48] sm:%s185] %v230
                %v232 = vld [vmem:[%s192 + $0x94] sm:%s185]
                %233 = vst [vmem:[%s193 + $0x4c] sm:%s185] %v232
                %v234 = vld [vmem:[%s192 + $0x98] sm:%s185]
                %235 = vst [vmem:[%s193 + $0x50] sm:%s185] %v234
                %v236 = vld [vmem:[%s192 + $0x9c] sm:%s185]
                %237 = vst [vmem:[%s193 + $0x54] sm:%s185] %v236
                %v238 = vld [vmem:[%s192 + $0xa0] sm:%s185]
                %239 = vst [vmem:[%s193 + $0x58] sm:%s185] %v238
                %v240 = vld [vmem:[%s192 + $0xa4] sm:%s185]
                %241 = vst [vmem:[%s193 + $0x5c] sm:%s185] %v240
                %v242 = vld [vmem:[%s192 + $0xa8] sm:%s185]
                %243 = vst [vmem:[%s193 + $0x60] sm:%s185] %v242
                %v244 = vld [vmem:[%s192 + $0xac] sm:%s185]
                %245 = vst [vmem:[%s193 + $0x64] sm:%s185] %v244
                %v246 = vld [vmem:[%s192 + $0xb0] sm:%s185]
                %247 = vst [vmem:[%s193 + $0x68] sm:%s185] %v246
                %v248 = vld [vmem:[%s192 + $0xb4] sm:%s185]
                %249 = vst [vmem:[%s193 + $0x6c] sm:%s185] %v248
                %v250 = vld [vmem:[%s192 + $0xb8] sm:%s185]
                %251 = vst [vmem:[%s193 + $0x70] sm:%s185] %v250
                %v252 = vld [vmem:[%s192 + $0xbc] sm:%s185]
                %253 = vst [vmem:[%s193 + $0x74] sm:%s185] %v252
                %v254 = vld [vmem:[%s192 + $0xc0] sm:%s185]
                %255 = vst [vmem:[%s193 + $0x78] sm:%s185] %v254
                %v256 = vld [vmem:[%s192 + $0xc4] sm:%s185]
                %257 = vst [vmem:[%s193 + $0x7c] sm:%s185] %v256
                %v258 = vld [vmem:[%s192 + $0xc8] sm:%s185]
                %259 = vst [vmem:[%s193 + $0x80] sm:%s185] %v258
                %v260 = vld [vmem:[%s192 + $0xcc] sm:%s185]
                %261 = vst [vmem:[%s193 + $0x84] sm:%s185] %v260
                %v262 = vld [vmem:[%s192 + $0xd0] sm:%s185]
                %263 = vst [vmem:[%s193 + $0x88] sm:%s185] %v262
                %v264 = vld [vmem:[%s192 + $0xd4] sm:%s185]
                %265 = vst [vmem:[%s193 + $0x8c] sm:%s185] %v264
                %v266 = vld [vmem:[%s192 + $0x120] sm:%s185]
                %267 = vst [vmem:[%s193 + $0x90] sm:%s185] %v266
                %v268 = vld [vmem:[%s192 + $0x124] sm:%s185]
                %269 = vst [vmem:[%s193 + $0x94] sm:%s185] %v268
                %v270 = vld [vmem:[%s192 + $0x128] sm:%s185]
                %271 = vst [vmem:[%s193 + $0x98] sm:%s185] %v270
                %v272 = vld [vmem:[%s192 + $0x12c] sm:%s185]
                %273 = vst [vmem:[%s193 + $0x9c] sm:%s185] %v272
                %v274 = vld [vmem:[%s192 + $0x130] sm:%s185]
                %275 = vst [vmem:[%s193 + $0xa0] sm:%s185] %v274
                %v276 = vld [vmem:[%s192 + $0x134] sm:%s185]
                %277 = vst [vmem:[%s193 + $0xa4] sm:%s185] %v276
                %v278 = vld [vmem:[%s192 + $0x138] sm:%s185]
                %279 = vst [vmem:[%s193 + $0xa8] sm:%s185] %v278
                %v280 = vld [vmem:[%s192 + $0x13c] sm:%s185]
                %281 = vst [vmem:[%s193 + $0xac] sm:%s185] %v280
                %v282 = vld [vmem:[%s192 + $0x140] sm:%s185]
                %283 = vst [vmem:[%s193 + $0xb0] sm:%s185] %v282
                %v284 = vld [vmem:[%s192 + $0x144] sm:%s185]
                %285 = vst [vmem:[%s193 + $0xb4] sm:%s185] %v284
                %v286 = vld [vmem:[%s192 + $0x148] sm:%s185]
                %287 = vst [vmem:[%s193 + $0xb8] sm:%s185] %v286
                %v288 = vld [vmem:[%s192 + $0x14c] sm:%s185]
                %289 = vst [vmem:[%s193 + $0xbc] sm:%s185] %v288
                %v290 = vld [vmem:[%s192 + $0x150] sm:%s185]
                %291 = vst [vmem:[%s193 + $0xc0] sm:%s185] %v290
                %v292 = vld [vmem:[%s192 + $0x154] sm:%s185]
                %293 = vst [vmem:[%s193 + $0xc4] sm:%s185] %v292
                %v294 = vld [vmem:[%s192 + $0x158] sm:%s185]
                %295 = vst [vmem:[%s193 + $0xc8] sm:%s185] %v294
                %v296 = vld [vmem:[%s192 + $0x15c] sm:%s185]
                %297 = vst [vmem:[%s193 + $0xcc] sm:%s185] %v296
                %v298 = vld [vmem:[%s192 + $0x160] sm:%s185]
                %299 = vst [vmem:[%s193 + $0xd0] sm:%s185] %v298
                %v300 = vld [vmem:[%s192 + $0x164] sm:%s185]
                %301 = vst [vmem:[%s193 + $0xd4] sm:%s185] %v300
                %v302 = vld [vmem:[%s192 + $0x1b0] sm:%s185]
                %303 = vst [vmem:[%s193 + $0xd8] sm:%s185] %v302
                %v304 = vld [vmem:[%s192 + $0x1b4] sm:%s185]
                %305 = vst [vmem:[%s193 + $0xdc] sm:%s185] %v304
                %v306 = vld [vmem:[%s192 + $0x1b8] sm:%s185]
                %307 = vst [vmem:[%s193 + $0xe0] sm:%s185] %v306
                %v308 = vld [vmem:[%s192 + $0x1bc] sm:%s185]
                %309 = vst [vmem:[%s193 + $0xe4] sm:%s185] %v308
                %v310 = vld [vmem:[%s192 + $0x1c0] sm:%s185]
                %311 = vst [vmem:[%s193 + $0xe8] sm:%s185] %v310
                %v312 = vld [vmem:[%s192 + $0x1c4] sm:%s185]
                %313 = vst [vmem:[%s193 + $0xec] sm:%s185] %v312
                %v314 = vld [vmem:[%s192 + $0x1c8] sm:%s185]
                %315 = vst [vmem:[%s193 + $0xf0] sm:%s185] %v314
                %v316 = vld [vmem:[%s192 + $0x1cc] sm:%s185]
                %317 = vst [vmem:[%s193 + $0xf4] sm:%s185] %v316
                %v318 = vld [vmem:[%s192 + $0x1d0] sm:%s185]
                %319 = vst [vmem:[%s193 + $0xf8] sm:%s185] %v318
                %v320 = vld [vmem:[%s192 + $0x1d4] sm:%s185]
                %321 = vst [vmem:[%s193 + $0xfc] sm:%s185] %v320
                %v322 = vld [vmem:[%s192 + $0x1d8] sm:%s185]
                %323 = vst [vmem:[%s193 + $0x100] sm:%s185] %v322
                %v324 = vld [vmem:[%s192 + $0x1dc] sm:%s185]
                %325 = vst [vmem:[%s193 + $0x104] sm:%s185] %v324
                %v326 = vld [vmem:[%s192 + $0x1e0] sm:%s185]
                %327 = vst [vmem:[%s193 + $0x108] sm:%s185] %v326
                %v328 = vld [vmem:[%s192 + $0x1e4] sm:%s185]
                %329 = vst [vmem:[%s193 + $0x10c] sm:%s185] %v328
                %v330 = vld [vmem:[%s192 + $0x1e8] sm:%s185]
                %331 = vst [vmem:[%s193 + $0x110] sm:%s185] %v330
                %v332 = vld [vmem:[%s192 + $0x1ec] sm:%s185]
                %333 = vst [vmem:[%s193 + $0x114] sm:%s185] %v332
                %v334 = vld [vmem:[%s192 + $0x1f0] sm:%s185]
                %335 = vst [vmem:[%s193 + $0x118] sm:%s185] %v334
                %v336 = vld [vmem:[%s192 + $0x1f4] sm:%s185]
                %337 = vst [vmem:[%s193 + $0x11c] sm:%s185] %v336
              $region45: #{bottleneck_psp.4} parent=39 // loop_footer
                %s191 = sadd.s32 1, %s187
              $region46: #{bottleneck_psp.4} parent=39 // loop_footer_branch
                %186 = sbr.rel target = $region42
              $region47: #{bottleneck_psp.4} parent=39 // loop_exit
                _
            $region40: #{bottleneck_psp.4} parent=31 // pred_fallthru
              _
          $region32: #{bottleneck_psp.4} parent=27 // pred_fallthru
            _
          %502 = vnop
        $region28: #{bottleneck_psp.4} parent=23 // pred_fallthru
          _
      $region24: #{bottleneck_psp.4} parent=5 // pred_fallthru
        _
      %p503 = scmp.le.s32.totalorder 1, %s9
      %p504 = scmp.lt.s32.totalorder %s9, 3
      %p505 = pnand %p503, %p504
      %p506 = pneg %p505
      // Predicated region
      $region66: #{bottleneck_psp.4} parent=5 // pred_check
        _
      $region67: #{bottleneck_psp.4} parent=5 // pred_check_branch
        %508 = sbr.rel (%p505) target = $region69
      $region68: #{bottleneck_psp.4} parent=5 // pred_region
        %s509 = ssub.s32 %s9, 1
        %s510 = sand.u32 %s41, 1
        %s511 = sand.u32 %s41, 1
        %s512 = smul.addr %s511, 288
        %s513 = scalar_lea.vmem [#allocation2], %s512
        // Predicated region
        $region70: #{bottleneck_psp.4} parent=68 // pred_check
          %p514 = pneg %p54
        $region71: #{bottleneck_psp.4} parent=68 // pred_check_branch
          %516 = sbr.rel (%p514) target = $region73
        $region72: #{bottleneck_psp.4} parent=68 // pred_region
          _
        $region73: #{bottleneck_psp.4} parent=68 // pred_fallthru
          _
        %s517 = sand.u32 %s41, 1
        %s518 = sand.u32 %s41, 1
        %s519 = smul.addr %s518, 288
        %s520 = scalar_lea.vmem [#allocation2], %s519
        %p521 = pneg %p54
        %p522 = pneg %p51
        %p523 = scmp.lt.s32.totalorder %s20, 0
        %s524 = scalar_select %p523, %s20, 0
        %s525 = smul.addr %s524, 4
        %s526 = scalar_lea.vmem %s1, %s525
        %p527 = pneg %p80
        %p528 = pneg %p77
        %p529 = scmp.lt.s32.totalorder %s20, 0
        %s530 = scalar_select %p529, %s20, 0
        %s531 = scalar_lea.vmem %s2, %s530
        %p532 = pneg %p106
        %p533 = pneg %p103
        %p534 = pneg %p136
        %p535 = pneg %p133
        %s536 = smul.u32 8, %s21
        %p537 = scmp.lt.s32.totalorder %s19, 1
        %s538 = scalar_select %p537, %s19, 1
        %p539 = scmp.lt.s32.totalorder %s536, 7
        %s540 = scalar_select %p539, %s536, 7
        %p541 = scmp.lt.s32.totalorder %s20, 0
        %s542 = scalar_select %p541, %s20, 0
        %s543 = sadd.s32 %s542, %s540
        %s544 = smul.addr %s538, 8
        %s545 = sadd.s32 %s543, %s544
        %s546 = smul.addr %s545, 4
        %s547 = scalar_lea.vmem %s3, %s546
        %p548 = scmp.lt.s32.totalorder %s20, 0
        %s549 = scalar_select %p548, %s20, 0
        %s550 = smul.addr %s549, 4
        %s551 = scalar_lea.vmem %s1, %s550
        %p552 = scmp.lt.s32.totalorder %s20, 0
        %s553 = scalar_select %p552, %s20, 0
        %s554 = scalar_lea.vmem %s2, %s553
        %s555 = smul.u32 8, %s21
        %p556 = scmp.lt.s32.totalorder %s19, 1
        %s557 = scalar_select %p556, %s19, 1
        %p558 = scmp.lt.s32.totalorder %s555, 7
        %s559 = scalar_select %p558, %s555, 7
        %p560 = scmp.lt.s32.totalorder %s20, 0
        %s561 = scalar_select %p560, %s20, 0
        %s562 = sadd.s32 %s561, %s559
        %s563 = smul.addr %s557, 8
        %s564 = sadd.s32 %s562, %s563
        %s565 = smul.addr %s564, 4
        %s566 = scalar_lea.vmem %s3, %s565
        %s567 = smul.u32 8, %s21
        %s569 = smul.u32 %s21, 8
        %s570 = smul.u32 %s569, 2
        %s571 = smul.addr %s570, 4
        %s572 = scalar_lea.vmem %s513, %s571 [#allocation2]
        %v573 = vld [vmem:[%s572] sm:$0xf]
        %v574 = vld [vmem:[%s572 + $0x8] sm:$0xf]
        %v575 = vld [vmem:[%s572 + $0x10] sm:$0xf]
        %v576 = vld [vmem:[%s572 + $0x18] sm:$0xf]
        %v577 = vld [vmem:[%s572 + $0x20] sm:$0xf]
        %v578 = vld [vmem:[%s572 + $0x28] sm:$0xf]
        %v579 = vld [vmem:[%s572 + $0x30] sm:$0xf]
        %v580 = vld [vmem:[%s572 + $0x38] sm:$0xf]
        %v581 = vld [vmem:[%s551] sm:$0xf]
        %v582 = vld [vmem:[%s551 + $0x4] sm:$0xf]
        %v583 = vld [vmem:[%s551 + $0x8] sm:$0xf]
        %v584 = vld [vmem:[%s551 + $0xc] sm:$0xf]
        %v585 = vld [vmem:[%s551 + $0x10] sm:$0xf]
        %v586 = vld [vmem:[%s551 + $0x14] sm:$0xf]
        %v587 = vld [vmem:[%s551 + $0x18] sm:$0xf]
        %v588 = vld [vmem:[%s551 + $0x1c] sm:$0xf]
        %v589 = vld [vmem:[%s551 + $0x20] sm:$0xf]
        %v590 = vld [vmem:[%s551 + $0x24] sm:$0xf]
        %v591 = vld [vmem:[%s551 + $0x28] sm:$0xf]
        %v592 = vld [vmem:[%s551 + $0x2c] sm:$0xf]
        %v593 = vld [vmem:[%s551 + $0x30] sm:$0xf]
        %v594 = vld [vmem:[%s551 + $0x34] sm:$0xf]
        %v595 = vld [vmem:[%s551 + $0x38] sm:$0xf]
        %v596 = vld [vmem:[%s551 + $0x3c] sm:$0xf]
        %s597 = sadd.s32 %s570, 18
        %s598 = smul.addr %s597, 4
        %s599 = scalar_lea.vmem %s513, %s598 [#allocation2]
        %v600 = vld [vmem:[%s599] sm:$0xf]
        %v601 = vld [vmem:[%s599 + $0x8] sm:$0xf]
        %v602 = vld [vmem:[%s599 + $0x10] sm:$0xf]
        %v603 = vld [vmem:[%s599 + $0x18] sm:$0xf]
        %v604 = vld [vmem:[%s599 + $0x20] sm:$0xf]
        %v605 = vld [vmem:[%s599 + $0x28] sm:$0xf]
        %v606 = vld [vmem:[%s599 + $0x30] sm:$0xf]
        %v607 = vld [vmem:[%s599 + $0x38] sm:$0xf]
        %s608 = scalar_lea.vmem %s551, 64
        %v609 = vld [vmem:[%s608] sm:$0xf]
        %v610 = vld [vmem:[%s608 + $0x4] sm:$0xf]
        %v611 = vld [vmem:[%s608 + $0x8] sm:$0xf]
        %v612 = vld [vmem:[%s608 + $0xc] sm:$0xf]
        %v613 = vld [vmem:[%s608 + $0x10] sm:$0xf]
        %v614 = vld [vmem:[%s608 + $0x14] sm:$0xf]
        %v615 = vld [vmem:[%s608 + $0x18] sm:$0xf]
        %v616 = vld [vmem:[%s608 + $0x1c] sm:$0xf]
        %v617 = vld [vmem:[%s608 + $0x20] sm:$0xf]
        %v618 = vld [vmem:[%s608 + $0x24] sm:$0xf]
        %v619 = vld [vmem:[%s608 + $0x28] sm:$0xf]
        %v620 = vld [vmem:[%s608 + $0x2c] sm:$0xf]
        %v621 = vld [vmem:[%s608 + $0x30] sm:$0xf]
        %v622 = vld [vmem:[%s608 + $0x34] sm:$0xf]
        %v623 = vld [vmem:[%s608 + $0x38] sm:$0xf]
        %v624 = vld [vmem:[%s608 + $0x3c] sm:$0xf]
        %v633 = vunpack.c.l.b16 %v600
        %v634 = vunpack.c.l.b16 %v601
        %v635 = vunpack.c.l.b16 %v602
        %v636 = vunpack.c.l.b16 %v603
        %v637 = vunpack.c.l.b16 %v604
        %v638 = vunpack.c.l.b16 %v605
        %v639 = vunpack.c.l.b16 %v606
        %v640 = vunpack.c.l.b16 %v607
        %v641 = vpack.c.b16 %v634, %v633
        %v642 = vpack.c.b16 %v636, %v635
        %v643 = vpack.c.b16 %v638, %v637
        %v644 = vpack.c.b16 %v640, %v639
        %v665 = vunpack.c.l.b16 %v609
        %v666 = vunpack.c.l.b16 %v610
        %v667 = vunpack.c.l.b16 %v611
        %v668 = vunpack.c.l.b16 %v612
        %v669 = vunpack.c.l.b16 %v613
        %v670 = vunpack.c.l.b16 %v614
        %v671 = vunpack.c.l.b16 %v615
        %v672 = vunpack.c.l.b16 %v616
        %v673 = vunpack.c.l.b16 %v617
        %v674 = vunpack.c.l.b16 %v618
        %v675 = vunpack.c.l.b16 %v619
        %v676 = vunpack.c.l.b16 %v620
        %v677 = vunpack.c.l.b16 %v621
        %v678 = vunpack.c.l.b16 %v622
        %v679 = vunpack.c.l.b16 %v623
        %v680 = vunpack.c.l.b16 %v624
        %v681 = vpack.c.b16 %v666, %v665
        %v682 = vpack.c.b16 %v668, %v667
        %v683 = vpack.c.b16 %v670, %v669
        %v684 = vpack.c.b16 %v672, %v671
        %v685 = vpack.c.b16 %v674, %v673
        %v686 = vpack.c.b16 %v676, %v675
        %v687 = vpack.c.b16 %v678, %v677
        %v688 = vpack.c.b16 %v680, %v679
        %697 = vmatprep.subr.bf16.mxu0 0
        %698 = vmatpush1.bf16.msra.mxu0 %v688
        %699 = vmatprep.subr.bf16.mxu0 0
        %700 = vmatpush1.bf16.msra.mxu0 %v687
        %701 = vmatprep.subr.bf16.mxu0 0
        %702 = vmatpush1.bf16.msra.mxu0 %v686
        %703 = vmatprep.subr.bf16.mxu0 0
        %704 = vmatpush1.bf16.msra.mxu0 %v685
        %705 = vmatprep.subr.bf16.mxu0 0
        %706 = vmatpush1.bf16.msra.mxu0 %v684
        %707 = vmatprep.subr.bf16.mxu0 0
        %708 = vmatpush1.bf16.msra.mxu0 %v683
        %709 = vmatprep.subr.bf16.mxu0 0
        %710 = vmatpush1.bf16.msra.mxu0 %v682
        %711 = vmatprep.subr.bf16.mxu0 0
        %712 = vmatpush1.bf16.msra.mxu0 %v681
        %713 = vmatprep.subr.bf16.mxu0 0
        %714 = vmatpush2.bf16.msra.mxu0 0
        %715 = vmatprep.subr.bf16.mxu0 0
        %716 = vmatpush2.bf16.msra.mxu0 0
        %717 = vmatprep.subr.bf16.mxu0 0
        %718 = vmatpush2.bf16.msra.mxu0 0
        %719 = vmatprep.subr.bf16.mxu0 0
        %720 = vmatpush2.bf16.msra.mxu0 0
        %721 = vmatprep.subr.bf16.mxu0 0
        %722 = vmatpush2.bf16.msra.mxu0 0
        %723 = vmatprep.subr.bf16.mxu0 0
        %724 = vmatpush2.bf16.msra.mxu0 0
        %725 = vmatprep.subr.bf16.mxu0 0
        %726 = vmatpush2.bf16.msra.mxu0 0
        %727 = vmatprep.subr.bf16.mxu0 0
        %728 = vmatpush2.bf16.msra.mxu0 0
        %729 = vmatprep.mubr.bf16.mxu0 0
        %730 = vmatmul.mubr.bf16.gmra.mxu0 %v641
        %v731 = vpop.f32.mrf.mxu0
        %v732 = vadd.f32 0.0, %v731
        %v733 = vpop.f32.mrf.mxu0
        %v734 = vpop.f32.mrf.mxu0
        %v735 = vadd.f32 0.0, %v734
        %v736 = vpop.f32.mrf.mxu0
        %737 = vmatprep.mubr.bf16.mxu0 0
        %738 = vmatmul.mubr.bf16.gmra.mxu0 %v642
        %v739 = vpop.f32.mrf.mxu0
        %v740 = vadd.f32 0.0, %v739
        %v741 = vpop.f32.mrf.mxu0
        %v742 = vpop.f32.mrf.mxu0
        %v743 = vadd.f32 0.0, %v742
        %v744 = vpop.f32.mrf.mxu0
        %745 = vmatprep.mubr.bf16.mxu0 0
        %746 = vmatmul.mubr.bf16.gmra.mxu0 %v643
        %v747 = vpop.f32.mrf.mxu0
        %v748 = vadd.f32 0.0, %v747
        %v749 = vpop.f32.mrf.mxu0
        %v750 = vpop.f32.mrf.mxu0
        %v751 = vadd.f32 0.0, %v750
        %v752 = vpop.f32.mrf.mxu0
        %753 = vmatprep.mubr.bf16.mxu0 0
        %754 = vmatmul.mubr.bf16.gmra.mxu0 %v644
        %v755 = vpop.f32.mrf.mxu0
        %v756 = vadd.f32 0.0, %v755
        %v757 = vpop.f32.mrf.mxu0
        %v758 = vpop.f32.mrf.mxu0
        %v759 = vadd.f32 0.0, %v758
        %v760 = vpop.f32.mrf.mxu0
        %761 = vdwg.mxu0
        %v770 = vunpack.c.l.b16 %v573
        %v771 = vunpack.c.l.b16 %v574
        %v772 = vunpack.c.l.b16 %v575
        %v773 = vunpack.c.l.b16 %v576
        %v774 = vunpack.c.l.b16 %v577
        %v775 = vunpack.c.l.b16 %v578
        %v776 = vunpack.c.l.b16 %v579
        %v777 = vunpack.c.l.b16 %v580
        %v778 = vpack.c.b16 %v771, %v770
        %v779 = vpack.c.b16 %v773, %v772
        %v780 = vpack.c.b16 %v775, %v774
        %v781 = vpack.c.b16 %v777, %v776
        %v802 = vunpack.c.l.b16 %v581
        %v803 = vunpack.c.l.b16 %v582
        %v804 = vunpack.c.l.b16 %v583
        %v805 = vunpack.c.l.b16 %v584
        %v806 = vunpack.c.l.b16 %v585
        %v807 = vunpack.c.l.b16 %v586
        %v808 = vunpack.c.l.b16 %v587
        %v809 = vunpack.c.l.b16 %v588
        %v810 = vunpack.c.l.b16 %v589
        %v811 = vunpack.c.l.b16 %v590
        %v812 = vunpack.c.l.b16 %v591
        %v813 = vunpack.c.l.b16 %v592
        %v814 = vunpack.c.l.b16 %v593
        %v815 = vunpack.c.l.b16 %v594
        %v816 = vunpack.c.l.b16 %v595
        %v817 = vunpack.c.l.b16 %v596
        %v818 = vpack.c.b16 %v803, %v802
        %v819 = vpack.c.b16 %v805, %v804
        %v820 = vpack.c.b16 %v807, %v806
        %v821 = vpack.c.b16 %v809, %v808
        %v822 = vpack.c.b16 %v811, %v810
        %v823 = vpack.c.b16 %v813, %v812
        %v824 = vpack.c.b16 %v815, %v814
        %v825 = vpack.c.b16 %v817, %v816
        %834 = vmatprep.subr.bf16.mxu0 0
        %835 = vmatpush1.bf16.msra.mxu0 %v825
        %836 = vmatprep.subr.bf16.mxu0 0
        %837 = vmatpush1.bf16.msra.mxu0 %v824
        %838 = vmatprep.subr.bf16.mxu0 0
        %839 = vmatpush1.bf16.msra.mxu0 %v823
        %840 = vmatprep.subr.bf16.mxu0 0
        %841 = vmatpush1.bf16.msra.mxu0 %v822
        %842 = vmatprep.subr.bf16.mxu0 0
        %843 = vmatpush1.bf16.msra.mxu0 %v821
        %844 = vmatprep.subr.bf16.mxu0 0
        %845 = vmatpush1.bf16.msra.mxu0 %v820
        %846 = vmatprep.subr.bf16.mxu0 0
        %847 = vmatpush1.bf16.msra.mxu0 %v819
        %848 = vmatprep.subr.bf16.mxu0 0
        %849 = vmatpush1.bf16.msra.mxu0 %v818
        %850 = vmatprep.subr.bf16.mxu0 0
        %851 = vmatpush2.bf16.msra.mxu0 0
        %852 = vmatprep.subr.bf16.mxu0 0
        %853 = vmatpush2.bf16.msra.mxu0 0
        %854 = vmatprep.subr.bf16.mxu0 0
        %855 = vmatpush2.bf16.msra.mxu0 0
        %856 = vmatprep.subr.bf16.mxu0 0
        %857 = vmatpush2.bf16.msra.mxu0 0
        %858 = vmatprep.subr.bf16.mxu0 0
        %859 = vmatpush2.bf16.msra.mxu0 0
        %860 = vmatprep.subr.bf16.mxu0 0
        %861 = vmatpush2.bf16.msra.mxu0 0
        %862 = vmatprep.subr.bf16.mxu0 0
        %863 = vmatpush2.bf16.msra.mxu0 0
        %864 = vmatprep.subr.bf16.mxu0 0
        %865 = vmatpush2.bf16.msra.mxu0 0
        %866 = vmatprep.mubr.bf16.mxu0 0
        %867 = vmatmul.mubr.bf16.gmra.mxu0 %v778
        %v868 = vpop.f32.mrf.mxu0
        %v869 = vadd.f32 %v732, %v868
        %v870 = vpop.f32.mrf.mxu0
        %v871 = vpop.f32.mrf.mxu0
        %v872 = vadd.f32 %v735, %v871
        %v873 = vpop.f32.mrf.mxu0
        %874 = vmatprep.mubr.bf16.mxu0 0
        %875 = vmatmul.mubr.bf16.gmra.mxu0 %v779
        %v876 = vpop.f32.mrf.mxu0
        %v877 = vadd.f32 %v740, %v876
        %v878 = vpop.f32.mrf.mxu0
        %v879 = vpop.f32.mrf.mxu0
        %v880 = vadd.f32 %v743, %v879
        %v881 = vpop.f32.mrf.mxu0
        %882 = vmatprep.mubr.bf16.mxu0 0
        %883 = vmatmul.mubr.bf16.gmra.mxu0 %v780
        %v884 = vpop.f32.mrf.mxu0
        %v885 = vadd.f32 %v748, %v884
        %v886 = vpop.f32.mrf.mxu0
        %v887 = vpop.f32.mrf.mxu0
        %v888 = vadd.f32 %v751, %v887
        %v889 = vpop.f32.mrf.mxu0
        %890 = vmatprep.mubr.bf16.mxu0 0
        %891 = vmatmul.mubr.bf16.gmra.mxu0 %v781
        %v892 = vpop.f32.mrf.mxu0
        %v893 = vadd.f32 %v756, %v892
        %v894 = vpop.f32.mrf.mxu0
        %v895 = vpop.f32.mrf.mxu0
        %v896 = vadd.f32 %v759, %v895
        %v897 = vpop.f32.mrf.mxu0
        %898 = vdwg.mxu0
        %v899 = vld [vmem:[%s572] sm:$0xf]
        %v900 = vld [vmem:[%s572 + $0x4] sm:$0x1]
        %v901 = vld [vmem:[%s572 + $0x8] sm:$0xf]
        %v902 = vld [vmem:[%s572 + $0xc] sm:$0x1]
        %v903 = vld [vmem:[%s572 + $0x10] sm:$0xf]
        %v904 = vld [vmem:[%s572 + $0x14] sm:$0x1]
        %v905 = vld [vmem:[%s572 + $0x18] sm:$0xf]
        %v906 = vld [vmem:[%s572 + $0x1c] sm:$0x1]
        %v907 = vld [vmem:[%s572 + $0x20] sm:$0xf]
        %v908 = vld [vmem:[%s572 + $0x24] sm:$0x1]
        %v909 = vld [vmem:[%s572 + $0x28] sm:$0xf]
        %v910 = vld [vmem:[%s572 + $0x2c] sm:$0x1]
        %v911 = vld [vmem:[%s572 + $0x30] sm:$0xf]
        %v912 = vld [vmem:[%s572 + $0x34] sm:$0x1]
        %v913 = vld [vmem:[%s572 + $0x38] sm:$0xf]
        %v914 = vld [vmem:[%s572 + $0x3c] sm:$0x1]
        %vm915 = vsmask.f32 3328
        %vm916 = vsmask.f32 7440
        %vm917 = vmor %vm915, %vm916
        %v919 = vshrl.u32 %v899, 16
        %v921 = vrot.slane %v919, 4
        %v922 = vshll.u32 %v899, 16
        %v924 = vrot.slane %v922, 5
        %v925 = vor.u32 %v921, %v924
        %v926 = vrot.slane %v925, 4
        %v928 = vshll.u32 %v900, 16
        %v930 = vrot.slane %v928, 5
        %v931 = vsel %vm917, %v926, %v930
        %v933 = vshrl.u32 %v901, 16
        %v935 = vrot.slane %v933, 4
        %v936 = vshll.u32 %v901, 16
        %v938 = vrot.slane %v936, 5
        %v939 = vor.u32 %v935, %v938
        %v940 = vrot.slane %v939, 4
        %v942 = vshll.u32 %v902, 16
        %v944 = vrot.slane %v942, 5
        %v945 = vsel %vm917, %v940, %v944
        %v947 = vshrl.u32 %v903, 16
        %v949 = vrot.slane %v947, 4
        %v950 = vshll.u32 %v903, 16
        %v952 = vrot.slane %v950, 5
        %v953 = vor.u32 %v949, %v952
        %v954 = vrot.slane %v953, 4
        %v956 = vshll.u32 %v904, 16
        %v958 = vrot.slane %v956, 5
        %v959 = vsel %vm917, %v954, %v958
        %v961 = vshrl.u32 %v905, 16
        %v963 = vrot.slane %v961, 4
        %v964 = vshll.u32 %v905, 16
        %v966 = vrot.slane %v964, 5
        %v967 = vor.u32 %v963, %v966
        %v968 = vrot.slane %v967, 4
        %v970 = vshll.u32 %v906, 16
        %v972 = vrot.slane %v970, 5
        %v973 = vsel %vm917, %v968, %v972
        %v975 = vshrl.u32 %v907, 16
        %v977 = vrot.slane %v975, 4
        %v978 = vshll.u32 %v907, 16
        %v980 = vrot.slane %v978, 5
        %v981 = vor.u32 %v977, %v980
        %v982 = vrot.slane %v981, 4
        %v984 = vshll.u32 %v908, 16
        %v986 = vrot.slane %v984, 5
        %v987 = vsel %vm917, %v982, %v986
        %v989 = vshrl.u32 %v909, 16
        %v991 = vrot.slane %v989, 4
        %v992 = vshll.u32 %v909, 16
        %v994 = vrot.slane %v992, 5
        %v995 = vor.u32 %v991, %v994
        %v996 = vrot.slane %v995, 4
        %v998 = vshll.u32 %v910, 16
        %v1000 = vrot.slane %v998, 5
        %v1001 = vsel %vm917, %v996, %v1000
        %v1003 = vshrl.u32 %v911, 16
        %v1005 = vrot.slane %v1003, 4
        %v1006 = vshll.u32 %v911, 16
        %v1008 = vrot.slane %v1006, 5
        %v1009 = vor.u32 %v1005, %v1008
        %v1010 = vrot.slane %v1009, 4
        %v1012 = vshll.u32 %v912, 16
        %v1014 = vrot.slane %v1012, 5
        %v1015 = vsel %vm917, %v1010, %v1014
        %v1017 = vshrl.u32 %v913, 16
        %v1019 = vrot.slane %v1017, 4
        %v1020 = vshll.u32 %v913, 16
        %v1022 = vrot.slane %v1020, 5
        %v1023 = vor.u32 %v1019, %v1022
        %v1024 = vrot.slane %v1023, 4
        %v1026 = vshll.u32 %v914, 16
        %v1028 = vrot.slane %v1026, 5
        %v1029 = vsel %vm917, %v1024, %v1028
        %s1030 = scalar_lea.vmem %s551, 128
        %v1031 = vld [vmem:[%s1030] sm:$0xf]
        %v1032 = vld [vmem:[%s1030 + $0x4] sm:$0xf]
        %v1033 = vld [vmem:[%s1030 + $0x8] sm:$0xf]
        %v1034 = vld [vmem:[%s1030 + $0xc] sm:$0xf]
        %v1035 = vld [vmem:[%s1030 + $0x10] sm:$0xf]
        %v1036 = vld [vmem:[%s1030 + $0x14] sm:$0xf]
        %v1037 = vld [vmem:[%s1030 + $0x18] sm:$0xf]
        %v1038 = vld [vmem:[%s1030 + $0x1c] sm:$0xf]
        %v1039 = vld [vmem:[%s1030 + $0x20] sm:$0xf]
        %v1040 = vld [vmem:[%s1030 + $0x24] sm:$0xf]
        %v1041 = vld [vmem:[%s1030 + $0x28] sm:$0xf]
        %v1042 = vld [vmem:[%s1030 + $0x2c] sm:$0xf]
        %v1043 = vld [vmem:[%s1030 + $0x30] sm:$0xf]
        %v1044 = vld [vmem:[%s1030 + $0x34] sm:$0xf]
        %v1045 = vld [vmem:[%s1030 + $0x38] sm:$0xf]
        %v1046 = vld [vmem:[%s1030 + $0x3c] sm:$0xf]
        %v1047 = vunpack.c.l.b16 %v931
        %v1048 = vunpack.c.l.b16 %v945
        %v1049 = vunpack.c.l.b16 %v959
        %v1050 = vunpack.c.l.b16 %v973
        %v1051 = vunpack.c.l.b16 %v987
        %v1052 = vunpack.c.l.b16 %v1001
        %v1053 = vunpack.c.l.b16 %v1015
        %v1054 = vunpack.c.l.b16 %v1029
        %v1055 = vpack.c.b16 %v1048, %v1047
        %v1056 = vpack.c.b16 %v1050, %v1049
        %v1057 = vpack.c.b16 %v1052, %v1051
        %v1058 = vpack.c.b16 %v1054, %v1053
        %v1079 = vunpack.c.l.b16 %v1031
        %v1080 = vunpack.c.l.b16 %v1032
        %v1081 = vunpack.c.l.b16 %v1033
        %v1082 = vunpack.c.l.b16 %v1034
        %v1083 = vunpack.c.l.b16 %v1035
        %v1084 = vunpack.c.l.b16 %v1036
        %v1085 = vunpack.c.l.b16 %v1037
        %v1086 = vunpack.c.l.b16 %v1038
        %v1087 = vunpack.c.l.b16 %v1039
        %v1088 = vunpack.c.l.b16 %v1040
        %v1089 = vunpack.c.l.b16 %v1041
        %v1090 = vunpack.c.l.b16 %v1042
        %v1091 = vunpack.c.l.b16 %v1043
        %v1092 = vunpack.c.l.b16 %v1044
        %v1093 = vunpack.c.l.b16 %v1045
        %v1094 = vunpack.c.l.b16 %v1046
        %v1095 = vpack.c.b16 %v1080, %v1079
        %v1096 = vpack.c.b16 %v1082, %v1081
        %v1097 = vpack.c.b16 %v1084, %v1083
        %v1098 = vpack.c.b16 %v1086, %v1085
        %v1099 = vpack.c.b16 %v1088, %v1087
        %v1100 = vpack.c.b16 %v1090, %v1089
        %v1101 = vpack.c.b16 %v1092, %v1091
        %v1102 = vpack.c.b16 %v1094, %v1093
        %1111 = vmatprep.subr.bf16.mxu0 0
        %1112 = vmatpush1.bf16.msra.mxu0 %v1102
        %1113 = vmatprep.subr.bf16.mxu0 0
        %1114 = vmatpush1.bf16.msra.mxu0 %v1101
        %1115 = vmatprep.subr.bf16.mxu0 0
        %1116 = vmatpush1.bf16.msra.mxu0 %v1100
        %1117 = vmatprep.subr.bf16.mxu0 0
        %1118 = vmatpush1.bf16.msra.mxu0 %v1099
        %1119 = vmatprep.subr.bf16.mxu0 0
        %1120 = vmatpush1.bf16.msra.mxu0 %v1098
        %1121 = vmatprep.subr.bf16.mxu0 0
        %1122 = vmatpush1.bf16.msra.mxu0 %v1097
        %1123 = vmatprep.subr.bf16.mxu0 0
        %1124 = vmatpush1.bf16.msra.mxu0 %v1096
        %1125 = vmatprep.subr.bf16.mxu0 0
        %1126 = vmatpush1.bf16.msra.mxu0 %v1095
        %1127 = vmatprep.subr.bf16.mxu0 0
        %1128 = vmatpush2.bf16.msra.mxu0 0
        %1129 = vmatprep.subr.bf16.mxu0 0
        %1130 = vmatpush2.bf16.msra.mxu0 0
        %1131 = vmatprep.subr.bf16.mxu0 0
        %1132 = vmatpush2.bf16.msra.mxu0 0
        %1133 = vmatprep.subr.bf16.mxu0 0
        %1134 = vmatpush2.bf16.msra.mxu0 0
        %1135 = vmatprep.subr.bf16.mxu0 0
        %1136 = vmatpush2.bf16.msra.mxu0 0
        %1137 = vmatprep.subr.bf16.mxu0 0
        %1138 = vmatpush2.bf16.msra.mxu0 0
        %1139 = vmatprep.subr.bf16.mxu0 0
        %1140 = vmatpush2.bf16.msra.mxu0 0
        %1141 = vmatprep.subr.bf16.mxu0 0
        %1142 = vmatpush2.bf16.msra.mxu0 0
        %1143 = vmatprep.mubr.bf16.mxu0 0
        %1144 = vmatmul.mubr.bf16.gmra.mxu0 %v1055
        %v1145 = vpop.f32.mrf.mxu0
        %v1146 = vadd.f32 0.0, %v1145
        %v1147 = vpop.f32.mrf.mxu0
        %v1148 = vpop.f32.mrf.mxu0
        %v1149 = vadd.f32 0.0, %v1148
        %v1150 = vpop.f32.mrf.mxu0
        %1151 = vmatprep.mubr.bf16.mxu0 0
        %1152 = vmatmul.mubr.bf16.gmra.mxu0 %v1056
        %v1153 = vpop.f32.mrf.mxu0
        %v1154 = vadd.f32 0.0, %v1153
        %v1155 = vpop.f32.mrf.mxu0
        %v1156 = vpop.f32.mrf.mxu0
        %v1157 = vadd.f32 0.0, %v1156
        %v1158 = vpop.f32.mrf.mxu0
        %1159 = vmatprep.mubr.bf16.mxu0 0
        %1160 = vmatmul.mubr.bf16.gmra.mxu0 %v1057
        %v1161 = vpop.f32.mrf.mxu0
        %v1162 = vadd.f32 0.0, %v1161
        %v1163 = vpop.f32.mrf.mxu0
        %v1164 = vpop.f32.mrf.mxu0
        %v1165 = vadd.f32 0.0, %v1164
        %v1166 = vpop.f32.mrf.mxu0
        %1167 = vmatprep.mubr.bf16.mxu0 0
        %1168 = vmatmul.mubr.bf16.gmra.mxu0 %v1058
        %v1169 = vpop.f32.mrf.mxu0
        %v1170 = vadd.f32 0.0, %v1169
        %v1171 = vpop.f32.mrf.mxu0
        %v1172 = vpop.f32.mrf.mxu0
        %v1173 = vadd.f32 0.0, %v1172
        %v1174 = vpop.f32.mrf.mxu0
        %1175 = vdwg.mxu0
        %v1176 = vadd.f32 %v869, %v1146
        %v1177 = vadd.f32 %v872, %v1149
        %v1178 = vadd.f32 %v877, %v1154
        %v1179 = vadd.f32 %v880, %v1157
        %v1180 = vadd.f32 %v885, %v1162
        %v1181 = vadd.f32 %v888, %v1165
        %v1182 = vadd.f32 %v893, %v1170
        %v1183 = vadd.f32 %v896, %v1173
        %s1184 = sadd.s32 %s570, 36
        %s1185 = smul.addr %s1184, 4
        %s1186 = scalar_lea.vmem %s513, %s1185 [#allocation2]
        %v1187 = vld [vmem:[%s1186] sm:$0xf]
        %v1188 = vld [vmem:[%s1186 + $0x8] sm:$0xf]
        %v1189 = vld [vmem:[%s1186 + $0x10] sm:$0xf]
        %v1190 = vld [vmem:[%s1186 + $0x18] sm:$0xf]
        %v1191 = vld [vmem:[%s1186 + $0x20] sm:$0xf]
        %v1192 = vld [vmem:[%s1186 + $0x28] sm:$0xf]
        %v1193 = vld [vmem:[%s1186 + $0x30] sm:$0xf]
        %v1194 = vld [vmem:[%s1186 + $0x38] sm:$0xf]
        %s1195 = scalar_lea.vmem %s551, 192
        %v1196 = vld [vmem:[%s1195] sm:$0xf]
        %v1197 = vld [vmem:[%s1195 + $0x4] sm:$0xf]
        %v1198 = vld [vmem:[%s1195 + $0x8] sm:$0xf]
        %v1199 = vld [vmem:[%s1195 + $0xc] sm:$0xf]
        %v1200 = vld [vmem:[%s1195 + $0x10] sm:$0xf]
        %v1201 = vld [vmem:[%s1195 + $0x14] sm:$0xf]
        %v1202 = vld [vmem:[%s1195 + $0x18] sm:$0xf]
        %v1203 = vld [vmem:[%s1195 + $0x1c] sm:$0xf]
        %v1204 = vld [vmem:[%s1195 + $0x20] sm:$0xf]
        %v1205 = vld [vmem:[%s1195 + $0x24] sm:$0xf]
        %v1206 = vld [vmem:[%s1195 + $0x28] sm:$0xf]
        %v1207 = vld [vmem:[%s1195 + $0x2c] sm:$0xf]
        %v1208 = vld [vmem:[%s1195 + $0x30] sm:$0xf]
        %v1209 = vld [vmem:[%s1195 + $0x34] sm:$0xf]
        %v1210 = vld [vmem:[%s1195 + $0x38] sm:$0xf]
        %v1211 = vld [vmem:[%s1195 + $0x3c] sm:$0xf]
        %v1220 = vunpack.c.l.b16 %v1187
        %v1221 = vunpack.c.l.b16 %v1188
        %v1222 = vunpack.c.l.b16 %v1189
        %v1223 = vunpack.c.l.b16 %v1190
        %v1224 = vunpack.c.l.b16 %v1191
        %v1225 = vunpack.c.l.b16 %v1192
        %v1226 = vunpack.c.l.b16 %v1193
        %v1227 = vunpack.c.l.b16 %v1194
        %v1228 = vpack.c.b16 %v1221, %v1220
        %v1229 = vpack.c.b16 %v1223, %v1222
        %v1230 = vpack.c.b16 %v1225, %v1224
        %v1231 = vpack.c.b16 %v1227, %v1226
        %v1252 = vunpack.c.l.b16 %v1196
        %v1253 = vunpack.c.l.b16 %v1197
        %v1254 = vunpack.c.l.b16 %v1198
        %v1255 = vunpack.c.l.b16 %v1199
        %v1256 = vunpack.c.l.b16 %v1200
        %v1257 = vunpack.c.l.b16 %v1201
        %v1258 = vunpack.c.l.b16 %v1202
        %v1259 = vunpack.c.l.b16 %v1203
        %v1260 = vunpack.c.l.b16 %v1204
        %v1261 = vunpack.c.l.b16 %v1205
        %v1262 = vunpack.c.l.b16 %v1206
        %v1263 = vunpack.c.l.b16 %v1207
        %v1264 = vunpack.c.l.b16 %v1208
        %v1265 = vunpack.c.l.b16 %v1209
        %v1266 = vunpack.c.l.b16 %v1210
        %v1267 = vunpack.c.l.b16 %v1211
        %v1268 = vpack.c.b16 %v1253, %v1252
        %v1269 = vpack.c.b16 %v1255, %v1254
        %v1270 = vpack.c.b16 %v1257, %v1256
        %v1271 = vpack.c.b16 %v1259, %v1258
        %v1272 = vpack.c.b16 %v1261, %v1260
        %v1273 = vpack.c.b16 %v1263, %v1262
        %v1274 = vpack.c.b16 %v1265, %v1264
        %v1275 = vpack.c.b16 %v1267, %v1266
        %1284 = vmatprep.subr.bf16.mxu0 0
        %1285 = vmatpush1.bf16.msra.mxu0 %v1275
        %1286 = vmatprep.subr.bf16.mxu0 0
        %1287 = vmatpush1.bf16.msra.mxu0 %v1274
        %1288 = vmatprep.subr.bf16.mxu0 0
        %1289 = vmatpush1.bf16.msra.mxu0 %v1273
        %1290 = vmatprep.subr.bf16.mxu0 0
        %1291 = vmatpush1.bf16.msra.mxu0 %v1272
        %1292 = vmatprep.subr.bf16.mxu0 0
        %1293 = vmatpush1.bf16.msra.mxu0 %v1271
        %1294 = vmatprep.subr.bf16.mxu0 0
        %1295 = vmatpush1.bf16.msra.mxu0 %v1270
        %1296 = vmatprep.subr.bf16.mxu0 0
        %1297 = vmatpush1.bf16.msra.mxu0 %v1269
        %1298 = vmatprep.subr.bf16.mxu0 0
        %1299 = vmatpush1.bf16.msra.mxu0 %v1268
        %1300 = vmatprep.subr.bf16.mxu0 0
        %1301 = vmatpush2.bf16.msra.mxu0 0
        %1302 = vmatprep.subr.bf16.mxu0 0
        %1303 = vmatpush2.bf16.msra.mxu0 0
        %1304 = vmatprep.subr.bf16.mxu0 0
        %1305 = vmatpush2.bf16.msra.mxu0 0
        %1306 = vmatprep.subr.bf16.mxu0 0
        %1307 = vmatpush2.bf16.msra.mxu0 0
        %1308 = vmatprep.subr.bf16.mxu0 0
        %1309 = vmatpush2.bf16.msra.mxu0 0
        %1310 = vmatprep.subr.bf16.mxu0 0
        %1311 = vmatpush2.bf16.msra.mxu0 0
        %1312 = vmatprep.subr.bf16.mxu0 0
        %1313 = vmatpush2.bf16.msra.mxu0 0
        %1314 = vmatprep.subr.bf16.mxu0 0
        %1315 = vmatpush2.bf16.msra.mxu0 0
        %1316 = vmatprep.mubr.bf16.mxu0 0
        %1317 = vmatmul.mubr.bf16.gmra.mxu0 %v1228
        %v1318 = vpop.f32.mrf.mxu0
        %v1319 = vadd.f32 0.0, %v1318
        %v1320 = vpop.f32.mrf.mxu0
        %v1321 = vpop.f32.mrf.mxu0
        %v1322 = vadd.f32 0.0, %v1321
        %v1323 = vpop.f32.mrf.mxu0
        %1324 = vmatprep.mubr.bf16.mxu0 0
        %1325 = vmatmul.mubr.bf16.gmra.mxu0 %v1229
        %v1326 = vpop.f32.mrf.mxu0
        %v1327 = vadd.f32 0.0, %v1326
        %v1328 = vpop.f32.mrf.mxu0
        %v1329 = vpop.f32.mrf.mxu0
        %v1330 = vadd.f32 0.0, %v1329
        %v1331 = vpop.f32.mrf.mxu0
        %1332 = vmatprep.mubr.bf16.mxu0 0
        %1333 = vmatmul.mubr.bf16.gmra.mxu0 %v1230
        %v1334 = vpop.f32.mrf.mxu0
        %v1335 = vadd.f32 0.0, %v1334
        %v1336 = vpop.f32.mrf.mxu0
        %v1337 = vpop.f32.mrf.mxu0
        %v1338 = vadd.f32 0.0, %v1337
        %v1339 = vpop.f32.mrf.mxu0
        %1340 = vmatprep.mubr.bf16.mxu0 0
        %1341 = vmatmul.mubr.bf16.gmra.mxu0 %v1231
        %v1342 = vpop.f32.mrf.mxu0
        %v1343 = vadd.f32 0.0, %v1342
        %v1344 = vpop.f32.mrf.mxu0
        %v1345 = vpop.f32.mrf.mxu0
        %v1346 = vadd.f32 0.0, %v1345
        %v1347 = vpop.f32.mrf.mxu0
        %1348 = vdwg.mxu0
        %v1349 = vadd.f32 %v1176, %v1319
        %v1350 = vadd.f32 %v1177, %v1322
        %v1351 = vadd.f32 %v1178, %v1327
        %v1352 = vadd.f32 %v1179, %v1330
        %v1353 = vadd.f32 %v1180, %v1335
        %v1354 = vadd.f32 %v1181, %v1338
        %v1355 = vadd.f32 %v1182, %v1343
        %v1356 = vadd.f32 %v1183, %v1346
        %s1357 = sadd.s32 %s570, 54
        %s1358 = smul.addr %s1357, 4
        %s1359 = scalar_lea.vmem %s513, %s1358 [#allocation2]
        %v1360 = vld [vmem:[%s1359] sm:$0xf]
        %v1361 = vld [vmem:[%s1359 + $0x8] sm:$0xf]
        %v1362 = vld [vmem:[%s1359 + $0x10] sm:$0xf]
        %v1363 = vld [vmem:[%s1359 + $0x18] sm:$0xf]
        %v1364 = vld [vmem:[%s1359 + $0x20] sm:$0xf]
        %v1365 = vld [vmem:[%s1359 + $0x28] sm:$0xf]
        %v1366 = vld [vmem:[%s1359 + $0x30] sm:$0xf]
        %v1367 = vld [vmem:[%s1359 + $0x38] sm:$0xf]
        %s1368 = scalar_lea.vmem %s551, 256
        %v1369 = vld [vmem:[%s1368] sm:$0xf]
        %v1370 = vld [vmem:[%s1368 + $0x4] sm:$0xf]
        %v1371 = vld [vmem:[%s1368 + $0x8] sm:$0xf]
        %v1372 = vld [vmem:[%s1368 + $0xc] sm:$0xf]
        %v1373 = vld [vmem:[%s1368 + $0x10] sm:$0xf]
        %v1374 = vld [vmem:[%s1368 + $0x14] sm:$0xf]
        %v1375 = vld [vmem:[%s1368 + $0x18] sm:$0xf]
        %v1376 = vld [vmem:[%s1368 + $0x1c] sm:$0xf]
        %v1377 = vld [vmem:[%s1368 + $0x20] sm:$0xf]
        %v1378 = vld [vmem:[%s1368 + $0x24] sm:$0xf]
        %v1379 = vld [vmem:[%s1368 + $0x28] sm:$0xf]
        %v1380 = vld [vmem:[%s1368 + $0x2c] sm:$0xf]
        %v1381 = vld [vmem:[%s1368 + $0x30] sm:$0xf]
        %v1382 = vld [vmem:[%s1368 + $0x34] sm:$0xf]
        %v1383 = vld [vmem:[%s1368 + $0x38] sm:$0xf]
        %v1384 = vld [vmem:[%s1368 + $0x3c] sm:$0xf]
        %v1393 = vunpack.c.l.b16 %v1360
        %v1394 = vunpack.c.l.b16 %v1361
        %v1395 = vunpack.c.l.b16 %v1362
        %v1396 = vunpack.c.l.b16 %v1363
        %v1397 = vunpack.c.l.b16 %v1364
        %v1398 = vunpack.c.l.b16 %v1365
        %v1399 = vunpack.c.l.b16 %v1366
        %v1400 = vunpack.c.l.b16 %v1367
        %v1401 = vpack.c.b16 %v1394, %v1393
        %v1402 = vpack.c.b16 %v1396, %v1395
        %v1403 = vpack.c.b16 %v1398, %v1397
        %v1404 = vpack.c.b16 %v1400, %v1399
        %v1425 = vunpack.c.l.b16 %v1369
        %v1426 = vunpack.c.l.b16 %v1370
        %v1427 = vunpack.c.l.b16 %v1371
        %v1428 = vunpack.c.l.b16 %v1372
        %v1429 = vunpack.c.l.b16 %v1373
        %v1430 = vunpack.c.l.b16 %v1374
        %v1431 = vunpack.c.l.b16 %v1375
        %v1432 = vunpack.c.l.b16 %v1376
        %v1433 = vunpack.c.l.b16 %v1377
        %v1434 = vunpack.c.l.b16 %v1378
        %v1435 = vunpack.c.l.b16 %v1379
        %v1436 = vunpack.c.l.b16 %v1380
        %v1437 = vunpack.c.l.b16 %v1381
        %v1438 = vunpack.c.l.b16 %v1382
        %v1439 = vunpack.c.l.b16 %v1383
        %v1440 = vunpack.c.l.b16 %v1384
        %v1441 = vpack.c.b16 %v1426, %v1425
        %v1442 = vpack.c.b16 %v1428, %v1427
        %v1443 = vpack.c.b16 %v1430, %v1429
        %v1444 = vpack.c.b16 %v1432, %v1431
        %v1445 = vpack.c.b16 %v1434, %v1433
        %v1446 = vpack.c.b16 %v1436, %v1435
        %v1447 = vpack.c.b16 %v1438, %v1437
        %v1448 = vpack.c.b16 %v1440, %v1439
        %1457 = vmatprep.subr.bf16.mxu0 0
        %1458 = vmatpush1.bf16.msra.mxu0 %v1448
        %1459 = vmatprep.subr.bf16.mxu0 0
        %1460 = vmatpush1.bf16.msra.mxu0 %v1447
        %1461 = vmatprep.subr.bf16.mxu0 0
        %1462 = vmatpush1.bf16.msra.mxu0 %v1446
        %1463 = vmatprep.subr.bf16.mxu0 0
        %1464 = vmatpush1.bf16.msra.mxu0 %v1445
        %1465 = vmatprep.subr.bf16.mxu0 0
        %1466 = vmatpush1.bf16.msra.mxu0 %v1444
        %1467 = vmatprep.subr.bf16.mxu0 0
        %1468 = vmatpush1.bf16.msra.mxu0 %v1443
        %1469 = vmatprep.subr.bf16.mxu0 0
        %1470 = vmatpush1.bf16.msra.mxu0 %v1442
        %1471 = vmatprep.subr.bf16.mxu0 0
        %1472 = vmatpush1.bf16.msra.mxu0 %v1441
        %1473 = vmatprep.subr.bf16.mxu0 0
        %1474 = vmatpush2.bf16.msra.mxu0 0
        %1475 = vmatprep.subr.bf16.mxu0 0
        %1476 = vmatpush2.bf16.msra.mxu0 0
        %1477 = vmatprep.subr.bf16.mxu0 0
        %1478 = vmatpush2.bf16.msra.mxu0 0
        %1479 = vmatprep.subr.bf16.mxu0 0
        %1480 = vmatpush2.bf16.msra.mxu0 0
        %1481 = vmatprep.subr.bf16.mxu0 0
        %1482 = vmatpush2.bf16.msra.mxu0 0
        %1483 = vmatprep.subr.bf16.mxu0 0
        %1484 = vmatpush2.bf16.msra.mxu0 0
        %1485 = vmatprep.subr.bf16.mxu0 0
        %1486 = vmatpush2.bf16.msra.mxu0 0
        %1487 = vmatprep.subr.bf16.mxu0 0
        %1488 = vmatpush2.bf16.msra.mxu0 0
        %1489 = vmatprep.mubr.bf16.mxu0 0
        %1490 = vmatmul.mubr.bf16.gmra.mxu0 %v1401
        %v1491 = vpop.f32.mrf.mxu0
        %v1492 = vadd.f32 0.0, %v1491
        %v1493 = vpop.f32.mrf.mxu0
        %v1494 = vpop.f32.mrf.mxu0
        %v1495 = vadd.f32 0.0, %v1494
        %v1496 = vpop.f32.mrf.mxu0
        %1497 = vmatprep.mubr.bf16.mxu0 0
        %1498 = vmatmul.mubr.bf16.gmra.mxu0 %v1402
        %v1499 = vpop.f32.mrf.mxu0
        %v1500 = vadd.f32 0.0, %v1499
        %v1501 = vpop.f32.mrf.mxu0
        %v1502 = vpop.f32.mrf.mxu0
        %v1503 = vadd.f32 0.0, %v1502
        %v1504 = vpop.f32.mrf.mxu0
        %1505 = vmatprep.mubr.bf16.mxu0 0
        %1506 = vmatmul.mubr.bf16.gmra.mxu0 %v1403
        %v1507 = vpop.f32.mrf.mxu0
        %v1508 = vadd.f32 0.0, %v1507
        %v1509 = vpop.f32.mrf.mxu0
        %v1510 = vpop.f32.mrf.mxu0
        %v1511 = vadd.f32 0.0, %v1510
        %v1512 = vpop.f32.mrf.mxu0
        %1513 = vmatprep.mubr.bf16.mxu0 0
        %1514 = vmatmul.mubr.bf16.gmra.mxu0 %v1404
        %v1515 = vpop.f32.mrf.mxu0
        %v1516 = vadd.f32 0.0, %v1515
        %v1517 = vpop.f32.mrf.mxu0
        %v1518 = vpop.f32.mrf.mxu0
        %v1519 = vadd.f32 0.0, %v1518
        %v1520 = vpop.f32.mrf.mxu0
        %1521 = vdwg.mxu0
        %v1522 = vadd.f32 %v1349, %v1492
        %v1523 = vadd.f32 %v1350, %v1495
        %v1524 = vadd.f32 %v1351, %v1500
        %v1525 = vadd.f32 %v1352, %v1503
        %v1526 = vadd.f32 %v1353, %v1508
        %v1527 = vadd.f32 %v1354, %v1511
        %v1528 = vadd.f32 %v1355, %v1516
        %v1529 = vadd.f32 %v1356, %v1519
        %v1530 = vld [vmem:[%s1186] sm:$0xf]
        %v1531 = vld [vmem:[%s1186 + $0x4] sm:$0x1]
        %v1532 = vld [vmem:[%s1186 + $0x8] sm:$0xf]
        %v1533 = vld [vmem:[%s1186 + $0xc] sm:$0x1]
        %v1534 = vld [vmem:[%s1186 + $0x10] sm:$0xf]
        %v1535 = vld [vmem:[%s1186 + $0x14] sm:$0x1]
        %v1536 = vld [vmem:[%s1186 + $0x18] sm:$0xf]
        %v1537 = vld [vmem:[%s1186 + $0x1c] sm:$0x1]
        %v1538 = vld [vmem:[%s1186 + $0x20] sm:$0xf]
        %v1539 = vld [vmem:[%s1186 + $0x24] sm:$0x1]
        %v1540 = vld [vmem:[%s1186 + $0x28] sm:$0xf]
        %v1541 = vld [vmem:[%s1186 + $0x2c] sm:$0x1]
        %v1542 = vld [vmem:[%s1186 + $0x30] sm:$0xf]
        %v1543 = vld [vmem:[%s1186 + $0x34] sm:$0x1]
        %v1544 = vld [vmem:[%s1186 + $0x38] sm:$0xf]
        %v1545 = vld [vmem:[%s1186 + $0x3c] sm:$0x1]
        %v1547 = vshrl.u32 %v1530, 16
        %v1549 = vrot.slane %v1547, 4
        %v1550 = vshll.u32 %v1530, 16
        %v1552 = vrot.slane %v1550, 5
        %v1553 = vor.u32 %v1549, %v1552
        %v1554 = vrot.slane %v1553, 4
        %v1556 = vshll.u32 %v1531, 16
        %v1558 = vrot.slane %v1556, 5
        %v1559 = vsel %vm917, %v1554, %v1558
        %v1561 = vshrl.u32 %v1532, 16
        %v1563 = vrot.slane %v1561, 4
        %v1564 = vshll.u32 %v1532, 16
        %v1566 = vrot.slane %v1564, 5
        %v1567 = vor.u32 %v1563, %v1566
        %v1568 = vrot.slane %v1567, 4
        %v1570 = vshll.u32 %v1533, 16
        %v1572 = vrot.slane %v1570, 5
        %v1573 = vsel %vm917, %v1568, %v1572
        %v1575 = vshrl.u32 %v1534, 16
        %v1577 = vrot.slane %v1575, 4
        %v1578 = vshll.u32 %v1534, 16
        %v1580 = vrot.slane %v1578, 5
        %v1581 = vor.u32 %v1577, %v1580
        %v1582 = vrot.slane %v1581, 4
        %v1584 = vshll.u32 %v1535, 16
        %v1586 = vrot.slane %v1584, 5
        %v1587 = vsel %vm917, %v1582, %v1586
        %v1589 = vshrl.u32 %v1536, 16
        %v1591 = vrot.slane %v1589, 4
        %v1592 = vshll.u32 %v1536, 16
        %v1594 = vrot.slane %v1592, 5
        %v1595 = vor.u32 %v1591, %v1594
        %v1596 = vrot.slane %v1595, 4
        %v1598 = vshll.u32 %v1537, 16
        %v1600 = vrot.slane %v1598, 5
        %v1601 = vsel %vm917, %v1596, %v1600
        %v1603 = vshrl.u32 %v1538, 16
        %v1605 = vrot.slane %v1603, 4
        %v1606 = vshll.u32 %v1538, 16
        %v1608 = vrot.slane %v1606, 5
        %v1609 = vor.u32 %v1605, %v1608
        %v1610 = vrot.slane %v1609, 4
        %v1612 = vshll.u32 %v1539, 16
        %v1614 = vrot.slane %v1612, 5
        %v1615 = vsel %vm917, %v1610, %v1614
        %v1617 = vshrl.u32 %v1540, 16
        %v1619 = vrot.slane %v1617, 4
        %v1620 = vshll.u32 %v1540, 16
        %v1622 = vrot.slane %v1620, 5
        %v1623 = vor.u32 %v1619, %v1622
        %v1624 = vrot.slane %v1623, 4
        %v1626 = vshll.u32 %v1541, 16
        %v1628 = vrot.slane %v1626, 5
        %v1629 = vsel %vm917, %v1624, %v1628
        %v1631 = vshrl.u32 %v1542, 16
        %v1633 = vrot.slane %v1631, 4
        %v1634 = vshll.u32 %v1542, 16
        %v1636 = vrot.slane %v1634, 5
        %v1637 = vor.u32 %v1633, %v1636
        %v1638 = vrot.slane %v1637, 4
        %v1640 = vshll.u32 %v1543, 16
        %v1642 = vrot.slane %v1640, 5
        %v1643 = vsel %vm917, %v1638, %v1642
        %v1645 = vshrl.u32 %v1544, 16
        %v1647 = vrot.slane %v1645, 4
        %v1648 = vshll.u32 %v1544, 16
        %v1650 = vrot.slane %v1648, 5
        %v1651 = vor.u32 %v1647, %v1650
        %v1652 = vrot.slane %v1651, 4
        %v1654 = vshll.u32 %v1545, 16
        %v1656 = vrot.slane %v1654, 5
        %v1657 = vsel %vm917, %v1652, %v1656
        %s1658 = scalar_lea.vmem %s551, 320
        %v1659 = vld [vmem:[%s1658] sm:$0xf]
        %v1660 = vld [vmem:[%s1658 + $0x4] sm:$0xf]
        %v1661 = vld [vmem:[%s1658 + $0x8] sm:$0xf]
        %v1662 = vld [vmem:[%s1658 + $0xc] sm:$0xf]
        %v1663 = vld [vmem:[%s1658 + $0x10] sm:$0xf]
        %v1664 = vld [vmem:[%s1658 + $0x14] sm:$0xf]
        %v1665 = vld [vmem:[%s1658 + $0x18] sm:$0xf]
        %v1666 = vld [vmem:[%s1658 + $0x1c] sm:$0xf]
        %v1667 = vld [vmem:[%s1658 + $0x20] sm:$0xf]
        %v1668 = vld [vmem:[%s1658 + $0x24] sm:$0xf]
        %v1669 = vld [vmem:[%s1658 + $0x28] sm:$0xf]
        %v1670 = vld [vmem:[%s1658 + $0x2c] sm:$0xf]
        %v1671 = vld [vmem:[%s1658 + $0x30] sm:$0xf]
        %v1672 = vld [vmem:[%s1658 + $0x34] sm:$0xf]
        %v1673 = vld [vmem:[%s1658 + $0x38] sm:$0xf]
        %v1674 = vld [vmem:[%s1658 + $0x3c] sm:$0xf]
        %v1675 = vunpack.c.l.b16 %v1559
        %v1676 = vunpack.c.l.b16 %v1573
        %v1677 = vunpack.c.l.b16 %v1587
        %v1678 = vunpack.c.l.b16 %v1601
        %v1679 = vunpack.c.l.b16 %v1615
        %v1680 = vunpack.c.l.b16 %v1629
        %v1681 = vunpack.c.l.b16 %v1643
        %v1682 = vunpack.c.l.b16 %v1657
        %v1683 = vpack.c.b16 %v1676, %v1675
        %v1684 = vpack.c.b16 %v1678, %v1677
        %v1685 = vpack.c.b16 %v1680, %v1679
        %v1686 = vpack.c.b16 %v1682, %v1681
        %v1707 = vunpack.c.l.b16 %v1659
        %v1708 = vunpack.c.l.b16 %v1660
        %v1709 = vunpack.c.l.b16 %v1661
        %v1710 = vunpack.c.l.b16 %v1662
        %v1711 = vunpack.c.l.b16 %v1663
        %v1712 = vunpack.c.l.b16 %v1664
        %v1713 = vunpack.c.l.b16 %v1665
        %v1714 = vunpack.c.l.b16 %v1666
        %v1715 = vunpack.c.l.b16 %v1667
        %v1716 = vunpack.c.l.b16 %v1668
        %v1717 = vunpack.c.l.b16 %v1669
        %v1718 = vunpack.c.l.b16 %v1670
        %v1719 = vunpack.c.l.b16 %v1671
        %v1720 = vunpack.c.l.b16 %v1672
        %v1721 = vunpack.c.l.b16 %v1673
        %v1722 = vunpack.c.l.b16 %v1674
        %v1723 = vpack.c.b16 %v1708, %v1707
        %v1724 = vpack.c.b16 %v1710, %v1709
        %v1725 = vpack.c.b16 %v1712, %v1711
        %v1726 = vpack.c.b16 %v1714, %v1713
        %v1727 = vpack.c.b16 %v1716, %v1715
        %v1728 = vpack.c.b16 %v1718, %v1717
        %v1729 = vpack.c.b16 %v1720, %v1719
        %v1730 = vpack.c.b16 %v1722, %v1721
        %1739 = vmatprep.subr.bf16.mxu0 0
        %1740 = vmatpush1.bf16.msra.mxu0 %v1730
        %1741 = vmatprep.subr.bf16.mxu0 0
        %1742 = vmatpush1.bf16.msra.mxu0 %v1729
        %1743 = vmatprep.subr.bf16.mxu0 0
        %1744 = vmatpush1.bf16.msra.mxu0 %v1728
        %1745 = vmatprep.subr.bf16.mxu0 0
        %1746 = vmatpush1.bf16.msra.mxu0 %v1727
        %1747 = vmatprep.subr.bf16.mxu0 0
        %1748 = vmatpush1.bf16.msra.mxu0 %v1726
        %1749 = vmatprep.subr.bf16.mxu0 0
        %1750 = vmatpush1.bf16.msra.mxu0 %v1725
        %1751 = vmatprep.subr.bf16.mxu0 0
        %1752 = vmatpush1.bf16.msra.mxu0 %v1724
        %1753 = vmatprep.subr.bf16.mxu0 0
        %1754 = vmatpush1.bf16.msra.mxu0 %v1723
        %1755 = vmatprep.subr.bf16.mxu0 0
        %1756 = vmatpush2.bf16.msra.mxu0 0
        %1757 = vmatprep.subr.bf16.mxu0 0
        %1758 = vmatpush2.bf16.msra.mxu0 0
        %1759 = vmatprep.subr.bf16.mxu0 0
        %1760 = vmatpush2.bf16.msra.mxu0 0
        %1761 = vmatprep.subr.bf16.mxu0 0
        %1762 = vmatpush2.bf16.msra.mxu0 0
        %1763 = vmatprep.subr.bf16.mxu0 0
        %1764 = vmatpush2.bf16.msra.mxu0 0
        %1765 = vmatprep.subr.bf16.mxu0 0
        %1766 = vmatpush2.bf16.msra.mxu0 0
        %1767 = vmatprep.subr.bf16.mxu0 0
        %1768 = vmatpush2.bf16.msra.mxu0 0
        %1769 = vmatprep.subr.bf16.mxu0 0
        %1770 = vmatpush2.bf16.msra.mxu0 0
        %1771 = vmatprep.mubr.bf16.mxu0 0
        %1772 = vmatmul.mubr.bf16.gmra.mxu0 %v1683
        %v1773 = vpop.f32.mrf.mxu0
        %v1774 = vadd.f32 0.0, %v1773
        %v1775 = vpop.f32.mrf.mxu0
        %v1776 = vpop.f32.mrf.mxu0
        %v1777 = vadd.f32 0.0, %v1776
        %v1778 = vpop.f32.mrf.mxu0
        %1779 = vmatprep.mubr.bf16.mxu0 0
        %1780 = vmatmul.mubr.bf16.gmra.mxu0 %v1684
        %v1781 = vpop.f32.mrf.mxu0
        %v1782 = vadd.f32 0.0, %v1781
        %v1783 = vpop.f32.mrf.mxu0
        %v1784 = vpop.f32.mrf.mxu0
        %v1785 = vadd.f32 0.0, %v1784
        %v1786 = vpop.f32.mrf.mxu0
        %1787 = vmatprep.mubr.bf16.mxu0 0
        %1788 = vmatmul.mubr.bf16.gmra.mxu0 %v1685
        %v1789 = vpop.f32.mrf.mxu0
        %v1790 = vadd.f32 0.0, %v1789
        %v1791 = vpop.f32.mrf.mxu0
        %v1792 = vpop.f32.mrf.mxu0
        %v1793 = vadd.f32 0.0, %v1792
        %v1794 = vpop.f32.mrf.mxu0
        %1795 = vmatprep.mubr.bf16.mxu0 0
        %1796 = vmatmul.mubr.bf16.gmra.mxu0 %v1686
        %v1797 = vpop.f32.mrf.mxu0
        %v1798 = vadd.f32 0.0, %v1797
        %v1799 = vpop.f32.mrf.mxu0
        %v1800 = vpop.f32.mrf.mxu0
        %v1801 = vadd.f32 0.0, %v1800
        %v1802 = vpop.f32.mrf.mxu0
        %1803 = vdwg.mxu0
        %v1804 = vadd.f32 %v1522, %v1774
        %v1805 = vadd.f32 %v1523, %v1777
        %v1806 = vadd.f32 %v1524, %v1782
        %v1807 = vadd.f32 %v1525, %v1785
        %v1808 = vadd.f32 %v1526, %v1790
        %v1809 = vadd.f32 %v1527, %v1793
        %v1810 = vadd.f32 %v1528, %v1798
        %v1811 = vadd.f32 %v1529, %v1801
        %s1812 = sadd.s32 %s569, 1
        %s1813 = smul.u32 %s1812, 2
        %s1814 = smul.addr %s1813, 4
        %s1815 = scalar_lea.vmem %s513, %s1814 [#allocation2]
        %v1816 = vld [vmem:[%s1815] sm:$0xf]
        %v1817 = vld [vmem:[%s1815 + $0x8] sm:$0xf]
        %v1818 = vld [vmem:[%s1815 + $0x10] sm:$0xf]
        %v1819 = vld [vmem:[%s1815 + $0x18] sm:$0xf]
        %v1820 = vld [vmem:[%s1815 + $0x20] sm:$0xf]
        %v1821 = vld [vmem:[%s1815 + $0x28] sm:$0xf]
        %v1822 = vld [vmem:[%s1815 + $0x30] sm:$0xf]
        %v1823 = vld [vmem:[%s1815 + $0x38] sm:$0xf]
        %s1824 = scalar_lea.vmem %s551, 384
        %v1825 = vld [vmem:[%s1824] sm:$0xf]
        %v1826 = vld [vmem:[%s1824 + $0x4] sm:$0xf]
        %v1827 = vld [vmem:[%s1824 + $0x8] sm:$0xf]
        %v1828 = vld [vmem:[%s1824 + $0xc] sm:$0xf]
        %v1829 = vld [vmem:[%s1824 + $0x10] sm:$0xf]
        %v1830 = vld [vmem:[%s1824 + $0x14] sm:$0xf]
        %v1831 = vld [vmem:[%s1824 + $0x18] sm:$0xf]
        %v1832 = vld [vmem:[%s1824 + $0x1c] sm:$0xf]
        %v1833 = vld [vmem:[%s1824 + $0x20] sm:$0xf]
        %v1834 = vld [vmem:[%s1824 + $0x24] sm:$0xf]
        %v1835 = vld [vmem:[%s1824 + $0x28] sm:$0xf]
        %v1836 = vld [vmem:[%s1824 + $0x2c] sm:$0xf]
        %v1837 = vld [vmem:[%s1824 + $0x30] sm:$0xf]
        %v1838 = vld [vmem:[%s1824 + $0x34] sm:$0xf]
        %v1839 = vld [vmem:[%s1824 + $0x38] sm:$0xf]
        %v1840 = vld [vmem:[%s1824 + $0x3c] sm:$0xf]
        %v1849 = vunpack.c.l.b16 %v1816
        %v1850 = vunpack.c.l.b16 %v1817
        %v1851 = vunpack.c.l.b16 %v1818
        %v1852 = vunpack.c.l.b16 %v1819
        %v1853 = vunpack.c.l.b16 %v1820
        %v1854 = vunpack.c.l.b16 %v1821
        %v1855 = vunpack.c.l.b16 %v1822
        %v1856 = vunpack.c.l.b16 %v1823
        %v1857 = vpack.c.b16 %v1850, %v1849
        %v1858 = vpack.c.b16 %v1852, %v1851
        %v1859 = vpack.c.b16 %v1854, %v1853
        %v1860 = vpack.c.b16 %v1856, %v1855
        %v1881 = vunpack.c.l.b16 %v1825
        %v1882 = vunpack.c.l.b16 %v1826
        %v1883 = vunpack.c.l.b16 %v1827
        %v1884 = vunpack.c.l.b16 %v1828
        %v1885 = vunpack.c.l.b16 %v1829
        %v1886 = vunpack.c.l.b16 %v1830
        %v1887 = vunpack.c.l.b16 %v1831
        %v1888 = vunpack.c.l.b16 %v1832
        %v1889 = vunpack.c.l.b16 %v1833
        %v1890 = vunpack.c.l.b16 %v1834
        %v1891 = vunpack.c.l.b16 %v1835
        %v1892 = vunpack.c.l.b16 %v1836
        %v1893 = vunpack.c.l.b16 %v1837
        %v1894 = vunpack.c.l.b16 %v1838
        %v1895 = vunpack.c.l.b16 %v1839
        %v1896 = vunpack.c.l.b16 %v1840
        %v1897 = vpack.c.b16 %v1882, %v1881
        %v1898 = vpack.c.b16 %v1884, %v1883
        %v1899 = vpack.c.b16 %v1886, %v1885
        %v1900 = vpack.c.b16 %v1888, %v1887
        %v1901 = vpack.c.b16 %v1890, %v1889
        %v1902 = vpack.c.b16 %v1892, %v1891
        %v1903 = vpack.c.b16 %v1894, %v1893
        %v1904 = vpack.c.b16 %v1896, %v1895
        %1913 = vmatprep.subr.bf16.mxu0 0
        %1914 = vmatpush1.bf16.msra.mxu0 %v1904
        %1915 = vmatprep.subr.bf16.mxu0 0
        %1916 = vmatpush1.bf16.msra.mxu0 %v1903
        %1917 = vmatprep.subr.bf16.mxu0 0
        %1918 = vmatpush1.bf16.msra.mxu0 %v1902
        %1919 = vmatprep.subr.bf16.mxu0 0
        %1920 = vmatpush1.bf16.msra.mxu0 %v1901
        %1921 = vmatprep.subr.bf16.mxu0 0
        %1922 = vmatpush1.bf16.msra.mxu0 %v1900
        %1923 = vmatprep.subr.bf16.mxu0 0
        %1924 = vmatpush1.bf16.msra.mxu0 %v1899
        %1925 = vmatprep.subr.bf16.mxu0 0
        %1926 = vmatpush1.bf16.msra.mxu0 %v1898
        %1927 = vmatprep.subr.bf16.mxu0 0
        %1928 = vmatpush1.bf16.msra.mxu0 %v1897
        %1929 = vmatprep.subr.bf16.mxu0 0
        %1930 = vmatpush2.bf16.msra.mxu0 0
        %1931 = vmatprep.subr.bf16.mxu0 0
        %1932 = vmatpush2.bf16.msra.mxu0 0
        %1933 = vmatprep.subr.bf16.mxu0 0
        %1934 = vmatpush2.bf16.msra.mxu0 0
        %1935 = vmatprep.subr.bf16.mxu0 0
        %1936 = vmatpush2.bf16.msra.mxu0 0
        %1937 = vmatprep.subr.bf16.mxu0 0
        %1938 = vmatpush2.bf16.msra.mxu0 0
        %1939 = vmatprep.subr.bf16.mxu0 0
        %1940 = vmatpush2.bf16.msra.mxu0 0
        %1941 = vmatprep.subr.bf16.mxu0 0
        %1942 = vmatpush2.bf16.msra.mxu0 0
        %1943 = vmatprep.subr.bf16.mxu0 0
        %1944 = vmatpush2.bf16.msra.mxu0 0
        %1945 = vmatprep.mubr.bf16.mxu0 0
        %1946 = vmatmul.mubr.bf16.gmra.mxu0 %v1857
        %v1947 = vpop.f32.mrf.mxu0
        %v1948 = vadd.f32 0.0, %v1947
        %v1949 = vpop.f32.mrf.mxu0
        %v1950 = vpop.f32.mrf.mxu0
        %v1951 = vadd.f32 0.0, %v1950
        %v1952 = vpop.f32.mrf.mxu0
        %1953 = vmatprep.mubr.bf16.mxu0 0
        %1954 = vmatmul.mubr.bf16.gmra.mxu0 %v1858
        %v1955 = vpop.f32.mrf.mxu0
        %v1956 = vadd.f32 0.0, %v1955
        %v1957 = vpop.f32.mrf.mxu0
        %v1958 = vpop.f32.mrf.mxu0
        %v1959 = vadd.f32 0.0, %v1958
        %v1960 = vpop.f32.mrf.mxu0
        %1961 = vmatprep.mubr.bf16.mxu0 0
        %1962 = vmatmul.mubr.bf16.gmra.mxu0 %v1859
        %v1963 = vpop.f32.mrf.mxu0
        %v1964 = vadd.f32 0.0, %v1963
        %v1965 = vpop.f32.mrf.mxu0
        %v1966 = vpop.f32.mrf.mxu0
        %v1967 = vadd.f32 0.0, %v1966
        %v1968 = vpop.f32.mrf.mxu0
        %1969 = vmatprep.mubr.bf16.mxu0 0
        %1970 = vmatmul.mubr.bf16.gmra.mxu0 %v1860
        %v1971 = vpop.f32.mrf.mxu0
        %v1972 = vadd.f32 0.0, %v1971
        %v1973 = vpop.f32.mrf.mxu0
        %v1974 = vpop.f32.mrf.mxu0
        %v1975 = vadd.f32 0.0, %v1974
        %v1976 = vpop.f32.mrf.mxu0
        %1977 = vdwg.mxu0
        %v1978 = vadd.f32 %v1804, %v1948
        %v1979 = vadd.f32 %v1805, %v1951
        %v1980 = vadd.f32 %v1806, %v1956
        %v1981 = vadd.f32 %v1807, %v1959
        %v1982 = vadd.f32 %v1808, %v1964
        %v1983 = vadd.f32 %v1809, %v1967
        %v1984 = vadd.f32 %v1810, %v1972
        %v1985 = vadd.f32 %v1811, %v1975
        %s1986 = sadd.s32 %s1813, 18
        %s1987 = smul.addr %s1986, 4
        %s1988 = scalar_lea.vmem %s513, %s1987 [#allocation2]
        %v1989 = vld [vmem:[%s1988] sm:$0xf]
        %v1990 = vld [vmem:[%s1988 + $0x8] sm:$0xf]
        %v1991 = vld [vmem:[%s1988 + $0x10] sm:$0xf]
        %v1992 = vld [vmem:[%s1988 + $0x18] sm:$0xf]
        %v1993 = vld [vmem:[%s1988 + $0x20] sm:$0xf]
        %v1994 = vld [vmem:[%s1988 + $0x28] sm:$0xf]
        %v1995 = vld [vmem:[%s1988 + $0x30] sm:$0xf]
        %v1996 = vld [vmem:[%s1988 + $0x38] sm:$0xf]
        %s1997 = scalar_lea.vmem %s551, 448
        %v1998 = vld [vmem:[%s1997] sm:$0xf]
        %v1999 = vld [vmem:[%s1997 + $0x4] sm:$0xf]
        %v2000 = vld [vmem:[%s1997 + $0x8] sm:$0xf]
        %v2001 = vld [vmem:[%s1997 + $0xc] sm:$0xf]
        %v2002 = vld [vmem:[%s1997 + $0x10] sm:$0xf]
        %v2003 = vld [vmem:[%s1997 + $0x14] sm:$0xf]
        %v2004 = vld [vmem:[%s1997 + $0x18] sm:$0xf]
        %v2005 = vld [vmem:[%s1997 + $0x1c] sm:$0xf]
        %v2006 = vld [vmem:[%s1997 + $0x20] sm:$0xf]
        %v2007 = vld [vmem:[%s1997 + $0x24] sm:$0xf]
        %v2008 = vld [vmem:[%s1997 + $0x28] sm:$0xf]
        %v2009 = vld [vmem:[%s1997 + $0x2c] sm:$0xf]
        %v2010 = vld [vmem:[%s1997 + $0x30] sm:$0xf]
        %v2011 = vld [vmem:[%s1997 + $0x34] sm:$0xf]
        %v2012 = vld [vmem:[%s1997 + $0x38] sm:$0xf]
        %v2013 = vld [vmem:[%s1997 + $0x3c] sm:$0xf]
        %v2022 = vunpack.c.l.b16 %v1989
        %v2023 = vunpack.c.l.b16 %v1990
        %v2024 = vunpack.c.l.b16 %v1991
        %v2025 = vunpack.c.l.b16 %v1992
        %v2026 = vunpack.c.l.b16 %v1993
        %v2027 = vunpack.c.l.b16 %v1994
        %v2028 = vunpack.c.l.b16 %v1995
        %v2029 = vunpack.c.l.b16 %v1996
        %v2030 = vpack.c.b16 %v2023, %v2022
        %v2031 = vpack.c.b16 %v2025, %v2024
        %v2032 = vpack.c.b16 %v2027, %v2026
        %v2033 = vpack.c.b16 %v2029, %v2028
        %v2054 = vunpack.c.l.b16 %v1998
        %v2055 = vunpack.c.l.b16 %v1999
        %v2056 = vunpack.c.l.b16 %v2000
        %v2057 = vunpack.c.l.b16 %v2001
        %v2058 = vunpack.c.l.b16 %v2002
        %v2059 = vunpack.c.l.b16 %v2003
        %v2060 = vunpack.c.l.b16 %v2004
        %v2061 = vunpack.c.l.b16 %v2005
        %v2062 = vunpack.c.l.b16 %v2006
        %v2063 = vunpack.c.l.b16 %v2007
        %v2064 = vunpack.c.l.b16 %v2008
        %v2065 = vunpack.c.l.b16 %v2009
        %v2066 = vunpack.c.l.b16 %v2010
        %v2067 = vunpack.c.l.b16 %v2011
        %v2068 = vunpack.c.l.b16 %v2012
        %v2069 = vunpack.c.l.b16 %v2013
        %v2070 = vpack.c.b16 %v2055, %v2054
        %v2071 = vpack.c.b16 %v2057, %v2056
        %v2072 = vpack.c.b16 %v2059, %v2058
        %v2073 = vpack.c.b16 %v2061, %v2060
        %v2074 = vpack.c.b16 %v2063, %v2062
        %v2075 = vpack.c.b16 %v2065, %v2064
        %v2076 = vpack.c.b16 %v2067, %v2066
        %v2077 = vpack.c.b16 %v2069, %v2068
        %2086 = vmatprep.subr.bf16.mxu0 0
        %2087 = vmatpush1.bf16.msra.mxu0 %v2077
        %2088 = vmatprep.subr.bf16.mxu0 0
        %2089 = vmatpush1.bf16.msra.mxu0 %v2076
        %2090 = vmatprep.subr.bf16.mxu0 0
        %2091 = vmatpush1.bf16.msra.mxu0 %v2075
        %2092 = vmatprep.subr.bf16.mxu0 0
        %2093 = vmatpush1.bf16.msra.mxu0 %v2074
        %2094 = vmatprep.subr.bf16.mxu0 0
        %2095 = vmatpush1.bf16.msra.mxu0 %v2073
        %2096 = vmatprep.subr.bf16.mxu0 0
        %2097 = vmatpush1.bf16.msra.mxu0 %v2072
        %2098 = vmatprep.subr.bf16.mxu0 0
        %2099 = vmatpush1.bf16.msra.mxu0 %v2071
        %2100 = vmatprep.subr.bf16.mxu0 0
        %2101 = vmatpush1.bf16.msra.mxu0 %v2070
        %2102 = vmatprep.subr.bf16.mxu0 0
        %2103 = vmatpush2.bf16.msra.mxu0 0
        %2104 = vmatprep.subr.bf16.mxu0 0
        %2105 = vmatpush2.bf16.msra.mxu0 0
        %2106 = vmatprep.subr.bf16.mxu0 0
        %2107 = vmatpush2.bf16.msra.mxu0 0
        %2108 = vmatprep.subr.bf16.mxu0 0
        %2109 = vmatpush2.bf16.msra.mxu0 0
        %2110 = vmatprep.subr.bf16.mxu0 0
        %2111 = vmatpush2.bf16.msra.mxu0 0
        %2112 = vmatprep.subr.bf16.mxu0 0
        %2113 = vmatpush2.bf16.msra.mxu0 0
        %2114 = vmatprep.subr.bf16.mxu0 0
        %2115 = vmatpush2.bf16.msra.mxu0 0
        %2116 = vmatprep.subr.bf16.mxu0 0
        %2117 = vmatpush2.bf16.msra.mxu0 0
        %2118 = vmatprep.mubr.bf16.mxu0 0
        %2119 = vmatmul.mubr.bf16.gmra.mxu0 %v2030
        %v2120 = vpop.f32.mrf.mxu0
        %v2121 = vadd.f32 0.0, %v2120
        %v2122 = vpop.f32.mrf.mxu0
        %v2123 = vpop.f32.mrf.mxu0
        %v2124 = vadd.f32 0.0, %v2123
        %v2125 = vpop.f32.mrf.mxu0
        %2126 = vmatprep.mubr.bf16.mxu0 0
        %2127 = vmatmul.mubr.bf16.gmra.mxu0 %v2031
        %v2128 = vpop.f32.mrf.mxu0
        %v2129 = vadd.f32 0.0, %v2128
        %v2130 = vpop.f32.mrf.mxu0
        %v2131 = vpop.f32.mrf.mxu0
        %v2132 = vadd.f32 0.0, %v2131
        %v2133 = vpop.f32.mrf.mxu0
        %2134 = vmatprep.mubr.bf16.mxu0 0
        %2135 = vmatmul.mubr.bf16.gmra.mxu0 %v2032
        %v2136 = vpop.f32.mrf.mxu0
        %v2137 = vadd.f32 0.0, %v2136
        %v2138 = vpop.f32.mrf.mxu0
        %v2139 = vpop.f32.mrf.mxu0
        %v2140 = vadd.f32 0.0, %v2139
        %v2141 = vpop.f32.mrf.mxu0
        %2142 = vmatprep.mubr.bf16.mxu0 0
        %2143 = vmatmul.mubr.bf16.gmra.mxu0 %v2033
        %v2144 = vpop.f32.mrf.mxu0
        %v2145 = vadd.f32 0.0, %v2144
        %v2146 = vpop.f32.mrf.mxu0
        %v2147 = vpop.f32.mrf.mxu0
        %v2148 = vadd.f32 0.0, %v2147
        %v2149 = vpop.f32.mrf.mxu0
        %2150 = vdwg.mxu0
        %v2151 = vadd.f32 %v1978, %v2121
        %v2152 = vadd.f32 %v1979, %v2124
        %v2153 = vadd.f32 %v1980, %v2129
        %v2154 = vadd.f32 %v1981, %v2132
        %v2155 = vadd.f32 %v1982, %v2137
        %v2156 = vadd.f32 %v1983, %v2140
        %v2157 = vadd.f32 %v1984, %v2145
        %v2158 = vadd.f32 %v1985, %v2148
        %v2159 = vld [vmem:[%s1815] sm:$0xf]
        %v2160 = vld [vmem:[%s1815 + $0x4] sm:$0x1]
        %v2161 = vld [vmem:[%s1815 + $0x8] sm:$0xf]
        %v2162 = vld [vmem:[%s1815 + $0xc] sm:$0x1]
        %v2163 = vld [vmem:[%s1815 + $0x10] sm:$0xf]
        %v2164 = vld [vmem:[%s1815 + $0x14] sm:$0x1]
        %v2165 = vld [vmem:[%s1815 + $0x18] sm:$0xf]
        %v2166 = vld [vmem:[%s1815 + $0x1c] sm:$0x1]
        %v2167 = vld [vmem:[%s1815 + $0x20] sm:$0xf]
        %v2168 = vld [vmem:[%s1815 + $0x24] sm:$0x1]
        %v2169 = vld [vmem:[%s1815 + $0x28] sm:$0xf]
        %v2170 = vld [vmem:[%s1815 + $0x2c] sm:$0x1]
        %v2171 = vld [vmem:[%s1815 + $0x30] sm:$0xf]
        %v2172 = vld [vmem:[%s1815 + $0x34] sm:$0x1]
        %v2173 = vld [vmem:[%s1815 + $0x38] sm:$0xf]
        %v2174 = vld [vmem:[%s1815 + $0x3c] sm:$0x1]
        %v2176 = vshrl.u32 %v2159, 16
        %v2178 = vrot.slane %v2176, 4
        %v2179 = vshll.u32 %v2159, 16
        %v2181 = vrot.slane %v2179, 5
        %v2182 = vor.u32 %v2178, %v2181
        %v2183 = vrot.slane %v2182, 4
        %v2185 = vshll.u32 %v2160, 16
        %v2187 = vrot.slane %v2185, 5
        %v2188 = vsel %vm917, %v2183, %v2187
        %v2190 = vshrl.u32 %v2161, 16
        %v2192 = vrot.slane %v2190, 4
        %v2193 = vshll.u32 %v2161, 16
        %v2195 = vrot.slane %v2193, 5
        %v2196 = vor.u32 %v2192, %v2195
        %v2197 = vrot.slane %v2196, 4
        %v2199 = vshll.u32 %v2162, 16
        %v2201 = vrot.slane %v2199, 5
        %v2202 = vsel %vm917, %v2197, %v2201
        %v2204 = vshrl.u32 %v2163, 16
        %v2206 = vrot.slane %v2204, 4
        %v2207 = vshll.u32 %v2163, 16
        %v2209 = vrot.slane %v2207, 5
        %v2210 = vor.u32 %v2206, %v2209
        %v2211 = vrot.slane %v2210, 4
        %v2213 = vshll.u32 %v2164, 16
        %v2215 = vrot.slane %v2213, 5
        %v2216 = vsel %vm917, %v2211, %v2215
        %v2218 = vshrl.u32 %v2165, 16
        %v2220 = vrot.slane %v2218, 4
        %v2221 = vshll.u32 %v2165, 16
        %v2223 = vrot.slane %v2221, 5
        %v2224 = vor.u32 %v2220, %v2223
        %v2225 = vrot.slane %v2224, 4
        %v2227 = vshll.u32 %v2166, 16
        %v2229 = vrot.slane %v2227, 5
        %v2230 = vsel %vm917, %v2225, %v2229
        %v2232 = vshrl.u32 %v2167, 16
        %v2234 = vrot.slane %v2232, 4
        %v2235 = vshll.u32 %v2167, 16
        %v2237 = vrot.slane %v2235, 5
        %v2238 = vor.u32 %v2234, %v2237
        %v2239 = vrot.slane %v2238, 4
        %v2241 = vshll.u32 %v2168, 16
        %v2243 = vrot.slane %v2241, 5
        %v2244 = vsel %vm917, %v2239, %v2243
        %v2246 = vshrl.u32 %v2169, 16
        %v2248 = vrot.slane %v2246, 4
        %v2249 = vshll.u32 %v2169, 16
        %v2251 = vrot.slane %v2249, 5
        %v2252 = vor.u32 %v2248, %v2251
        %v2253 = vrot.slane %v2252, 4
        %v2255 = vshll.u32 %v2170, 16
        %v2257 = vrot.slane %v2255, 5
        %v2258 = vsel %vm917, %v2253, %v2257
        %v2260 = vshrl.u32 %v2171, 16
        %v2262 = vrot.slane %v2260, 4
        %v2263 = vshll.u32 %v2171, 16
        %v2265 = vrot.slane %v2263, 5
        %v2266 = vor.u32 %v2262, %v2265
        %v2267 = vrot.slane %v2266, 4
        %v2269 = vshll.u32 %v2172, 16
        %v2271 = vrot.slane %v2269, 5
        %v2272 = vsel %vm917, %v2267, %v2271
        %v2274 = vshrl.u32 %v2173, 16
        %v2276 = vrot.slane %v2274, 4
        %v2277 = vshll.u32 %v2173, 16
        %v2279 = vrot.slane %v2277, 5
        %v2280 = vor.u32 %v2276, %v2279
        %v2281 = vrot.slane %v2280, 4
        %v2283 = vshll.u32 %v2174, 16
        %v2285 = vrot.slane %v2283, 5
        %v2286 = vsel %vm917, %v2281, %v2285
        %s2287 = scalar_lea.vmem %s551, 512
        %v2288 = vld [vmem:[%s2287] sm:$0xf]
        %v2289 = vld [vmem:[%s2287 + $0x4] sm:$0xf]
        %v2290 = vld [vmem:[%s2287 + $0x8] sm:$0xf]
        %v2291 = vld [vmem:[%s2287 + $0xc] sm:$0xf]
        %v2292 = vld [vmem:[%s2287 + $0x10] sm:$0xf]
        %v2293 = vld [vmem:[%s2287 + $0x14] sm:$0xf]
        %v2294 = vld [vmem:[%s2287 + $0x18] sm:$0xf]
        %v2295 = vld [vmem:[%s2287 + $0x1c] sm:$0xf]
        %v2296 = vld [vmem:[%s2287 + $0x20] sm:$0xf]
        %v2297 = vld [vmem:[%s2287 + $0x24] sm:$0xf]
        %v2298 = vld [vmem:[%s2287 + $0x28] sm:$0xf]
        %v2299 = vld [vmem:[%s2287 + $0x2c] sm:$0xf]
        %v2300 = vld [vmem:[%s2287 + $0x30] sm:$0xf]
        %v2301 = vld [vmem:[%s2287 + $0x34] sm:$0xf]
        %v2302 = vld [vmem:[%s2287 + $0x38] sm:$0xf]
        %v2303 = vld [vmem:[%s2287 + $0x3c] sm:$0xf]
        %v2304 = vunpack.c.l.b16 %v2188
        %v2305 = vunpack.c.l.b16 %v2202
        %v2306 = vunpack.c.l.b16 %v2216
        %v2307 = vunpack.c.l.b16 %v2230
        %v2308 = vunpack.c.l.b16 %v2244
        %v2309 = vunpack.c.l.b16 %v2258
        %v2310 = vunpack.c.l.b16 %v2272
        %v2311 = vunpack.c.l.b16 %v2286
        %v2312 = vpack.c.b16 %v2305, %v2304
        %v2313 = vpack.c.b16 %v2307, %v2306
        %v2314 = vpack.c.b16 %v2309, %v2308
        %v2315 = vpack.c.b16 %v2311, %v2310
        %v2336 = vunpack.c.l.b16 %v2288
        %v2337 = vunpack.c.l.b16 %v2289
        %v2338 = vunpack.c.l.b16 %v2290
        %v2339 = vunpack.c.l.b16 %v2291
        %v2340 = vunpack.c.l.b16 %v2292
        %v2341 = vunpack.c.l.b16 %v2293
        %v2342 = vunpack.c.l.b16 %v2294
        %v2343 = vunpack.c.l.b16 %v2295
        %v2344 = vunpack.c.l.b16 %v2296
        %v2345 = vunpack.c.l.b16 %v2297
        %v2346 = vunpack.c.l.b16 %v2298
        %v2347 = vunpack.c.l.b16 %v2299
        %v2348 = vunpack.c.l.b16 %v2300
        %v2349 = vunpack.c.l.b16 %v2301
        %v2350 = vunpack.c.l.b16 %v2302
        %v2351 = vunpack.c.l.b16 %v2303
        %v2352 = vpack.c.b16 %v2337, %v2336
        %v2353 = vpack.c.b16 %v2339, %v2338
        %v2354 = vpack.c.b16 %v2341, %v2340
        %v2355 = vpack.c.b16 %v2343, %v2342
        %v2356 = vpack.c.b16 %v2345, %v2344
        %v2357 = vpack.c.b16 %v2347, %v2346
        %v2358 = vpack.c.b16 %v2349, %v2348
        %v2359 = vpack.c.b16 %v2351, %v2350
        %2368 = vmatprep.subr.bf16.mxu0 0
        %2369 = vmatpush1.bf16.msra.mxu0 %v2359
        %2370 = vmatprep.subr.bf16.mxu0 0
        %2371 = vmatpush1.bf16.msra.mxu0 %v2358
        %2372 = vmatprep.subr.bf16.mxu0 0
        %2373 = vmatpush1.bf16.msra.mxu0 %v2357
        %2374 = vmatprep.subr.bf16.mxu0 0
        %2375 = vmatpush1.bf16.msra.mxu0 %v2356
        %2376 = vmatprep.subr.bf16.mxu0 0
        %2377 = vmatpush1.bf16.msra.mxu0 %v2355
        %2378 = vmatprep.subr.bf16.mxu0 0
        %2379 = vmatpush1.bf16.msra.mxu0 %v2354
        %2380 = vmatprep.subr.bf16.mxu0 0
        %2381 = vmatpush1.bf16.msra.mxu0 %v2353
        %2382 = vmatprep.subr.bf16.mxu0 0
        %2383 = vmatpush1.bf16.msra.mxu0 %v2352
        %2384 = vmatprep.subr.bf16.mxu0 0
        %2385 = vmatpush2.bf16.msra.mxu0 0
        %2386 = vmatprep.subr.bf16.mxu0 0
        %2387 = vmatpush2.bf16.msra.mxu0 0
        %2388 = vmatprep.subr.bf16.mxu0 0
        %2389 = vmatpush2.bf16.msra.mxu0 0
        %2390 = vmatprep.subr.bf16.mxu0 0
        %2391 = vmatpush2.bf16.msra.mxu0 0
        %2392 = vmatprep.subr.bf16.mxu0 0
        %2393 = vmatpush2.bf16.msra.mxu0 0
        %2394 = vmatprep.subr.bf16.mxu0 0
        %2395 = vmatpush2.bf16.msra.mxu0 0
        %2396 = vmatprep.subr.bf16.mxu0 0
        %2397 = vmatpush2.bf16.msra.mxu0 0
        %2398 = vmatprep.subr.bf16.mxu0 0
        %2399 = vmatpush2.bf16.msra.mxu0 0
        %2400 = vmatprep.mubr.bf16.mxu0 0
        %2401 = vmatmul.mubr.bf16.gmra.mxu0 %v2312
        %v2402 = vpop.f32.mrf.mxu0
        %v2403 = vadd.f32 0.0, %v2402
        %v2404 = vpop.f32.mrf.mxu0
        %v2405 = vpop.f32.mrf.mxu0
        %v2406 = vadd.f32 0.0, %v2405
        %v2407 = vpop.f32.mrf.mxu0
        %2408 = vmatprep.mubr.bf16.mxu0 0
        %2409 = vmatmul.mubr.bf16.gmra.mxu0 %v2313
        %v2410 = vpop.f32.mrf.mxu0
        %v2411 = vadd.f32 0.0, %v2410
        %v2412 = vpop.f32.mrf.mxu0
        %v2413 = vpop.f32.mrf.mxu0
        %v2414 = vadd.f32 0.0, %v2413
        %v2415 = vpop.f32.mrf.mxu0
        %2416 = vmatprep.mubr.bf16.mxu0 0
        %2417 = vmatmul.mubr.bf16.gmra.mxu0 %v2314
        %v2418 = vpop.f32.mrf.mxu0
        %v2419 = vadd.f32 0.0, %v2418
        %v2420 = vpop.f32.mrf.mxu0
        %v2421 = vpop.f32.mrf.mxu0
        %v2422 = vadd.f32 0.0, %v2421
        %v2423 = vpop.f32.mrf.mxu0
        %2424 = vmatprep.mubr.bf16.mxu0 0
        %2425 = vmatmul.mubr.bf16.gmra.mxu0 %v2315
        %v2426 = vpop.f32.mrf.mxu0
        %v2427 = vadd.f32 0.0, %v2426
        %v2428 = vpop.f32.mrf.mxu0
        %v2429 = vpop.f32.mrf.mxu0
        %v2430 = vadd.f32 0.0, %v2429
        %v2431 = vpop.f32.mrf.mxu0
        %2432 = vdwg.mxu0
        %v2433 = vadd.f32 %v2151, %v2403
        %v2434 = vadd.f32 %v2152, %v2406
        %v2435 = vadd.f32 %v2153, %v2411
        %v2436 = vadd.f32 %v2154, %v2414
        %v2437 = vadd.f32 %v2155, %v2419
        %v2438 = vadd.f32 %v2156, %v2422
        %v2439 = vadd.f32 %v2157, %v2427
        %v2440 = vadd.f32 %v2158, %v2430
        %v2441 = vld [vmem:[%s554] sm:$0x1]
        %v2443 = vlaneseq
        %v2444 = vshrl.u32 %v2443, 7
        %v2445 = vsub.s32 0, %v2444
        %v2446 = vrot.slane %v2441, %v2445
        %v2448 = vadd.f32 %v2433, %v2446
        %v2449 = vadd.f32 %v2434, %v2446
        %v2450 = vadd.f32 %v2435, %v2446
        %v2451 = vadd.f32 %v2436, %v2446
        %v2452 = vadd.f32 %v2437, %v2446
        %v2453 = vadd.f32 %v2438, %v2446
        %v2454 = vadd.f32 %v2439, %v2446
        %v2455 = vadd.f32 %v2440, %v2446
        %v2456 = vmax.f32 %v2448, 0.0
        %v2457 = vmax.f32 %v2449, 0.0
        %v2458 = vmax.f32 %v2450, 0.0
        %v2459 = vmax.f32 %v2451, 0.0
        %v2460 = vmax.f32 %v2452, 0.0
        %v2461 = vmax.f32 %v2453, 0.0
        %v2462 = vmax.f32 %v2454, 0.0
        %v2463 = vmax.f32 %v2455, 0.0
        %v2464 = vpack.c.bf16 %v2456, %v2456
        %v2465 = vpack.c.bf16 %v2457, %v2457
        %v2466 = vpack.c.bf16 %v2458, %v2458
        %v2467 = vpack.c.bf16 %v2459, %v2459
        %v2468 = vpack.c.bf16 %v2460, %v2460
        %v2469 = vpack.c.bf16 %v2461, %v2461
        %v2470 = vpack.c.bf16 %v2462, %v2462
        %v2471 = vpack.c.bf16 %v2463, %v2463
        %2472 = vst [vmem:[%s566] sm:$0xf] %v2464
        %2473 = vst [vmem:[%s566 + $0x4] sm:$0xf] %v2465
        %2474 = vst [vmem:[%s566 + $0x8] sm:$0xf] %v2466
        %2475 = vst [vmem:[%s566 + $0xc] sm:$0xf] %v2467
        %2476 = vst [vmem:[%s566 + $0x10] sm:$0xf] %v2468
        %2477 = vst [vmem:[%s566 + $0x14] sm:$0xf] %v2469
        %2478 = vst [vmem:[%s566 + $0x18] sm:$0xf] %v2470
        %2479 = vst [vmem:[%s566 + $0x1c] sm:$0xf] %v2471
        %s2480 = smul.u32 8, %s21
        %p2481 = scmp.lt.s32.totalorder %s19, 1
        %s2482 = scalar_select %p2481, %s19, 1
        %p2483 = scmp.lt.s32.totalorder %s2480, 7
        %s2484 = scalar_select %p2483, %s2480, 7
        %p2485 = scmp.lt.s32.totalorder %s20, 0
        %s2486 = scalar_select %p2485, %s20, 0
        %s2487 = sadd.s32 %s2486, %s2484
        %s2488 = smul.addr %s2482, 8
        %s2489 = sadd.s32 %s2487, %s2488
        %s2490 = smul.addr %s2489, 4
        %s2491 = scalar_lea.vmem %s3, %s2490
        // Predicated region
        $region74: #{bottleneck_psp.4} parent=68 // pred_check
          %p2492 = pneg %p133
        $region75: #{bottleneck_psp.4} parent=68 // pred_check_branch
          %2494 = sbr.rel (%p2492) target = $region77
        $region76: #{bottleneck_psp.4} parent=68 // pred_region
          %s2495 = smul.u32 8, %s21
        $region77: #{bottleneck_psp.4} parent=68 // pred_fallthru
          _
      $region69: #{bottleneck_psp.4} parent=5 // pred_fallthru
        _
      %p2496 = scmp.le.s32.totalorder 2, %s9
      // Predicated region
      $region78: #{bottleneck_psp.4} parent=5 // pred_check
        %p2497 = pneg %p2496
      $region79: #{bottleneck_psp.4} parent=5 // pred_check_branch
        %2499 = sbr.rel (%p2497) target = $region81
      $region80: #{bottleneck_psp.4} parent=5 // pred_region
        %s2500 = ssub.s32 %s9, 2
        // Predicated region
        $region82: #{bottleneck_psp.4} parent=80 // pred_check
          %p2501 = pneg %p139
        $region83: #{bottleneck_psp.4} parent=80 // pred_check_branch
          %2503 = sbr.rel (%p2501) target = $region85
        $region84: #{bottleneck_psp.4} parent=80 // pred_region
          %s2504 = smul.u32 8, %s24
          %p2505 = scmp.lt.s32.totalorder %s22, 1
          %s2506 = scalar_select %p2505, %s22, 1
          %p2507 = scmp.lt.s32.totalorder %s2504, 7
          %s2508 = scalar_select %p2507, %s2504, 7
          %p2509 = scmp.lt.s32.totalorder %s23, 0
          %s2510 = scalar_select %p2509, %s23, 0
          %s2511 = sadd.s32 %s2510, %s2508
          %s2512 = smul.addr %s2506, 8
          %s2513 = sadd.s32 %s2511, %s2512
          %s2514 = smul.addr %s2513, 4
          %s2515 = scalar_lea.vmem %s3, %s2514
        $region85: #{bottleneck_psp.4} parent=80 // pred_fallthru
          _
      $region81: #{bottleneck_psp.4} parent=5 // pred_fallthru
        _
    $region6: #{bottleneck_psp.4} parent=1 // loop_footer
      %s13 = sadd.s32 1, %s9
    $region7: #{bottleneck_psp.4} parent=1 // loop_footer_branch
      %8 = sbr.rel target = $region3
    $region8: #{bottleneck_psp.4} parent=1 // loop_exit
      _

// kernel: bottleneck_psp.5
$region0: #{bottleneck_psp.5}
  #allocation0 [shape = 'u32[]', space=smem, size = 0x4, offset = 0x4, fixed_abs, tag = 'smem constant byte address 0x4 - core index']
  #allocation1 [shape = 'u32[144,128]{1,0:T(1,128)}', space=vmem, size = 0x12000, scoped, tag = 'internal scratch']
  #allocation2 [shape = 'f32[128,128]{1,0:T(8,128)}', space=vmem, size = 0x10000, scoped, tag = 'scratch operand']
  %s0 = inlined_call_operand.vmem [shape: bf16[128,128], index: 0, kind: input, shape index: {}]
  %s1 = inlined_call_operand.vmem [shape: bf16[128,128], index: 1, kind: input, shape index: {}]
  %s2 = inlined_call_operand.vmem [shape: bf16[128,128], index: 2, kind: input, shape index: {}]
  %s3 = inlined_call_operand.vmem [shape: bf16[128,128], index: 3, kind: input, shape index: {}]
  %s4 = inlined_call_operand.vmem [shape: f32[1,128], index: 4, kind: input, shape index: {}]
  %s5 = inlined_call_operand.vmem [shape: f32[128,128], index: 5, kind: output, shape index: {}]
  %s6 = sld [smem:[#allocation0]]
  $region38: #{bottleneck_psp.5} parent=0
    _
  %s8 = ssub.s32 1, %s6
  %s9 = scalar_select 0, %s8, %s6
  // Predicated region
  $region2: #{bottleneck_psp.5} parent=0 // pred_check
    _
  $region3: #{bottleneck_psp.5} parent=0 // pred_check_branch
    %11 = sbr.rel (0) target = $region5
  $region4: #{bottleneck_psp.5} parent=0 // pred_region
    _
  $region5: #{bottleneck_psp.5} parent=0 // pred_fallthru
    _
  // Predicated region
  $region6: #{bottleneck_psp.5} parent=0 // pred_check
    _
  $region7: #{bottleneck_psp.5} parent=0 // pred_check_branch
    %13 = sbr.rel (0) target = $region9
  $region8: #{bottleneck_psp.5} parent=0 // pred_region
    _
  $region9: #{bottleneck_psp.5} parent=0 // pred_fallthru
    _
  // Predicated region
  $region10: #{bottleneck_psp.5} parent=0 // pred_check
    _
  $region11: #{bottleneck_psp.5} parent=0 // pred_check_branch
    %15 = sbr.rel (0) target = $region13
  $region12: #{bottleneck_psp.5} parent=0 // pred_region
    _
  $region13: #{bottleneck_psp.5} parent=0 // pred_fallthru
    _
  // Predicated region
  $region14: #{bottleneck_psp.5} parent=0 // pred_check
    _
  $region15: #{bottleneck_psp.5} parent=0 // pred_check_branch
    %17 = sbr.rel (0) target = $region17
  $region16: #{bottleneck_psp.5} parent=0 // pred_region
    _
  $region17: #{bottleneck_psp.5} parent=0 // pred_fallthru
    _
  // Predicated region
  $region18: #{bottleneck_psp.5} parent=0 // pred_check
    _
  $region19: #{bottleneck_psp.5} parent=0 // pred_check_branch
    %19 = sbr.rel (0) target = $region21
  $region20: #{bottleneck_psp.5} parent=0 // pred_region
    _
  $region21: #{bottleneck_psp.5} parent=0 // pred_fallthru
    _
  %p21 = scmp.eq.s32.totalorder 0, 0
  // Predicated region
  $region22: #{bottleneck_psp.5} parent=0 // pred_check
    %p22 = pneg %p21
  $region23: #{bottleneck_psp.5} parent=0 // pred_check_branch
    %24 = sbr.rel (%p22) target = $region25
  $region24: #{bottleneck_psp.5} parent=0 // pred_region
    %25 = vst [vmem:[#allocation2] sm:$0xff] 0.0
    %26 = vst [vmem:[#allocation2 + $0x8] sm:$0xff] 0.0
    %27 = vst [vmem:[#allocation2 + $0x10] sm:$0xff] 0.0
    %28 = vst [vmem:[#allocation2 + $0x18] sm:$0xff] 0.0
    %29 = vst [vmem:[#allocation2 + $0x20] sm:$0xff] 0.0
    %30 = vst [vmem:[#allocation2 + $0x28] sm:$0xff] 0.0
    %31 = vst [vmem:[#allocation2 + $0x30] sm:$0xff] 0.0
    %32 = vst [vmem:[#allocation2 + $0x38] sm:$0xff] 0.0
    %33 = vst [vmem:[#allocation2 + $0x40] sm:$0xff] 0.0
    %34 = vst [vmem:[#allocation2 + $0x48] sm:$0xff] 0.0
    %35 = vst [vmem:[#allocation2 + $0x50] sm:$0xff] 0.0
    %36 = vst [vmem:[#allocation2 + $0x58] sm:$0xff] 0.0
    %37 = vst [vmem:[#allocation2 + $0x60] sm:$0xff] 0.0
    %38 = vst [vmem:[#allocation2 + $0x68] sm:$0xff] 0.0
    %39 = vst [vmem:[#allocation2 + $0x70] sm:$0xff] 0.0
    %40 = vst [vmem:[#allocation2 + $0x78] sm:$0xff] 0.0
  $region25: #{bottleneck_psp.5} parent=0 // pred_fallthru
    _
  %v41 = vld [vmem:[#allocation2] sm:$0xff]
  %v42 = vld [vmem:[#allocation2 + $0x8] sm:$0xff]
  %v43 = vld [vmem:[#allocation2 + $0x10] sm:$0xff]
  %v44 = vld [vmem:[#allocation2 + $0x18] sm:$0xff]
  %v45 = vld [vmem:[#allocation2 + $0x20] sm:$0xff]
  %v46 = vld [vmem:[#allocation2 + $0x28] sm:$0xff]
  %v47 = vld [vmem:[#allocation2 + $0x30] sm:$0xff]
  %v48 = vld [vmem:[#allocation2 + $0x38] sm:$0xff]
  %v49 = vld [vmem:[#allocation2 + $0x40] sm:$0xff]
  %v50 = vld [vmem:[#allocation2 + $0x48] sm:$0xff]
  %v51 = vld [vmem:[#allocation2 + $0x50] sm:$0xff]
  %v52 = vld [vmem:[#allocation2 + $0x58] sm:$0xff]
  %v53 = vld [vmem:[#allocation2 + $0x60] sm:$0xff]
  %v54 = vld [vmem:[#allocation2 + $0x68] sm:$0xff]
  %v55 = vld [vmem:[#allocation2 + $0x70] sm:$0xff]
  %v56 = vld [vmem:[#allocation2 + $0x78] sm:$0xff]
  %v57 = vld [vmem:[%s0] sm:$0xf]
  %v58 = vld [vmem:[%s0 + $0x4] sm:$0xf]
  %v59 = vld [vmem:[%s0 + $0x8] sm:$0xf]
  %v60 = vld [vmem:[%s0 + $0xc] sm:$0xf]
  %v61 = vld [vmem:[%s0 + $0x10] sm:$0xf]
  %v62 = vld [vmem:[%s0 + $0x14] sm:$0xf]
  %v63 = vld [vmem:[%s0 + $0x18] sm:$0xf]
  %v64 = vld [vmem:[%s0 + $0x1c] sm:$0xf]
  %v65 = vld [vmem:[%s0 + $0x20] sm:$0xf]
  %v66 = vld [vmem:[%s0 + $0x24] sm:$0xf]
  %v67 = vld [vmem:[%s0 + $0x28] sm:$0xf]
  %v68 = vld [vmem:[%s0 + $0x2c] sm:$0xf]
  %v69 = vld [vmem:[%s0 + $0x30] sm:$0xf]
  %v70 = vld [vmem:[%s0 + $0x34] sm:$0xf]
  %v71 = vld [vmem:[%s0 + $0x38] sm:$0xf]
  %v72 = vld [vmem:[%s0 + $0x3c] sm:$0xf]
  %v73 = vld [vmem:[%s1] sm:$0xf]
  %v74 = vld [vmem:[%s1 + $0x4] sm:$0xf]
  %v75 = vld [vmem:[%s1 + $0x8] sm:$0xf]
  %v76 = vld [vmem:[%s1 + $0xc] sm:$0xf]
  %v77 = vld [vmem:[%s1 + $0x10] sm:$0xf]
  %v78 = vld [vmem:[%s1 + $0x14] sm:$0xf]
  %v79 = vld [vmem:[%s1 + $0x18] sm:$0xf]
  %v80 = vld [vmem:[%s1 + $0x1c] sm:$0xf]
  %v81 = vld [vmem:[%s1 + $0x20] sm:$0xf]
  %v82 = vld [vmem:[%s1 + $0x24] sm:$0xf]
  %v83 = vld [vmem:[%s1 + $0x28] sm:$0xf]
  %v84 = vld [vmem:[%s1 + $0x2c] sm:$0xf]
  %v85 = vld [vmem:[%s1 + $0x30] sm:$0xf]
  %v86 = vld [vmem:[%s1 + $0x34] sm:$0xf]
  %v87 = vld [vmem:[%s1 + $0x38] sm:$0xf]
  %v88 = vld [vmem:[%s1 + $0x3c] sm:$0xf]
  %v105 = vunpack.c.l.b16 %v57
  %v106 = vunpack.c.l.b16 %v58
  %v107 = vunpack.c.l.b16 %v59
  %v108 = vunpack.c.l.b16 %v60
  %v109 = vunpack.c.l.b16 %v61
  %v110 = vunpack.c.l.b16 %v62
  %v111 = vunpack.c.l.b16 %v63
  %v112 = vunpack.c.l.b16 %v64
  %v113 = vunpack.c.l.b16 %v65
  %v114 = vunpack.c.l.b16 %v66
  %v115 = vunpack.c.l.b16 %v67
  %v116 = vunpack.c.l.b16 %v68
  %v117 = vunpack.c.l.b16 %v69
  %v118 = vunpack.c.l.b16 %v70
  %v119 = vunpack.c.l.b16 %v71
  %v120 = vunpack.c.l.b16 %v72
  %v121 = vpack.c.b16 %v106, %v105
  %v122 = vpack.c.b16 %v108, %v107
  %v123 = vpack.c.b16 %v110, %v109
  %v124 = vpack.c.b16 %v112, %v111
  %v125 = vpack.c.b16 %v114, %v113
  %v126 = vpack.c.b16 %v116, %v115
  %v127 = vpack.c.b16 %v118, %v117
  %v128 = vpack.c.b16 %v120, %v119
  %v153 = vunpack.c.l.b16 %v73
  %v154 = vunpack.c.l.b16 %v74
  %v155 = vunpack.c.l.b16 %v75
  %v156 = vunpack.c.l.b16 %v76
  %v157 = vunpack.c.l.b16 %v77
  %v158 = vunpack.c.l.b16 %v78
  %v159 = vunpack.c.l.b16 %v79
  %v160 = vunpack.c.l.b16 %v80
  %v161 = vunpack.c.l.b16 %v81
  %v162 = vunpack.c.l.b16 %v82
  %v163 = vunpack.c.l.b16 %v83
  %v164 = vunpack.c.l.b16 %v84
  %v165 = vunpack.c.l.b16 %v85
  %v166 = vunpack.c.l.b16 %v86
  %v167 = vunpack.c.l.b16 %v87
  %v168 = vunpack.c.l.b16 %v88
  %v169 = vpack.c.b16 %v154, %v153
  %v170 = vpack.c.b16 %v156, %v155
  %v171 = vpack.c.b16 %v158, %v157
  %v172 = vpack.c.b16 %v160, %v159
  %v173 = vpack.c.b16 %v162, %v161
  %v174 = vpack.c.b16 %v164, %v163
  %v175 = vpack.c.b16 %v166, %v165
  %v176 = vpack.c.b16 %v168, %v167
  %185 = vmatprep.subr.bf16.mxu0 0
  %186 = vmatpush1.bf16.msra.mxu0 %v176
  %187 = vmatprep.subr.bf16.mxu0 0
  %188 = vmatpush1.bf16.msra.mxu0 %v175
  %189 = vmatprep.subr.bf16.mxu0 0
  %190 = vmatpush1.bf16.msra.mxu0 %v174
  %191 = vmatprep.subr.bf16.mxu0 0
  %192 = vmatpush1.bf16.msra.mxu0 %v173
  %193 = vmatprep.subr.bf16.mxu0 0
  %194 = vmatpush1.bf16.msra.mxu0 %v172
  %195 = vmatprep.subr.bf16.mxu0 0
  %196 = vmatpush1.bf16.msra.mxu0 %v171
  %197 = vmatprep.subr.bf16.mxu0 0
  %198 = vmatpush1.bf16.msra.mxu0 %v170
  %199 = vmatprep.subr.bf16.mxu0 0
  %200 = vmatpush1.bf16.msra.mxu0 %v169
  %201 = vmatprep.subr.bf16.mxu0 0
  %202 = vmatpush2.bf16.msra.mxu0 0
  %203 = vmatprep.subr.bf16.mxu0 0
  %204 = vmatpush2.bf16.msra.mxu0 0
  %205 = vmatprep.subr.bf16.mxu0 0
  %206 = vmatpush2.bf16.msra.mxu0 0
  %207 = vmatprep.subr.bf16.mxu0 0
  %208 = vmatpush2.bf16.msra.mxu0 0
  %209 = vmatprep.subr.bf16.mxu0 0
  %210 = vmatpush2.bf16.msra.mxu0 0
  %211 = vmatprep.subr.bf16.mxu0 0
  %212 = vmatpush2.bf16.msra.mxu0 0
  %213 = vmatprep.subr.bf16.mxu0 0
  %214 = vmatpush2.bf16.msra.mxu0 0
  %215 = vmatprep.subr.bf16.mxu0 0
  %216 = vmatpush2.bf16.msra.mxu0 0
  %217 = vmatprep.mubr.bf16.mxu0 0
  %218 = vmatmul.mubr.bf16.gmra.mxu0 %v121
  %v219 = vpop.f32.mrf.mxu0
  %v220 = vadd.f32 0.0, %v219
  %v221 = vpop.f32.mrf.mxu0
  %v222 = vpop.f32.mrf.mxu0
  %v223 = vadd.f32 0.0, %v222
  %v224 = vpop.f32.mrf.mxu0
  %225 = vmatprep.mubr.bf16.mxu0 0
  %226 = vmatmul.mubr.bf16.gmra.mxu0 %v122
  %v227 = vpop.f32.mrf.mxu0
  %v228 = vadd.f32 0.0, %v227
  %v229 = vpop.f32.mrf.mxu0
  %v230 = vpop.f32.mrf.mxu0
  %v231 = vadd.f32 0.0, %v230
  %v232 = vpop.f32.mrf.mxu0
  %233 = vmatprep.mubr.bf16.mxu0 0
  %234 = vmatmul.mubr.bf16.gmra.mxu0 %v123
  %v235 = vpop.f32.mrf.mxu0
  %v236 = vadd.f32 0.0, %v235
  %v237 = vpop.f32.mrf.mxu0
  %v238 = vpop.f32.mrf.mxu0
  %v239 = vadd.f32 0.0, %v238
  %v240 = vpop.f32.mrf.mxu0
  %241 = vmatprep.mubr.bf16.mxu0 0
  %242 = vmatmul.mubr.bf16.gmra.mxu0 %v124
  %v243 = vpop.f32.mrf.mxu0
  %v244 = vadd.f32 0.0, %v243
  %v245 = vpop.f32.mrf.mxu0
  %v246 = vpop.f32.mrf.mxu0
  %v247 = vadd.f32 0.0, %v246
  %v248 = vpop.f32.mrf.mxu0
  %249 = vmatprep.mubr.bf16.mxu0 0
  %250 = vmatmul.mubr.bf16.gmra.mxu0 %v125
  %v251 = vpop.f32.mrf.mxu0
  %v252 = vadd.f32 0.0, %v251
  %v253 = vpop.f32.mrf.mxu0
  %v254 = vpop.f32.mrf.mxu0
  %v255 = vadd.f32 0.0, %v254
  %v256 = vpop.f32.mrf.mxu0
  %257 = vmatprep.mubr.bf16.mxu0 0
  %258 = vmatmul.mubr.bf16.gmra.mxu0 %v126
  %v259 = vpop.f32.mrf.mxu0
  %v260 = vadd.f32 0.0, %v259
  %v261 = vpop.f32.mrf.mxu0
  %v262 = vpop.f32.mrf.mxu0
  %v263 = vadd.f32 0.0, %v262
  %v264 = vpop.f32.mrf.mxu0
  %265 = vmatprep.mubr.bf16.mxu0 0
  %266 = vmatmul.mubr.bf16.gmra.mxu0 %v127
  %v267 = vpop.f32.mrf.mxu0
  %v268 = vadd.f32 0.0, %v267
  %v269 = vpop.f32.mrf.mxu0
  %v270 = vpop.f32.mrf.mxu0
  %v271 = vadd.f32 0.0, %v270
  %v272 = vpop.f32.mrf.mxu0
  %273 = vmatprep.mubr.bf16.mxu0 0
  %274 = vmatmul.mubr.bf16.gmra.mxu0 %v128
  %v275 = vpop.f32.mrf.mxu0
  %v276 = vadd.f32 0.0, %v275
  %v277 = vpop.f32.mrf.mxu0
  %v278 = vpop.f32.mrf.mxu0
  %v279 = vadd.f32 0.0, %v278
  %v280 = vpop.f32.mrf.mxu0
  %281 = vdwg.mxu0
  %v282 = vadd.f32 %v41, %v220
  %v283 = vadd.f32 %v42, %v223
  %v284 = vadd.f32 %v43, %v228
  %v285 = vadd.f32 %v44, %v231
  %v286 = vadd.f32 %v45, %v236
  %v287 = vadd.f32 %v46, %v239
  %v288 = vadd.f32 %v47, %v244
  %v289 = vadd.f32 %v48, %v247
  %v290 = vadd.f32 %v49, %v252
  %v291 = vadd.f32 %v50, %v255
  %v292 = vadd.f32 %v51, %v260
  %v293 = vadd.f32 %v52, %v263
  %v294 = vadd.f32 %v53, %v268
  %v295 = vadd.f32 %v54, %v271
  %v296 = vadd.f32 %v55, %v276
  %v297 = vadd.f32 %v56, %v279
  %298 = vst [vmem:[#allocation2] sm:$0xff] %v282
  %299 = vst [vmem:[#allocation2 + $0x8] sm:$0xff] %v283
  %300 = vst [vmem:[#allocation2 + $0x10] sm:$0xff] %v284
  %301 = vst [vmem:[#allocation2 + $0x18] sm:$0xff] %v285
  %302 = vst [vmem:[#allocation2 + $0x20] sm:$0xff] %v286
  %303 = vst [vmem:[#allocation2 + $0x28] sm:$0xff] %v287
  %304 = vst [vmem:[#allocation2 + $0x30] sm:$0xff] %v288
  %305 = vst [vmem:[#allocation2 + $0x38] sm:$0xff] %v289
  %306 = vst [vmem:[#allocation2 + $0x40] sm:$0xff] %v290
  %307 = vst [vmem:[#allocation2 + $0x48] sm:$0xff] %v291
  %308 = vst [vmem:[#allocation2 + $0x50] sm:$0xff] %v292
  %309 = vst [vmem:[#allocation2 + $0x58] sm:$0xff] %v293
  %310 = vst [vmem:[#allocation2 + $0x60] sm:$0xff] %v294
  %311 = vst [vmem:[#allocation2 + $0x68] sm:$0xff] %v295
  %312 = vst [vmem:[#allocation2 + $0x70] sm:$0xff] %v296
  %313 = vst [vmem:[#allocation2 + $0x78] sm:$0xff] %v297
  %v314 = vld [vmem:[#allocation2] sm:$0xff]
  %v315 = vld [vmem:[#allocation2 + $0x8] sm:$0xff]
  %v316 = vld [vmem:[#allocation2 + $0x10] sm:$0xff]
  %v317 = vld [vmem:[#allocation2 + $0x18] sm:$0xff]
  %v318 = vld [vmem:[#allocation2 + $0x20] sm:$0xff]
  %v319 = vld [vmem:[#allocation2 + $0x28] sm:$0xff]
  %v320 = vld [vmem:[#allocation2 + $0x30] sm:$0xff]
  %v321 = vld [vmem:[#allocation2 + $0x38] sm:$0xff]
  %v322 = vld [vmem:[#allocation2 + $0x40] sm:$0xff]
  %v323 = vld [vmem:[#allocation2 + $0x48] sm:$0xff]
  %v324 = vld [vmem:[#allocation2 + $0x50] sm:$0xff]
  %v325 = vld [vmem:[#allocation2 + $0x58] sm:$0xff]
  %v326 = vld [vmem:[#allocation2 + $0x60] sm:$0xff]
  %v327 = vld [vmem:[#allocation2 + $0x68] sm:$0xff]
  %v328 = vld [vmem:[#allocation2 + $0x70] sm:$0xff]
  %v329 = vld [vmem:[#allocation2 + $0x78] sm:$0xff]
  %v330 = vld [vmem:[%s2] sm:$0xf]
  %v331 = vld [vmem:[%s2 + $0x4] sm:$0xf]
  %v332 = vld [vmem:[%s2 + $0x8] sm:$0xf]
  %v333 = vld [vmem:[%s2 + $0xc] sm:$0xf]
  %v334 = vld [vmem:[%s2 + $0x10] sm:$0xf]
  %v335 = vld [vmem:[%s2 + $0x14] sm:$0xf]
  %v336 = vld [vmem:[%s2 + $0x18] sm:$0xf]
  %v337 = vld [vmem:[%s2 + $0x1c] sm:$0xf]
  %v338 = vld [vmem:[%s2 + $0x20] sm:$0xf]
  %v339 = vld [vmem:[%s2 + $0x24] sm:$0xf]
  %v340 = vld [vmem:[%s2 + $0x28] sm:$0xf]
  %v341 = vld [vmem:[%s2 + $0x2c] sm:$0xf]
  %v342 = vld [vmem:[%s2 + $0x30] sm:$0xf]
  %v343 = vld [vmem:[%s2 + $0x34] sm:$0xf]
  %v344 = vld [vmem:[%s2 + $0x38] sm:$0xf]
  %v345 = vld [vmem:[%s2 + $0x3c] sm:$0xf]
  %v346 = vld [vmem:[%s3] sm:$0xf]
  %v347 = vld [vmem:[%s3 + $0x4] sm:$0xf]
  %v348 = vld [vmem:[%s3 + $0x8] sm:$0xf]
  %v349 = vld [vmem:[%s3 + $0xc] sm:$0xf]
  %v350 = vld [vmem:[%s3 + $0x10] sm:$0xf]
  %v351 = vld [vmem:[%s3 + $0x14] sm:$0xf]
  %v352 = vld [vmem:[%s3 + $0x18] sm:$0xf]
  %v353 = vld [vmem:[%s3 + $0x1c] sm:$0xf]
  %v354 = vld [vmem:[%s3 + $0x20] sm:$0xf]
  %v355 = vld [vmem:[%s3 + $0x24] sm:$0xf]
  %v356 = vld [vmem:[%s3 + $0x28] sm:$0xf]
  %v357 = vld [vmem:[%s3 + $0x2c] sm:$0xf]
  %v358 = vld [vmem:[%s3 + $0x30] sm:$0xf]
  %v359 = vld [vmem:[%s3 + $0x34] sm:$0xf]
  %v360 = vld [vmem:[%s3 + $0x38] sm:$0xf]
  %v361 = vld [vmem:[%s3 + $0x3c] sm:$0xf]
  %v378 = vunpack.c.l.b16 %v330
  %v379 = vunpack.c.l.b16 %v331
  %v380 = vunpack.c.l.b16 %v332
  %v381 = vunpack.c.l.b16 %v333
  %v382 = vunpack.c.l.b16 %v334
  %v383 = vunpack.c.l.b16 %v335
  %v384 = vunpack.c.l.b16 %v336
  %v385 = vunpack.c.l.b16 %v337
  %v386 = vunpack.c.l.b16 %v338
  %v387 = vunpack.c.l.b16 %v339
  %v388 = vunpack.c.l.b16 %v340
  %v389 = vunpack.c.l.b16 %v341
  %v390 = vunpack.c.l.b16 %v342
  %v391 = vunpack.c.l.b16 %v343
  %v392 = vunpack.c.l.b16 %v344
  %v393 = vunpack.c.l.b16 %v345
  %v394 = vpack.c.b16 %v379, %v378
  %v395 = vpack.c.b16 %v381, %v380
  %v396 = vpack.c.b16 %v383, %v382
  %v397 = vpack.c.b16 %v385, %v384
  %v398 = vpack.c.b16 %v387, %v386
  %v399 = vpack.c.b16 %v389, %v388
  %v400 = vpack.c.b16 %v391, %v390
  %v401 = vpack.c.b16 %v393, %v392
  %v426 = vunpack.c.l.b16 %v346
  %v427 = vunpack.c.l.b16 %v347
  %v428 = vunpack.c.l.b16 %v348
  %v429 = vunpack.c.l.b16 %v349
  %v430 = vunpack.c.l.b16 %v350
  %v431 = vunpack.c.l.b16 %v351
  %v432 = vunpack.c.l.b16 %v352
  %v433 = vunpack.c.l.b16 %v353
  %v434 = vunpack.c.l.b16 %v354
  %v435 = vunpack.c.l.b16 %v355
  %v436 = vunpack.c.l.b16 %v356
  %v437 = vunpack.c.l.b16 %v357
  %v438 = vunpack.c.l.b16 %v358
  %v439 = vunpack.c.l.b16 %v359
  %v440 = vunpack.c.l.b16 %v360
  %v441 = vunpack.c.l.b16 %v361
  %v442 = vpack.c.b16 %v427, %v426
  %v443 = vpack.c.b16 %v429, %v428
  %v444 = vpack.c.b16 %v431, %v430
  %v445 = vpack.c.b16 %v433, %v432
  %v446 = vpack.c.b16 %v435, %v434
  %v447 = vpack.c.b16 %v437, %v436
  %v448 = vpack.c.b16 %v439, %v438
  %v449 = vpack.c.b16 %v441, %v440
  %458 = vmatprep.subr.bf16.mxu0 0
  %459 = vmatpush1.bf16.msra.mxu0 %v449
  %460 = vmatprep.subr.bf16.mxu0 0
  %461 = vmatpush1.bf16.msra.mxu0 %v448
  %462 = vmatprep.subr.bf16.mxu0 0
  %463 = vmatpush1.bf16.msra.mxu0 %v447
  %464 = vmatprep.subr.bf16.mxu0 0
  %465 = vmatpush1.bf16.msra.mxu0 %v446
  %466 = vmatprep.subr.bf16.mxu0 0
  %467 = vmatpush1.bf16.msra.mxu0 %v445
  %468 = vmatprep.subr.bf16.mxu0 0
  %469 = vmatpush1.bf16.msra.mxu0 %v444
  %470 = vmatprep.subr.bf16.mxu0 0
  %471 = vmatpush1.bf16.msra.mxu0 %v443
  %472 = vmatprep.subr.bf16.mxu0 0
  %473 = vmatpush1.bf16.msra.mxu0 %v442
  %474 = vmatprep.subr.bf16.mxu0 0
  %475 = vmatpush2.bf16.msra.mxu0 0
  %476 = vmatprep.subr.bf16.mxu0 0
  %477 = vmatpush2.bf16.msra.mxu0 0
  %478 = vmatprep.subr.bf16.mxu0 0
  %479 = vmatpush2.bf16.msra.mxu0 0
  %480 = vmatprep.subr.bf16.mxu0 0
  %481 = vmatpush2.bf16.msra.mxu0 0
  %482 = vmatprep.subr.bf16.mxu0 0
  %483 = vmatpush2.bf16.msra.mxu0 0
  %484 = vmatprep.subr.bf16.mxu0 0
  %485 = vmatpush2.bf16.msra.mxu0 0
  %486 = vmatprep.subr.bf16.mxu0 0
  %487 = vmatpush2.bf16.msra.mxu0 0
  %488 = vmatprep.subr.bf16.mxu0 0
  %489 = vmatpush2.bf16.msra.mxu0 0
  %490 = vmatprep.mubr.bf16.mxu0 0
  %491 = vmatmul.mubr.bf16.gmra.mxu0 %v394
  %v492 = vpop.f32.mrf.mxu0
  %v493 = vadd.f32 0.0, %v492
  %v494 = vpop.f32.mrf.mxu0
  %v495 = vpop.f32.mrf.mxu0
  %v496 = vadd.f32 0.0, %v495
  %v497 = vpop.f32.mrf.mxu0
  %498 = vmatprep.mubr.bf16.mxu0 0
  %499 = vmatmul.mubr.bf16.gmra.mxu0 %v395
  %v500 = vpop.f32.mrf.mxu0
  %v501 = vadd.f32 0.0, %v500
  %v502 = vpop.f32.mrf.mxu0
  %v503 = vpop.f32.mrf.mxu0
  %v504 = vadd.f32 0.0, %v503
  %v505 = vpop.f32.mrf.mxu0
  %506 = vmatprep.mubr.bf16.mxu0 0
  %507 = vmatmul.mubr.bf16.gmra.mxu0 %v396
  %v508 = vpop.f32.mrf.mxu0
  %v509 = vadd.f32 0.0, %v508
  %v510 = vpop.f32.mrf.mxu0
  %v511 = vpop.f32.mrf.mxu0
  %v512 = vadd.f32 0.0, %v511
  %v513 = vpop.f32.mrf.mxu0
  %514 = vmatprep.mubr.bf16.mxu0 0
  %515 = vmatmul.mubr.bf16.gmra.mxu0 %v397
  %v516 = vpop.f32.mrf.mxu0
  %v517 = vadd.f32 0.0, %v516
  %v518 = vpop.f32.mrf.mxu0
  %v519 = vpop.f32.mrf.mxu0
  %v520 = vadd.f32 0.0, %v519
  %v521 = vpop.f32.mrf.mxu0
  %522 = vmatprep.mubr.bf16.mxu0 0
  %523 = vmatmul.mubr.bf16.gmra.mxu0 %v398
  %v524 = vpop.f32.mrf.mxu0
  %v525 = vadd.f32 0.0, %v524
  %v526 = vpop.f32.mrf.mxu0
  %v527 = vpop.f32.mrf.mxu0
  %v528 = vadd.f32 0.0, %v527
  %v529 = vpop.f32.mrf.mxu0
  %530 = vmatprep.mubr.bf16.mxu0 0
  %531 = vmatmul.mubr.bf16.gmra.mxu0 %v399
  %v532 = vpop.f32.mrf.mxu0
  %v533 = vadd.f32 0.0, %v532
  %v534 = vpop.f32.mrf.mxu0
  %v535 = vpop.f32.mrf.mxu0
  %v536 = vadd.f32 0.0, %v535
  %v537 = vpop.f32.mrf.mxu0
  %538 = vmatprep.mubr.bf16.mxu0 0
  %539 = vmatmul.mubr.bf16.gmra.mxu0 %v400
  %v540 = vpop.f32.mrf.mxu0
  %v541 = vadd.f32 0.0, %v540
  %v542 = vpop.f32.mrf.mxu0
  %v543 = vpop.f32.mrf.mxu0
  %v544 = vadd.f32 0.0, %v543
  %v545 = vpop.f32.mrf.mxu0
  %546 = vmatprep.mubr.bf16.mxu0 0
  %547 = vmatmul.mubr.bf16.gmra.mxu0 %v401
  %v548 = vpop.f32.mrf.mxu0
  %v549 = vadd.f32 0.0, %v548
  %v550 = vpop.f32.mrf.mxu0
  %v551 = vpop.f32.mrf.mxu0
  %v552 = vadd.f32 0.0, %v551
  %v553 = vpop.f32.mrf.mxu0
  %554 = vdwg.mxu0
  %v555 = vadd.f32 %v314, %v493
  %v556 = vadd.f32 %v315, %v496
  %v557 = vadd.f32 %v316, %v501
  %v558 = vadd.f32 %v317, %v504
  %v559 = vadd.f32 %v318, %v509
  %v560 = vadd.f32 %v319, %v512
  %v561 = vadd.f32 %v320, %v517
  %v562 = vadd.f32 %v321, %v520
  %v563 = vadd.f32 %v322, %v525
  %v564 = vadd.f32 %v323, %v528
  %v565 = vadd.f32 %v324, %v533
  %v566 = vadd.f32 %v325, %v536
  %v567 = vadd.f32 %v326, %v541
  %v568 = vadd.f32 %v327, %v544
  %v569 = vadd.f32 %v328, %v549
  %v570 = vadd.f32 %v329, %v552
  %571 = vst [vmem:[#allocation2] sm:$0xff] %v555
  %572 = vst [vmem:[#allocation2 + $0x8] sm:$0xff] %v556
  %573 = vst [vmem:[#allocation2 + $0x10] sm:$0xff] %v557
  %574 = vst [vmem:[#allocation2 + $0x18] sm:$0xff] %v558
  %575 = vst [vmem:[#allocation2 + $0x20] sm:$0xff] %v559
  %576 = vst [vmem:[#allocation2 + $0x28] sm:$0xff] %v560
  %577 = vst [vmem:[#allocation2 + $0x30] sm:$0xff] %v561
  %578 = vst [vmem:[#allocation2 + $0x38] sm:$0xff] %v562
  %579 = vst [vmem:[#allocation2 + $0x40] sm:$0xff] %v563
  %580 = vst [vmem:[#allocation2 + $0x48] sm:$0xff] %v564
  %581 = vst [vmem:[#allocation2 + $0x50] sm:$0xff] %v565
  %582 = vst [vmem:[#allocation2 + $0x58] sm:$0xff] %v566
  %583 = vst [vmem:[#allocation2 + $0x60] sm:$0xff] %v567
  %584 = vst [vmem:[#allocation2 + $0x68] sm:$0xff] %v568
  %585 = vst [vmem:[#allocation2 + $0x70] sm:$0xff] %v569
  %586 = vst [vmem:[#allocation2 + $0x78] sm:$0xff] %v570
  // Predicated region
  $region26: #{bottleneck_psp.5} parent=0 // pred_check
    %p587 = pneg %p21
  $region27: #{bottleneck_psp.5} parent=0 // pred_check_branch
    %589 = sbr.rel (%p587) target = $region29
  $region28: #{bottleneck_psp.5} parent=0 // pred_region
    %v590 = vld [vmem:[#allocation2] sm:$0xff]
    %v591 = vld [vmem:[#allocation2 + $0x8] sm:$0xff]
    %v592 = vld [vmem:[#allocation2 + $0x10] sm:$0xff]
    %v593 = vld [vmem:[#allocation2 + $0x18] sm:$0xff]
    %v594 = vld [vmem:[#allocation2 + $0x20] sm:$0xff]
    %v595 = vld [vmem:[#allocation2 + $0x28] sm:$0xff]
    %v596 = vld [vmem:[#allocation2 + $0x30] sm:$0xff]
    %v597 = vld [vmem:[#allocation2 + $0x38] sm:$0xff]
    %v598 = vld [vmem:[#allocation2 + $0x40] sm:$0xff]
    %v599 = vld [vmem:[#allocation2 + $0x48] sm:$0xff]
    %v600 = vld [vmem:[#allocation2 + $0x50] sm:$0xff]
    %v601 = vld [vmem:[#allocation2 + $0x58] sm:$0xff]
    %v602 = vld [vmem:[#allocation2 + $0x60] sm:$0xff]
    %v603 = vld [vmem:[#allocation2 + $0x68] sm:$0xff]
    %v604 = vld [vmem:[#allocation2 + $0x70] sm:$0xff]
    %v605 = vld [vmem:[#allocation2 + $0x78] sm:$0xff]
    %v606 = vld [vmem:[%s4] sm:$0x1]
    %v608 = vlaneseq
    %v609 = vshrl.u32 %v608, 7
    %v610 = vsub.s32 0, %v609
    %v611 = vrot.slane %v606, %v610
    %v613 = vadd.f32 %v590, %v611
    %v614 = vadd.f32 %v591, %v611
    %v615 = vadd.f32 %v592, %v611
    %v616 = vadd.f32 %v593, %v611
    %v617 = vadd.f32 %v594, %v611
    %v618 = vadd.f32 %v595, %v611
    %v619 = vadd.f32 %v596, %v611
    %v620 = vadd.f32 %v597, %v611
    %v621 = vadd.f32 %v598, %v611
    %v622 = vadd.f32 %v599, %v611
    %v623 = vadd.f32 %v600, %v611
    %v624 = vadd.f32 %v601, %v611
    %v625 = vadd.f32 %v602, %v611
    %v626 = vadd.f32 %v603, %v611
    %v627 = vadd.f32 %v604, %v611
    %v628 = vadd.f32 %v605, %v611
    %v629 = vmax.f32 %v613, 0.0
    %v630 = vmax.f32 %v614, 0.0
    %v631 = vmax.f32 %v615, 0.0
    %v632 = vmax.f32 %v616, 0.0
    %v633 = vmax.f32 %v617, 0.0
    %v634 = vmax.f32 %v618, 0.0
    %v635 = vmax.f32 %v619, 0.0
    %v636 = vmax.f32 %v620, 0.0
    %v637 = vmax.f32 %v621, 0.0
    %v638 = vmax.f32 %v622, 0.0
    %v639 = vmax.f32 %v623, 0.0
    %v640 = vmax.f32 %v624, 0.0
    %v641 = vmax.f32 %v625, 0.0
    %v642 = vmax.f32 %v626, 0.0
    %v643 = vmax.f32 %v627, 0.0
    %v644 = vmax.f32 %v628, 0.0
    %645 = vst [vmem:[%s5] sm:$0xff] %v629
    %646 = vst [vmem:[%s5 + $0x8] sm:$0xff] %v630
    %647 = vst [vmem:[%s5 + $0x10] sm:$0xff] %v631
    %648 = vst [vmem:[%s5 + $0x18] sm:$0xff] %v632
    %649 = vst [vmem:[%s5 + $0x20] sm:$0xff] %v633
    %650 = vst [vmem:[%s5 + $0x28] sm:$0xff] %v634
    %651 = vst [vmem:[%s5 + $0x30] sm:$0xff] %v635
    %652 = vst [vmem:[%s5 + $0x38] sm:$0xff] %v636
    %653 = vst [vmem:[%s5 + $0x40] sm:$0xff] %v637
    %654 = vst [vmem:[%s5 + $0x48] sm:$0xff] %v638
    %655 = vst [vmem:[%s5 + $0x50] sm:$0xff] %v639
    %656 = vst [vmem:[%s5 + $0x58] sm:$0xff] %v640
    %657 = vst [vmem:[%s5 + $0x60] sm:$0xff] %v641
    %658 = vst [vmem:[%s5 + $0x68] sm:$0xff] %v642
    %659 = vst [vmem:[%s5 + $0x70] sm:$0xff] %v643
    %660 = vst [vmem:[%s5 + $0x78] sm:$0xff] %v644
  $region29: #{bottleneck_psp.5} parent=0 // pred_fallthru
    _
  // Predicated region
  $region30: #{bottleneck_psp.5} parent=0 // pred_check
    _
  $region31: #{bottleneck_psp.5} parent=0 // pred_check_branch
    %662 = sbr.rel (0) target = $region33
  $region32: #{bottleneck_psp.5} parent=0 // pred_region
    _
  $region33: #{bottleneck_psp.5} parent=0 // pred_fallthru
    _
  // Predicated region
  $region34: #{bottleneck_psp.5} parent=0 // pred_check
    _
  $region35: #{bottleneck_psp.5} parent=0 // pred_check_branch
    %664 = sbr.rel (0) target = $region37
  $region36: #{bottleneck_psp.5} parent=0 // pred_region
    _
  $region37: #{bottleneck_psp.5} parent=0 // pred_fallthru
    _

</llo_original>
